<compile_context>
chip_gen: v7x
topology: tpu7x:2x2x1
jax: 0.10.0
libtpu: 0.0.40
codegen_flags: <defaults>
</compile_context>

<pallas_src>
import jax
import jax.numpy as jnp
from jax import lax
from jax.experimental import pallas as pl
from jax.experimental.pallas import tpu as pltpu

BN_EPS = 1e-5  # nn.BatchNorm2d default


# ----------------------------------------------------------------------------
# Kernel: fused (1x1 conv w/ folded BN) + bilinear x2 upsample + ReLU.
# ----------------------------------------------------------------------------
def _fused_upsample_conv_kernel(tb):
    def kernel(x_ref, w_ref, shift_ref, awt_ref, o_ref):
        # x_ref    : (1, Cin, H, W)      full input plane of one batch element
        # w_ref    : (Cout, Cin)         conv weight with BN scale folded in
        # shift_ref: (Cout, 1)           BN shift  (beta - mean * scale)
        # awt_ref  : (W, 2W)             bilinear x2 matrix along W (transposed)
        # o_ref    : (1, Cout, 2*tb, 2W) output row block
        H = x_ref.shape[2]
        h0 = pl.program_id(1) * tb

        w = w_ref[...]          # hoisted out of the row loop
        shift = shift_ref[...]
        awt = awt_ref[...]

        def conv_up_row(r):
            # 1x1 conv (+ folded BN scale) on the MXU, BN shift, then the
            # W-direction x2 resize as a (W, 2W) matmul.  The shift commutes
            # with the resize because bilinear weights sum to 1 per column.
            x_r = x_ref[0, :, r, :]                                   # (Cin, W)
            y = jnp.dot(w, x_r, preferred_element_type=jnp.float32) + shift
            return jnp.dot(y, awt, preferred_element_type=jnp.float32)  # (Cout, 2W)

        # Prime the H-direction carry with rows h0-1 (clamped halo) and h0.
        z_prev0 = conv_up_row(jnp.maximum(h0 - 1, 0))
        z_cur0 = conv_up_row(h0)

        def row_body(k, carry):
            z_prev, z_cur = carry
            z_next = conv_up_row(jnp.minimum(h0 + k + 1, H - 1))      # clamped halo
            # bilinear x2 along H (align_corners=False) + ReLU epilogue:
            #   out[2k]   = 0.75*z_k + 0.25*z_{k-1}
            #   out[2k+1] = 0.75*z_k + 0.25*z_{k+1}
            o_ref[0, :, 2 * k, :] = jnp.maximum(
                0.75 * z_cur + 0.25 * z_prev, 0.0).astype(o_ref.dtype)
            o_ref[0, :, 2 * k + 1, :] = jnp.maximum(
                0.75 * z_cur + 0.25 * z_next, 0.0).astype(o_ref.dtype)
            return (z_cur, z_next)

        lax.fori_loop(0, tb, row_body, (z_prev0, z_cur0), unroll=(tb <= 16))

    return kernel


# ----------------------------------------------------------------------------
# Wrapper helpers.
# ----------------------------------------------------------------------------
def _bilinear2x_matrix(n):
    """(2n, n) matrix of torch Upsample(scale=2, bilinear, align_corners=False)."""
    i = jnp.arange(n)
    eye = jnp.eye(n, dtype=jnp.float32)
    up = eye[jnp.maximum(i - 1, 0)]       # row k -> e_{max(k-1, 0)}
    dn = eye[jnp.minimum(i + 1, n - 1)]   # row k -> e_{min(k+1, n-1)}
    even = 0.75 * eye + 0.25 * up         # output row 2k
    odd = 0.75 * eye + 0.25 * dn          # output row 2k+1
    return jnp.stack([even, odd], axis=1).reshape(2 * n, n)


def _pick_row_block(H, W, Cout, budget_bytes=2 << 20):
    """Largest divisor tb of H whose (Cout, 2*tb, 2W) f32 output block fits budget."""
    cands = [d for d in range(H, 0, -1)
             if H % d == 0 and (d == H or (2 * d) % 8 == 0)]
    for tb in cands:
        if Cout * (2 * tb) * (2 * W) * 4 <= budget_bytes:
            return tb
    return cands[-1]


def ico_interp_conv_forward(x, weight, bn_gamma, bn_beta, bn_mean, bn_var):
    """IcoInterpConv.forward: (B, Cin, H, W) NCHW -> (B, Cout, 2H, 2W) NCHW."""
    B, Cin, H, W = x.shape
    Cout = weight.shape[0]
    H2, W2 = 2 * H, 2 * W

    # Fold BN (eval-mode / running stats) into the 1x1 conv (fast_conv_bn_eval).
    scale = bn_gamma / jnp.sqrt(bn_var + BN_EPS)                      # (Cout,)
    w_fold = (weight.reshape(Cout, Cin) * scale[:, None]).astype(jnp.float32)
    shift = (bn_beta - bn_mean * scale).reshape(Cout, 1).astype(jnp.float32)

    # W-direction x2 bilinear resize as a matmul: out = y @ a_wt, a_wt (W, 2W).
    a_wt = jnp.transpose(_bilinear2x_matrix(W)).astype(jnp.float32)

    # TODO(synk): IcoPad explicit-padding layer (module default padding=0 -> identity).

    tb = _pick_row_block(H, W, Cout)
    grid = (B, H // tb)

    # VMEM budget: double-buffered input plane + output block + small operands.
    blk_bytes = (2 * (Cin * H * W + Cout * (2 * tb) * W2)
                 + 2 * (Cout * Cin + Cout + W * W2)) * 4
    vmem_limit = int(min(max(2 * blk_bytes, 8 << 20), 60 << 20))

    cost = pl.CostEstimate(
        flops=int(2 * B * H * W * Cin * Cout        # 1x1 conv on low-res rows
                  + 4 * B * H * W * W * Cout        # W-resize matmul
                  + 12 * B * H * W * Cout),         # H-blend + shift + ReLU
        transcendentals=0,
        bytes_accessed=int(4 * (B * Cin * H * W + B * Cout * H2 * W2)),
    )

    return pl.pallas_call(
        _fused_upsample_conv_kernel(tb),
        out_shape=jax.ShapeDtypeStruct((B, Cout, H2, W2), jnp.float32),
        grid=grid,
        in_specs=[
            # Full (Cin, H, W) plane per batch element; its block index is
            # constant along the row-block axis -> DMA'd once per batch element.
            pl.BlockSpec((1, Cin, H, W), lambda b, h: (b, 0, 0, 0)),
            pl.BlockSpec((Cout, Cin), lambda b, h: (0, 0)),
            pl.BlockSpec((Cout, 1), lambda b, h: (0, 0)),
            pl.BlockSpec((W, W2), lambda b, h: (0, 0)),
        ],
        out_specs=pl.BlockSpec((1, Cout, 2 * tb, W2), lambda b, h: (b, 0, h, 0)),
        compiler_params=pltpu.CompilerParams(
            dimension_semantics=("parallel", "arbitrary"),
            vmem_limit_bytes=vmem_limit,
        ),
        cost_estimate=cost,
    )(x.astype(jnp.float32), w_fold, shift, a_wt)


# ----------------------------------------------------------------------------
# Pure-JAX reference (exact PyTorch op order) for a correctness check.
# ----------------------------------------------------------------------------
def _upsample2_axis(x, axis):
    n = x.shape[axis]
    idx = jnp.arange(n)
    xl = jnp.take(x, jnp.maximum(idx - 1, 0), axis=axis)
    xr = jnp.take(x, jnp.minimum(idx + 1, n - 1), axis=axis)
    even = 0.25 * xl + 0.75 * x
    odd = 0.75 * x + 0.25 * xr
    stacked = jnp.stack([even, odd], axis=axis + 1)
    shape = list(x.shape)
    shape[axis] = 2 * n
    return stacked.reshape(shape)


def reference_forward(x, weight, bn_gamma, bn_beta, bn_mean, bn_var):
    xu = _upsample2_axis(_upsample2_axis(x, 2), 3)
    y = jnp.einsum("oi,bihw->bohw", weight[:, :, 0, 0], xu,
                   precision=jax.lax.Precision.HIGHEST)
    scale = bn_gamma / jnp.sqrt(bn_var + BN_EPS)
    shift = bn_beta - bn_mean * scale
    y = y * scale[None, :, None, None] + shift[None, :, None, None]
    return jnp.maximum(y, 0.0)


if __name__ == "__main__":
    key = jax.random.PRNGKey(0)
    k_x, k_w, k_g, k_b, k_m, k_v = jax.random.split(key, 6)

    B, Cin, Cout, H, W = 2, 4, 8, 16, 16

    x = jax.random.normal(k_x, (B, Cin, H, W), dtype=jnp.float32)
    # conv.weight: kaiming-style init, (Cout, Cin, 1, 1), no bias (BN follows).
    weight = jax.random.normal(k_w, (Cout, Cin, 1, 1), jnp.float32) * (2.0 / Cin) ** 0.5
    # Non-trivial BN params / running stats to exercise the folding.
    bn_gamma = 1.0 + 0.1 * jax.random.normal(k_g, (Cout,), jnp.float32)
    bn_beta = 0.1 * jax.random.normal(k_b, (Cout,), jnp.float32)
    bn_mean = 0.1 * jax.random.normal(k_m, (Cout,), jnp.float32)
    bn_var = jax.random.uniform(k_v, (Cout,), jnp.float32, minval=0.5, maxval=1.5)

    fwd = jax.jit(ico_interp_conv_forward)
    out = jax.block_until_ready(fwd(x, weight, bn_gamma, bn_beta, bn_mean, bn_var))
    assert out.shape == (B, Cout, 2 * H, 2 * W), out.shape

    ref = jax.block_until_ready(
        reference_forward(x, weight, bn_gamma, bn_beta, bn_mean, bn_var))
    rel_err = float(jnp.max(jnp.abs(out - ref)) / (jnp.max(jnp.abs(ref)) + 1e-6))
    assert rel_err < 2e-2, f"kernel/reference mismatch: rel max err = {rel_err}"

    print("KERNEL_OK")
</pallas_src>

<mosaic_0001>
module attributes {stable_mosaic.version = 11 : i64} {
  func.func @kernel(%arg0: i32, %arg1: i32, %arg2: memref<1x4x16x16xf32, #tpu.memory_space<vmem>>, %arg3: memref<8x4xf32, #tpu.memory_space<vmem>>, %arg4: memref<8x1xf32, #tpu.memory_space<vmem>>, %arg5: memref<16x32xf32, #tpu.memory_space<vmem>>, %arg6: memref<1x8x32x32xf32, #tpu.memory_space<vmem>>) attributes {dimension_semantics = [#tpu.dimension_semantics<parallel>, #tpu.dimension_semantics<arbitrary>], iteration_bounds = array<i64: 2, 1>, scalar_prefetch = 0 : i64, scratch_operands = 0 : i64, tpu.core_type = #tpu.core_type<tc>, window_params = [{transform_indices = @transform_0, window_bounds = array<i64: 1, 4, 16, 16>}, {pipeline_mode = #tpu.pipeline_mode<synchronous>, transform_indices = @transform_1, window_bounds = array<i64: 8, 4>}, {pipeline_mode = #tpu.pipeline_mode<synchronous>, transform_indices = @transform_2, window_bounds = array<i64: 8, 1>}, {pipeline_mode = #tpu.pipeline_mode<synchronous>, transform_indices = @transform_3, window_bounds = array<i64: 16, 32>}, {transform_indices = @transform_4, window_bounds = array<i64: 1, 8, 32, 32>}]} {
    %c16_i32 = arith.constant 16 : i32
    %0 = arith.muli %arg1, %c16_i32 : i32
    %c0 = arith.constant 0 : index
    %c0_0 = arith.constant 0 : index
    %1 = vector.load %arg3[%c0, %c0_0] : memref<8x4xf32, #tpu.memory_space<vmem>>, vector<8x4xf32>
    %c0_1 = arith.constant 0 : index
    %c0_2 = arith.constant 0 : index
    %2 = vector.load %arg4[%c0_1, %c0_2] : memref<8x1xf32, #tpu.memory_space<vmem>>, vector<8x1xf32>
    %c0_3 = arith.constant 0 : index
    %c0_4 = arith.constant 0 : index
    %3 = vector.load %arg5[%c0_3, %c0_4] : memref<16x32xf32, #tpu.memory_space<vmem>>, vector<16x32xf32>
    %c1_i32 = arith.constant 1 : i32
    %4 = arith.subi %0, %c1_i32 : i32
    %c0_i32 = arith.constant 0 : i32
    %5 = arith.maxsi %4, %c0_i32 : i32
    %c0_5 = arith.constant 0 : index
    %c0_6 = arith.constant 0 : index
    %6 = arith.index_cast %5 : i32 to index
    %c0_7 = arith.constant 0 : index
    %7 = vector.load %arg2[%c0_5, %c0_6, %6, %c0_7] : memref<1x4x16x16xf32, #tpu.memory_space<vmem>>, vector<1x4x1x16xf32>
    %8 = vector.shape_cast %7 : vector<1x4x1x16xf32> to vector<4x16xf32>
    %cst = arith.constant dense<0.000000e+00> : vector<8x16xf32>
    %9 = tpu.matmul %1, %8, %cst {dimension_numbers = #tpu.dot_dimension_numbers<[1], [0], [0], [1], [0, 0, 1, 1], [], []>} : vector<8x4xf32>, vector<4x16xf32>, vector<8x16xf32> -> vector<8x16xf32>
    %10 = vector.broadcast %2 : vector<8x1xf32> to vector<8x16xf32>
    %11 = arith.addf %9, %10 : vector<8x16xf32>
    %cst_8 = arith.constant dense<0.000000e+00> : vector<8x32xf32>
    %12 = tpu.matmul %11, %3, %cst_8 {dimension_numbers = #tpu.dot_dimension_numbers<[1], [0], [0], [1], [0, 0, 1, 1], [], []>} : vector<8x16xf32>, vector<16x32xf32>, vector<8x32xf32> -> vector<8x32xf32>
    %c0_9 = arith.constant 0 : index
    %c0_10 = arith.constant 0 : index
    %13 = arith.index_cast %0 : i32 to index
    %c0_11 = arith.constant 0 : index
    %14 = vector.load %arg2[%c0_9, %c0_10, %13, %c0_11] : memref<1x4x16x16xf32, #tpu.memory_space<vmem>>, vector<1x4x1x16xf32>
    %15 = vector.shape_cast %14 : vector<1x4x1x16xf32> to vector<4x16xf32>
    %cst_12 = arith.constant dense<0.000000e+00> : vector<8x16xf32>
    %16 = tpu.matmul %1, %15, %cst_12 {dimension_numbers = #tpu.dot_dimension_numbers<[1], [0], [0], [1], [0, 0, 1, 1], [], []>} : vector<8x4xf32>, vector<4x16xf32>, vector<8x16xf32> -> vector<8x16xf32>
    %17 = vector.broadcast %2 : vector<8x1xf32> to vector<8x16xf32>
    %18 = arith.addf %16, %17 : vector<8x16xf32>
    %cst_13 = arith.constant dense<0.000000e+00> : vector<8x32xf32>
    %19 = tpu.matmul %18, %3, %cst_13 {dimension_numbers = #tpu.dot_dimension_numbers<[1], [0], [0], [1], [0, 0, 1, 1], [], []>} : vector<8x16xf32>, vector<16x32xf32>, vector<8x32xf32> -> vector<8x32xf32>
    %c0_i32_14 = arith.constant 0 : i32
    %20 = arith.addi %0, %c0_i32_14 : i32
    %c1_i32_15 = arith.constant 1 : i32
    %21 = arith.addi %20, %c1_i32_15 : i32
    %c15_i32 = arith.constant 15 : i32
    %22 = arith.minsi %21, %c15_i32 : i32
    %c0_16 = arith.constant 0 : index
    %c0_17 = arith.constant 0 : index
    %23 = arith.index_cast %22 : i32 to index
    %c0_18 = arith.constant 0 : index
    %24 = vector.load %arg2[%c0_16, %c0_17, %23, %c0_18] : memref<1x4x16x16xf32, #tpu.memory_space<vmem>>, vector<1x4x1x16xf32>
    %25 = vector.shape_cast %24 : vector<1x4x1x16xf32> to vector<4x16xf32>
    %cst_19 = arith.constant dense<0.000000e+00> : vector<8x16xf32>
    %26 = tpu.matmul %1, %25, %cst_19 {dimension_numbers = #tpu.dot_dimension_numbers<[1], [0], [0], [1], [0, 0, 1, 1], [], []>} : vector<8x4xf32>, vector<4x16xf32>, vector<8x16xf32> -> vector<8x16xf32>
    %27 = vector.broadcast %2 : vector<8x1xf32> to vector<8x16xf32>
    %28 = arith.addf %26, %27 : vector<8x16xf32>
    %cst_20 = arith.constant dense<0.000000e+00> : vector<8x32xf32>
    %29 = tpu.matmul %28, %3, %cst_20 {dimension_numbers = #tpu.dot_dimension_numbers<[1], [0], [0], [1], [0, 0, 1, 1], [], []>} : vector<8x16xf32>, vector<16x32xf32>, vector<8x32xf32> -> vector<8x32xf32>
    %cst_21 = arith.constant 7.500000e-01 : f32
    %30 = vector.broadcast %cst_21 : f32 to vector<8x32xf32>
    %31 = arith.mulf %30, %19 : vector<8x32xf32>
    %cst_22 = arith.constant 2.500000e-01 : f32
    %32 = vector.broadcast %cst_22 : f32 to vector<8x32xf32>
    %33 = arith.mulf %32, %12 : vector<8x32xf32>
    %34 = arith.addf %31, %33 : vector<8x32xf32>
    %cst_23 = arith.constant 0.000000e+00 : f32
    %35 = vector.broadcast %cst_23 : f32 to vector<8x32xf32>
    %36 = arith.maximumf %34, %35 : vector<8x32xf32>
    %c2_i32 = arith.constant 2 : i32
    %37 = arith.muli %c2_i32, %c0_i32_14 : i32
    %c0_24 = arith.constant 0 : index
    %c0_25 = arith.constant 0 : index
    %38 = arith.index_cast %37 : i32 to index
    %c0_26 = arith.constant 0 : index
    %39 = vector.load %arg6[%c0_24, %c0_25, %38, %c0_26] : memref<1x8x32x32xf32, #tpu.memory_space<vmem>>, vector<1x8x1x32xf32>
    %40 = vector.shape_cast %39 : vector<1x8x1x32xf32> to vector<8x32xf32>
    %41 = vector.shape_cast %36 : vector<8x32xf32> to vector<1x8x1x32xf32>
    tpu.vector_store %arg6[%c0_24, %c0_25, %38, %c0_26], %41 {strides = array<i32>} : memref<1x8x32x32xf32, #tpu.memory_space<vmem>>, vector<1x8x1x32xf32>,
    %cst_27 = arith.constant 7.500000e-01 : f32
    %42 = vector.broadcast %cst_27 : f32 to vector<8x32xf32>
    %43 = arith.mulf %42, %19 : vector<8x32xf32>
    %cst_28 = arith.constant 2.500000e-01 : f32
    %44 = vector.broadcast %cst_28 : f32 to vector<8x32xf32>
    %45 = arith.mulf %44, %29 : vector<8x32xf32>
    %46 = arith.addf %43, %45 : vector<8x32xf32>
    %cst_29 = arith.constant 0.000000e+00 : f32
    %47 = vector.broadcast %cst_29 : f32 to vector<8x32xf32>
    %48 = arith.maximumf %46, %47 : vector<8x32xf32>
    %c2_i32_30 = arith.constant 2 : i32
    %49 = arith.muli %c2_i32_30, %c0_i32_14 : i32
    %c1_i32_31 = arith.constant 1 : i32
    %50 = arith.addi %49, %c1_i32_31 : i32
    %c0_32 = arith.constant 0 : index
    %c0_33 = arith.constant 0 : index
    %51 = arith.index_cast %50 : i32 to index
    %c0_34 = arith.constant 0 : index
    %52 = vector.load %arg6[%c0_32, %c0_33, %51, %c0_34] : memref<1x8x32x32xf32, #tpu.memory_space<vmem>>, vector<1x8x1x32xf32>
    %53 = vector.shape_cast %52 : vector<1x8x1x32xf32> to vector<8x32xf32>
    %54 = vector.shape_cast %48 : vector<8x32xf32> to vector<1x8x1x32xf32>
    tpu.vector_store %arg6[%c0_32, %c0_33, %51, %c0_34], %54 {strides = array<i32>} : memref<1x8x32x32xf32, #tpu.memory_space<vmem>>, vector<1x8x1x32xf32>,
    %c1_i32_35 = arith.constant 1 : i32
    %55 = arith.addi %0, %c1_i32_35 : i32
    %c1_i32_36 = arith.constant 1 : i32
    %56 = arith.addi %55, %c1_i32_36 : i32
    %c15_i32_37 = arith.constant 15 : i32
    %57 = arith.minsi %56, %c15_i32_37 : i32
    %c0_38 = arith.constant 0 : index
    %c0_39 = arith.constant 0 : index
    %58 = arith.index_cast %57 : i32 to index
    %c0_40 = arith.constant 0 : index
    %59 = vector.load %arg2[%c0_38, %c0_39, %58, %c0_40] : memref<1x4x16x16xf32, #tpu.memory_space<vmem>>, vector<1x4x1x16xf32>
    %60 = vector.shape_cast %59 : vector<1x4x1x16xf32> to vector<4x16xf32>
    %cst_41 = arith.constant dense<0.000000e+00> : vector<8x16xf32>
    %61 = tpu.matmul %1, %60, %cst_41 {dimension_numbers = #tpu.dot_dimension_numbers<[1], [0], [0], [1], [0, 0, 1, 1], [], []>} : vector<8x4xf32>, vector<4x16xf32>, vector<8x16xf32> -> vector<8x16xf32>
    %62 = vector.broadcast %2 : vector<8x1xf32> to vector<8x16xf32>
    %63 = arith.addf %61, %62 : vector<8x16xf32>
    %cst_42 = arith.constant dense<0.000000e+00> : vector<8x32xf32>
    %64 = tpu.matmul %63, %3, %cst_42 {dimension_numbers = #tpu.dot_dimension_numbers<[1], [0], [0], [1], [0, 0, 1, 1], [], []>} : vector<8x16xf32>, vector<16x32xf32>, vector<8x32xf32> -> vector<8x32xf32>
    %cst_43 = arith.constant 7.500000e-01 : f32
    %65 = vector.broadcast %cst_43 : f32 to vector<8x32xf32>
    %66 = arith.mulf %65, %29 : vector<8x32xf32>
    %cst_44 = arith.constant 2.500000e-01 : f32
    %67 = vector.broadcast %cst_44 : f32 to vector<8x32xf32>
    %68 = arith.mulf %67, %19 : vector<8x32xf32>
    %69 = arith.addf %66, %68 : vector<8x32xf32>
    %cst_45 = arith.constant 0.000000e+00 : f32
    %70 = vector.broadcast %cst_45 : f32 to vector<8x32xf32>
    %71 = arith.maximumf %69, %70 : vector<8x32xf32>
    %c2_i32_46 = arith.constant 2 : i32
    %72 = arith.muli %c2_i32_46, %c1_i32_35 : i32
    %c0_47 = arith.constant 0 : index
    %c0_48 = arith.constant 0 : index
    %73 = arith.index_cast %72 : i32 to index
    %c0_49 = arith.constant 0 : index
    %74 = vector.load %arg6[%c0_47, %c0_48, %73, %c0_49] : memref<1x8x32x32xf32, #tpu.memory_space<vmem>>, vector<1x8x1x32xf32>
    %75 = vector.shape_cast %74 : vector<1x8x1x32xf32> to vector<8x32xf32>
    %76 = vector.shape_cast %71 : vector<8x32xf32> to vector<1x8x1x32xf32>
    tpu.vector_store %arg6[%c0_47, %c0_48, %73, %c0_49], %76 {strides = array<i32>} : memref<1x8x32x32xf32, #tpu.memory_space<vmem>>, vector<1x8x1x32xf32>,
    %cst_50 = arith.constant 7.500000e-01 : f32
    %77 = vector.broadcast %cst_50 : f32 to vector<8x32xf32>
    %78 = arith.mulf %77, %29 : vector<8x32xf32>
    %cst_51 = arith.constant 2.500000e-01 : f32
    %79 = vector.broadcast %cst_51 : f32 to vector<8x32xf32>
    %80 = arith.mulf %79, %64 : vector<8x32xf32>
    %81 = arith.addf %78, %80 : vector<8x32xf32>
    %cst_52 = arith.constant 0.000000e+00 : f32
    %82 = vector.broadcast %cst_52 : f32 to vector<8x32xf32>
    %83 = arith.maximumf %81, %82 : vector<8x32xf32>
    %c2_i32_53 = arith.constant 2 : i32
    %84 = arith.muli %c2_i32_53, %c1_i32_35 : i32
    %c1_i32_54 = arith.constant 1 : i32
    %85 = arith.addi %84, %c1_i32_54 : i32
    %c0_55 = arith.constant 0 : index
    %c0_56 = arith.constant 0 : index
    %86 = arith.index_cast %85 : i32 to index
    %c0_57 = arith.constant 0 : index
    %87 = vector.load %arg6[%c0_55, %c0_56, %86, %c0_57] : memref<1x8x32x32xf32, #tpu.memory_space<vmem>>, vector<1x8x1x32xf32>
    %88 = vector.shape_cast %87 : vector<1x8x1x32xf32> to vector<8x32xf32>
    %89 = vector.shape_cast %83 : vector<8x32xf32> to vector<1x8x1x32xf32>
    tpu.vector_store %arg6[%c0_55, %c0_56, %86, %c0_57], %89 {strides = array<i32>} : memref<1x8x32x32xf32, #tpu.memory_space<vmem>>, vector<1x8x1x32xf32>,
    %c2_i32_58 = arith.constant 2 : i32
    %90 = arith.addi %0, %c2_i32_58 : i32
    %c1_i32_59 = arith.constant 1 : i32
    %91 = arith.addi %90, %c1_i32_59 : i32
    %c15_i32_60 = arith.constant 15 : i32
    %92 = arith.minsi %91, %c15_i32_60 : i32
    %c0_61 = arith.constant 0 : index
    %c0_62 = arith.constant 0 : index
    %93 = arith.index_cast %92 : i32 to index
    %c0_63 = arith.constant 0 : index
    %94 = vector.load %arg2[%c0_61, %c0_62, %93, %c0_63] : memref<1x4x16x16xf32, #tpu.memory_space<vmem>>, vector<1x4x1x16xf32>
    %95 = vector.shape_cast %94 : vector<1x4x1x16xf32> to vector<4x16xf32>
    %cst_64 = arith.constant dense<0.000000e+00> : vector<8x16xf32>
    %96 = tpu.matmul %1, %95, %cst_64 {dimension_numbers = #tpu.dot_dimension_numbers<[1], [0], [0], [1], [0, 0, 1, 1], [], []>} : vector<8x4xf32>, vector<4x16xf32>, vector<8x16xf32> -> vector<8x16xf32>
    %97 = vector.broadcast %2 : vector<8x1xf32> to vector<8x16xf32>
    %98 = arith.addf %96, %97 : vector<8x16xf32>
    %cst_65 = arith.constant dense<0.000000e+00> : vector<8x32xf32>
    %99 = tpu.matmul %98, %3, %cst_65 {dimension_numbers = #tpu.dot_dimension_numbers<[1], [0], [0], [1], [0, 0, 1, 1], [], []>} : vector<8x16xf32>, vector<16x32xf32>, vector<8x32xf32> -> vector<8x32xf32>
    %cst_66 = arith.constant 7.500000e-01 : f32
    %100 = vector.broadcast %cst_66 : f32 to vector<8x32xf32>
    %101 = arith.mulf %100, %64 : vector<8x32xf32>
    %cst_67 = arith.constant 2.500000e-01 : f32
    %102 = vector.broadcast %cst_67 : f32 to vector<8x32xf32>
    %103 = arith.mulf %102, %29 : vector<8x32xf32>
    %104 = arith.addf %101, %103 : vector<8x32xf32>
    %cst_68 = arith.constant 0.000000e+00 : f32
    %105 = vector.broadcast %cst_68 : f32 to vector<8x32xf32>
    %106 = arith.maximumf %104, %105 : vector<8x32xf32>
    %c2_i32_69 = arith.constant 2 : i32
    %107 = arith.muli %c2_i32_69, %c2_i32_58 : i32
    %c0_70 = arith.constant 0 : index
    %c0_71 = arith.constant 0 : index
    %108 = arith.index_cast %107 : i32 to index
    %c0_72 = arith.constant 0 : index
    %109 = vector.load %arg6[%c0_70, %c0_71, %108, %c0_72] : memref<1x8x32x32xf32, #tpu.memory_space<vmem>>, vector<1x8x1x32xf32>
    %110 = vector.shape_cast %109 : vector<1x8x1x32xf32> to vector<8x32xf32>
    %111 = vector.shape_cast %106 : vector<8x32xf32> to vector<1x8x1x32xf32>
    tpu.vector_store %arg6[%c0_70, %c0_71, %108, %c0_72], %111 {strides = array<i32>} : memref<1x8x32x32xf32, #tpu.memory_space<vmem>>, vector<1x8x1x32xf32>,
    %cst_73 = arith.constant 7.500000e-01 : f32
    %112 = vector.broadcast %cst_73 : f32 to vector<8x32xf32>
    %113 = arith.mulf %112, %64 : vector<8x32xf32>
    %cst_74 = arith.constant 2.500000e-01 : f32
    %114 = vector.broadcast %cst_74 : f32 to vector<8x32xf32>
    %115 = arith.mulf %114, %99 : vector<8x32xf32>
    %116 = arith.addf %113, %115 : vector<8x32xf32>
    %cst_75 = arith.constant 0.000000e+00 : f32
    %117 = vector.broadcast %cst_75 : f32 to vector<8x32xf32>
    %118 = arith.maximumf %116, %117 : vector<8x32xf32>
    %c2_i32_76 = arith.constant 2 : i32
    %119 = arith.muli %c2_i32_76, %c2_i32_58 : i32
    %c1_i32_77 = arith.constant 1 : i32
    %120 = arith.addi %119, %c1_i32_77 : i32
    %c0_78 = arith.constant 0 : index
    %c0_79 = arith.constant 0 : index
    %121 = arith.index_cast %120 : i32 to index
    %c0_80 = arith.constant 0 : index
    %122 = vector.load %arg6[%c0_78, %c0_79, %121, %c0_80] : memref<1x8x32x32xf32, #tpu.memory_space<vmem>>, vector<1x8x1x32xf32>
    %123 = vector.shape_cast %122 : vector<1x8x1x32xf32> to vector<8x32xf32>
    %124 = vector.shape_cast %118 : vector<8x32xf32> to vector<1x8x1x32xf32>
    tpu.vector_store %arg6[%c0_78, %c0_79, %121, %c0_80], %124 {strides = array<i32>} : memref<1x8x32x32xf32, #tpu.memory_space<vmem>>, vector<1x8x1x32xf32>,
    %c3_i32 = arith.constant 3 : i32
    %125 = arith.addi %0, %c3_i32 : i32
    %c1_i32_81 = arith.constant 1 : i32
    %126 = arith.addi %125, %c1_i32_81 : i32
    %c15_i32_82 = arith.constant 15 : i32
    %127 = arith.minsi %126, %c15_i32_82 : i32
    %c0_83 = arith.constant 0 : index
    %c0_84 = arith.constant 0 : index
    %128 = arith.index_cast %127 : i32 to index
    %c0_85 = arith.constant 0 : index
    %129 = vector.load %arg2[%c0_83, %c0_84, %128, %c0_85] : memref<1x4x16x16xf32, #tpu.memory_space<vmem>>, vector<1x4x1x16xf32>
    %130 = vector.shape_cast %129 : vector<1x4x1x16xf32> to vector<4x16xf32>
    %cst_86 = arith.constant dense<0.000000e+00> : vector<8x16xf32>
    %131 = tpu.matmul %1, %130, %cst_86 {dimension_numbers = #tpu.dot_dimension_numbers<[1], [0], [0], [1], [0, 0, 1, 1], [], []>} : vector<8x4xf32>, vector<4x16xf32>, vector<8x16xf32> -> vector<8x16xf32>
    %132 = vector.broadcast %2 : vector<8x1xf32> to vector<8x16xf32>
    %133 = arith.addf %131, %132 : vector<8x16xf32>
    %cst_87 = arith.constant dense<0.000000e+00> : vector<8x32xf32>
    %134 = tpu.matmul %133, %3, %cst_87 {dimension_numbers = #tpu.dot_dimension_numbers<[1], [0], [0], [1], [0, 0, 1, 1], [], []>} : vector<8x16xf32>, vector<16x32xf32>, vector<8x32xf32> -> vector<8x32xf32>
    %cst_88 = arith.constant 7.500000e-01 : f32
    %135 = vector.broadcast %cst_88 : f32 to vector<8x32xf32>
    %136 = arith.mulf %135, %99 : vector<8x32xf32>
    %cst_89 = arith.constant 2.500000e-01 : f32
    %137 = vector.broadcast %cst_89 : f32 to vector<8x32xf32>
    %138 = arith.mulf %137, %64 : vector<8x32xf32>
    %139 = arith.addf %136, %138 : vector<8x32xf32>
    %cst_90 = arith.constant 0.000000e+00 : f32
    %140 = vector.broadcast %cst_90 : f32 to vector<8x32xf32>
    %141 = arith.maximumf %139, %140 : vector<8x32xf32>
    %c2_i32_91 = arith.constant 2 : i32
    %142 = arith.muli %c2_i32_91, %c3_i32 : i32
    %c0_92 = arith.constant 0 : index
    %c0_93 = arith.constant 0 : index
    %143 = arith.index_cast %142 : i32 to index
    %c0_94 = arith.constant 0 : index
    %144 = vector.load %arg6[%c0_92, %c0_93, %143, %c0_94] : memref<1x8x32x32xf32, #tpu.memory_space<vmem>>, vector<1x8x1x32xf32>
    %145 = vector.shape_cast %144 : vector<1x8x1x32xf32> to vector<8x32xf32>
    %146 = vector.shape_cast %141 : vector<8x32xf32> to vector<1x8x1x32xf32>
    tpu.vector_store %arg6[%c0_92, %c0_93, %143, %c0_94], %146 {strides = array<i32>} : memref<1x8x32x32xf32, #tpu.memory_space<vmem>>, vector<1x8x1x32xf32>,
    %cst_95 = arith.constant 7.500000e-01 : f32
    %147 = vector.broadcast %cst_95 : f32 to vector<8x32xf32>
    %148 = arith.mulf %147, %99 : vector<8x32xf32>
    %cst_96 = arith.constant 2.500000e-01 : f32
    %149 = vector.broadcast %cst_96 : f32 to vector<8x32xf32>
    %150 = arith.mulf %149, %134 : vector<8x32xf32>
    %151 = arith.addf %148, %150 : vector<8x32xf32>
    %cst_97 = arith.constant 0.000000e+00 : f32
    %152 = vector.broadcast %cst_97 : f32 to vector<8x32xf32>
    %153 = arith.maximumf %151, %152 : vector<8x32xf32>
    %c2_i32_98 = arith.constant 2 : i32
    %154 = arith.muli %c2_i32_98, %c3_i32 : i32
    %c1_i32_99 = arith.constant 1 : i32
    %155 = arith.addi %154, %c1_i32_99 : i32
    %c0_100 = arith.constant 0 : index
    %c0_101 = arith.constant 0 : index
    %156 = arith.index_cast %155 : i32 to index
    %c0_102 = arith.constant 0 : index
    %157 = vector.load %arg6[%c0_100, %c0_101, %156, %c0_102] : memref<1x8x32x32xf32, #tpu.memory_space<vmem>>, vector<1x8x1x32xf32>
    %158 = vector.shape_cast %157 : vector<1x8x1x32xf32> to vector<8x32xf32>
    %159 = vector.shape_cast %153 : vector<8x32xf32> to vector<1x8x1x32xf32>
    tpu.vector_store %arg6[%c0_100, %c0_101, %156, %c0_102], %159 {strides = array<i32>} : memref<1x8x32x32xf32, #tpu.memory_space<vmem>>, vector<1x8x1x32xf32>,
    %c4_i32 = arith.constant 4 : i32
    %160 = arith.addi %0, %c4_i32 : i32
    %c1_i32_103 = arith.constant 1 : i32
    %161 = arith.addi %160, %c1_i32_103 : i32
    %c15_i32_104 = arith.constant 15 : i32
    %162 = arith.minsi %161, %c15_i32_104 : i32
    %c0_105 = arith.constant 0 : index
    %c0_106 = arith.constant 0 : index
    %163 = arith.index_cast %162 : i32 to index
    %c0_107 = arith.constant 0 : index
    %164 = vector.load %arg2[%c0_105, %c0_106, %163, %c0_107] : memref<1x4x16x16xf32, #tpu.memory_space<vmem>>, vector<1x4x1x16xf32>
    %165 = vector.shape_cast %164 : vector<1x4x1x16xf32> to vector<4x16xf32>
    %cst_108 = arith.constant dense<0.000000e+00> : vector<8x16xf32>
    %166 = tpu.matmul %1, %165, %cst_108 {dimension_numbers = #tpu.dot_dimension_numbers<[1], [0], [0], [1], [0, 0, 1, 1], [], []>} : vector<8x4xf32>, vector<4x16xf32>, vector<8x16xf32> -> vector<8x16xf32>
    %167 = vector.broadcast %2 : vector<8x1xf32> to vector<8x16xf32>
    %168 = arith.addf %166, %167 : vector<8x16xf32>
    %cst_109 = arith.constant dense<0.000000e+00> : vector<8x32xf32>
    %169 = tpu.matmul %168, %3, %cst_109 {dimension_numbers = #tpu.dot_dimension_numbers<[1], [0], [0], [1], [0, 0, 1, 1], [], []>} : vector<8x16xf32>, vector<16x32xf32>, vector<8x32xf32> -> vector<8x32xf32>
    %cst_110 = arith.constant 7.500000e-01 : f32
    %170 = vector.broadcast %cst_110 : f32 to vector<8x32xf32>
    %171 = arith.mulf %170, %134 : vector<8x32xf32>
    %cst_111 = arith.constant 2.500000e-01 : f32
    %172 = vector.broadcast %cst_111 : f32 to vector<8x32xf32>
    %173 = arith.mulf %172, %99 : vector<8x32xf32>
    %174 = arith.addf %171, %173 : vector<8x32xf32>
    %cst_112 = arith.constant 0.000000e+00 : f32
    %175 = vector.broadcast %cst_112 : f32 to vector<8x32xf32>
    %176 = arith.maximumf %174, %175 : vector<8x32xf32>
    %c2_i32_113 = arith.constant 2 : i32
    %177 = arith.muli %c2_i32_113, %c4_i32 : i32
    %c0_114 = arith.constant 0 : index
    %c0_115 = arith.constant 0 : index
    %178 = arith.index_cast %177 : i32 to index
    %c0_116 = arith.constant 0 : index
    %179 = vector.load %arg6[%c0_114, %c0_115, %178, %c0_116] : memref<1x8x32x32xf32, #tpu.memory_space<vmem>>, vector<1x8x1x32xf32>
    %180 = vector.shape_cast %179 : vector<1x8x1x32xf32> to vector<8x32xf32>
    %181 = vector.shape_cast %176 : vector<8x32xf32> to vector<1x8x1x32xf32>
    tpu.vector_store %arg6[%c0_114, %c0_115, %178, %c0_116], %181 {strides = array<i32>} : memref<1x8x32x32xf32, #tpu.memory_space<vmem>>, vector<1x8x1x32xf32>,
    %cst_117 = arith.constant 7.500000e-01 : f32
    %182 = vector.broadcast %cst_117 : f32 to vector<8x32xf32>
    %183 = arith.mulf %182, %134 : vector<8x32xf32>
    %cst_118 = arith.constant 2.500000e-01 : f32
    %184 = vector.broadcast %cst_118 : f32 to vector<8x32xf32>
    %185 = arith.mulf %184, %169 : vector<8x32xf32>
    %186 = arith.addf %183, %185 : vector<8x32xf32>
    %cst_119 = arith.constant 0.000000e+00 : f32
    %187 = vector.broadcast %cst_119 : f32 to vector<8x32xf32>
    %188 = arith.maximumf %186, %187 : vector<8x32xf32>
    %c2_i32_120 = arith.constant 2 : i32
    %189 = arith.muli %c2_i32_120, %c4_i32 : i32
    %c1_i32_121 = arith.constant 1 : i32
    %190 = arith.addi %189, %c1_i32_121 : i32
    %c0_122 = arith.constant 0 : index
    %c0_123 = arith.constant 0 : index
    %191 = arith.index_cast %190 : i32 to index
    %c0_124 = arith.constant 0 : index
    %192 = vector.load %arg6[%c0_122, %c0_123, %191, %c0_124] : memref<1x8x32x32xf32, #tpu.memory_space<vmem>>, vector<1x8x1x32xf32>
    %193 = vector.shape_cast %192 : vector<1x8x1x32xf32> to vector<8x32xf32>
    %194 = vector.shape_cast %188 : vector<8x32xf32> to vector<1x8x1x32xf32>
    tpu.vector_store %arg6[%c0_122, %c0_123, %191, %c0_124], %194 {strides = array<i32>} : memref<1x8x32x32xf32, #tpu.memory_space<vmem>>, vector<1x8x1x32xf32>,
    %c5_i32 = arith.constant 5 : i32
    %195 = arith.addi %0, %c5_i32 : i32
    %c1_i32_125 = arith.constant 1 : i32
    %196 = arith.addi %195, %c1_i32_125 : i32
    %c15_i32_126 = arith.constant 15 : i32
    %197 = arith.minsi %196, %c15_i32_126 : i32
    %c0_127 = arith.constant 0 : index
    %c0_128 = arith.constant 0 : index
    %198 = arith.index_cast %197 : i32 to index
    %c0_129 = arith.constant 0 : index
    %199 = vector.load %arg2[%c0_127, %c0_128, %198, %c0_129] : memref<1x4x16x16xf32, #tpu.memory_space<vmem>>, vector<1x4x1x16xf32>
    %200 = vector.shape_cast %199 : vector<1x4x1x16xf32> to vector<4x16xf32>
    %cst_130 = arith.constant dense<0.000000e+00> : vector<8x16xf32>
    %201 = tpu.matmul %1, %200, %cst_130 {dimension_numbers = #tpu.dot_dimension_numbers<[1], [0], [0], [1], [0, 0, 1, 1], [], []>} : vector<8x4xf32>, vector<4x16xf32>, vector<8x16xf32> -> vector<8x16xf32>
    %202 = vector.broadcast %2 : vector<8x1xf32> to vector<8x16xf32>
    %203 = arith.addf %201, %202 : vector<8x16xf32>
    %cst_131 = arith.constant dense<0.000000e+00> : vector<8x32xf32>
    %204 = tpu.matmul %203, %3, %cst_131 {dimension_numbers = #tpu.dot_dimension_numbers<[1], [0], [0], [1], [0, 0, 1, 1], [], []>} : vector<8x16xf32>, vector<16x32xf32>, vector<8x32xf32> -> vector<8x32xf32>
    %cst_132 = arith.constant 7.500000e-01 : f32
    %205 = vector.broadcast %cst_132 : f32 to vector<8x32xf32>
    %206 = arith.mulf %205, %169 : vector<8x32xf32>
    %cst_133 = arith.constant 2.500000e-01 : f32
    %207 = vector.broadcast %cst_133 : f32 to vector<8x32xf32>
    %208 = arith.mulf %207, %134 : vector<8x32xf32>
    %209 = arith.addf %206, %208 : vector<8x32xf32>
    %cst_134 = arith.constant 0.000000e+00 : f32
    %210 = vector.broadcast %cst_134 : f32 to vector<8x32xf32>
    %211 = arith.maximumf %209, %210 : vector<8x32xf32>
    %c2_i32_135 = arith.constant 2 : i32
    %212 = arith.muli %c2_i32_135, %c5_i32 : i32
    %c0_136 = arith.constant 0 : index
    %c0_137 = arith.constant 0 : index
    %213 = arith.index_cast %212 : i32 to index
    %c0_138 = arith.constant 0 : index
    %214 = vector.load %arg6[%c0_136, %c0_137, %213, %c0_138] : memref<1x8x32x32xf32, #tpu.memory_space<vmem>>, vector<1x8x1x32xf32>
    %215 = vector.shape_cast %214 : vector<1x8x1x32xf32> to vector<8x32xf32>
    %216 = vector.shape_cast %211 : vector<8x32xf32> to vector<1x8x1x32xf32>
    tpu.vector_store %arg6[%c0_136, %c0_137, %213, %c0_138], %216 {strides = array<i32>} : memref<1x8x32x32xf32, #tpu.memory_space<vmem>>, vector<1x8x1x32xf32>,
    %cst_139 = arith.constant 7.500000e-01 : f32
    %217 = vector.broadcast %cst_139 : f32 to vector<8x32xf32>
    %218 = arith.mulf %217, %169 : vector<8x32xf32>
    %cst_140 = arith.constant 2.500000e-01 : f32
    %219 = vector.broadcast %cst_140 : f32 to vector<8x32xf32>
    %220 = arith.mulf %219, %204 : vector<8x32xf32>
    %221 = arith.addf %218, %220 : vector<8x32xf32>
    %cst_141 = arith.constant 0.000000e+00 : f32
    %222 = vector.broadcast %cst_141 : f32 to vector<8x32xf32>
    %223 = arith.maximumf %221, %222 : vector<8x32xf32>
    %c2_i32_142 = arith.constant 2 : i32
    %224 = arith.muli %c2_i32_142, %c5_i32 : i32
    %c1_i32_143 = arith.constant 1 : i32
    %225 = arith.addi %224, %c1_i32_143 : i32
    %c0_144 = arith.constant 0 : index
    %c0_145 = arith.constant 0 : index
    %226 = arith.index_cast %225 : i32 to index
    %c0_146 = arith.constant 0 : index
    %227 = vector.load %arg6[%c0_144, %c0_145, %226, %c0_146] : memref<1x8x32x32xf32, #tpu.memory_space<vmem>>, vector<1x8x1x32xf32>
    %228 = vector.shape_cast %227 : vector<1x8x1x32xf32> to vector<8x32xf32>
    %229 = vector.shape_cast %223 : vector<8x32xf32> to vector<1x8x1x32xf32>
    tpu.vector_store %arg6[%c0_144, %c0_145, %226, %c0_146], %229 {strides = array<i32>} : memref<1x8x32x32xf32, #tpu.memory_space<vmem>>, vector<1x8x1x32xf32>,
    %c6_i32 = arith.constant 6 : i32
    %230 = arith.addi %0, %c6_i32 : i32
    %c1_i32_147 = arith.constant 1 : i32
    %231 = arith.addi %230, %c1_i32_147 : i32
    %c15_i32_148 = arith.constant 15 : i32
    %232 = arith.minsi %231, %c15_i32_148 : i32
    %c0_149 = arith.constant 0 : index
    %c0_150 = arith.constant 0 : index
    %233 = arith.index_cast %232 : i32 to index
    %c0_151 = arith.constant 0 : index
    %234 = vector.load %arg2[%c0_149, %c0_150, %233, %c0_151] : memref<1x4x16x16xf32, #tpu.memory_space<vmem>>, vector<1x4x1x16xf32>
    %235 = vector.shape_cast %234 : vector<1x4x1x16xf32> to vector<4x16xf32>
    %cst_152 = arith.constant dense<0.000000e+00> : vector<8x16xf32>
    %236 = tpu.matmul %1, %235, %cst_152 {dimension_numbers = #tpu.dot_dimension_numbers<[1], [0], [0], [1], [0, 0, 1, 1], [], []>} : vector<8x4xf32>, vector<4x16xf32>, vector<8x16xf32> -> vector<8x16xf32>
    %237 = vector.broadcast %2 : vector<8x1xf32> to vector<8x16xf32>
    %238 = arith.addf %236, %237 : vector<8x16xf32>
    %cst_153 = arith.constant dense<0.000000e+00> : vector<8x32xf32>
    %239 = tpu.matmul %238, %3, %cst_153 {dimension_numbers = #tpu.dot_dimension_numbers<[1], [0], [0], [1], [0, 0, 1, 1], [], []>} : vector<8x16xf32>, vector<16x32xf32>, vector<8x32xf32> -> vector<8x32xf32>
    %cst_154 = arith.constant 7.500000e-01 : f32
    %240 = vector.broadcast %cst_154 : f32 to vector<8x32xf32>
    %241 = arith.mulf %240, %204 : vector<8x32xf32>
    %cst_155 = arith.constant 2.500000e-01 : f32
    %242 = vector.broadcast %cst_155 : f32 to vector<8x32xf32>
    %243 = arith.mulf %242, %169 : vector<8x32xf32>
    %244 = arith.addf %241, %243 : vector<8x32xf32>
    %cst_156 = arith.constant 0.000000e+00 : f32
    %245 = vector.broadcast %cst_156 : f32 to vector<8x32xf32>
    %246 = arith.maximumf %244, %245 : vector<8x32xf32>
    %c2_i32_157 = arith.constant 2 : i32
    %247 = arith.muli %c2_i32_157, %c6_i32 : i32
    %c0_158 = arith.constant 0 : index
    %c0_159 = arith.constant 0 : index
    %248 = arith.index_cast %247 : i32 to index
    %c0_160 = arith.constant 0 : index
    %249 = vector.load %arg6[%c0_158, %c0_159, %248, %c0_160] : memref<1x8x32x32xf32, #tpu.memory_space<vmem>>, vector<1x8x1x32xf32>
    %250 = vector.shape_cast %249 : vector<1x8x1x32xf32> to vector<8x32xf32>
    %251 = vector.shape_cast %246 : vector<8x32xf32> to vector<1x8x1x32xf32>
    tpu.vector_store %arg6[%c0_158, %c0_159, %248, %c0_160], %251 {strides = array<i32>} : memref<1x8x32x32xf32, #tpu.memory_space<vmem>>, vector<1x8x1x32xf32>,
    %cst_161 = arith.constant 7.500000e-01 : f32
    %252 = vector.broadcast %cst_161 : f32 to vector<8x32xf32>
    %253 = arith.mulf %252, %204 : vector<8x32xf32>
    %cst_162 = arith.constant 2.500000e-01 : f32
    %254 = vector.broadcast %cst_162 : f32 to vector<8x32xf32>
    %255 = arith.mulf %254, %239 : vector<8x32xf32>
    %256 = arith.addf %253, %255 : vector<8x32xf32>
    %cst_163 = arith.constant 0.000000e+00 : f32
    %257 = vector.broadcast %cst_163 : f32 to vector<8x32xf32>
    %258 = arith.maximumf %256, %257 : vector<8x32xf32>
    %c2_i32_164 = arith.constant 2 : i32
    %259 = arith.muli %c2_i32_164, %c6_i32 : i32
    %c1_i32_165 = arith.constant 1 : i32
    %260 = arith.addi %259, %c1_i32_165 : i32
    %c0_166 = arith.constant 0 : index
    %c0_167 = arith.constant 0 : index
    %261 = arith.index_cast %260 : i32 to index
    %c0_168 = arith.constant 0 : index
    %262 = vector.load %arg6[%c0_166, %c0_167, %261, %c0_168] : memref<1x8x32x32xf32, #tpu.memory_space<vmem>>, vector<1x8x1x32xf32>
    %263 = vector.shape_cast %262 : vector<1x8x1x32xf32> to vector<8x32xf32>
    %264 = vector.shape_cast %258 : vector<8x32xf32> to vector<1x8x1x32xf32>
    tpu.vector_store %arg6[%c0_166, %c0_167, %261, %c0_168], %264 {strides = array<i32>} : memref<1x8x32x32xf32, #tpu.memory_space<vmem>>, vector<1x8x1x32xf32>,
    %c7_i32 = arith.constant 7 : i32
    %265 = arith.addi %0, %c7_i32 : i32
    %c1_i32_169 = arith.constant 1 : i32
    %266 = arith.addi %265, %c1_i32_169 : i32
    %c15_i32_170 = arith.constant 15 : i32
    %267 = arith.minsi %266, %c15_i32_170 : i32
    %c0_171 = arith.constant 0 : index
    %c0_172 = arith.constant 0 : index
    %268 = arith.index_cast %267 : i32 to index
    %c0_173 = arith.constant 0 : index
    %269 = vector.load %arg2[%c0_171, %c0_172, %268, %c0_173] : memref<1x4x16x16xf32, #tpu.memory_space<vmem>>, vector<1x4x1x16xf32>
    %270 = vector.shape_cast %269 : vector<1x4x1x16xf32> to vector<4x16xf32>
    %cst_174 = arith.constant dense<0.000000e+00> : vector<8x16xf32>
    %271 = tpu.matmul %1, %270, %cst_174 {dimension_numbers = #tpu.dot_dimension_numbers<[1], [0], [0], [1], [0, 0, 1, 1], [], []>} : vector<8x4xf32>, vector<4x16xf32>, vector<8x16xf32> -> vector<8x16xf32>
    %272 = vector.broadcast %2 : vector<8x1xf32> to vector<8x16xf32>
    %273 = arith.addf %271, %272 : vector<8x16xf32>
    %cst_175 = arith.constant dense<0.000000e+00> : vector<8x32xf32>
    %274 = tpu.matmul %273, %3, %cst_175 {dimension_numbers = #tpu.dot_dimension_numbers<[1], [0], [0], [1], [0, 0, 1, 1], [], []>} : vector<8x16xf32>, vector<16x32xf32>, vector<8x32xf32> -> vector<8x32xf32>
    %cst_176 = arith.constant 7.500000e-01 : f32
    %275 = vector.broadcast %cst_176 : f32 to vector<8x32xf32>
    %276 = arith.mulf %275, %239 : vector<8x32xf32>
    %cst_177 = arith.constant 2.500000e-01 : f32
    %277 = vector.broadcast %cst_177 : f32 to vector<8x32xf32>
    %278 = arith.mulf %277, %204 : vector<8x32xf32>
    %279 = arith.addf %276, %278 : vector<8x32xf32>
    %cst_178 = arith.constant 0.000000e+00 : f32
    %280 = vector.broadcast %cst_178 : f32 to vector<8x32xf32>
    %281 = arith.maximumf %279, %280 : vector<8x32xf32>
    %c2_i32_179 = arith.constant 2 : i32
    %282 = arith.muli %c2_i32_179, %c7_i32 : i32
    %c0_180 = arith.constant 0 : index
    %c0_181 = arith.constant 0 : index
    %283 = arith.index_cast %282 : i32 to index
    %c0_182 = arith.constant 0 : index
    %284 = vector.load %arg6[%c0_180, %c0_181, %283, %c0_182] : memref<1x8x32x32xf32, #tpu.memory_space<vmem>>, vector<1x8x1x32xf32>
    %285 = vector.shape_cast %284 : vector<1x8x1x32xf32> to vector<8x32xf32>
    %286 = vector.shape_cast %281 : vector<8x32xf32> to vector<1x8x1x32xf32>
    tpu.vector_store %arg6[%c0_180, %c0_181, %283, %c0_182], %286 {strides = array<i32>} : memref<1x8x32x32xf32, #tpu.memory_space<vmem>>, vector<1x8x1x32xf32>,
    %cst_183 = arith.constant 7.500000e-01 : f32
    %287 = vector.broadcast %cst_183 : f32 to vector<8x32xf32>
    %288 = arith.mulf %287, %239 : vector<8x32xf32>
    %cst_184 = arith.constant 2.500000e-01 : f32
    %289 = vector.broadcast %cst_184 : f32 to vector<8x32xf32>
    %290 = arith.mulf %289, %274 : vector<8x32xf32>
    %291 = arith.addf %288, %290 : vector<8x32xf32>
    %cst_185 = arith.constant 0.000000e+00 : f32
    %292 = vector.broadcast %cst_185 : f32 to vector<8x32xf32>
    %293 = arith.maximumf %291, %292 : vector<8x32xf32>
    %c2_i32_186 = arith.constant 2 : i32
    %294 = arith.muli %c2_i32_186, %c7_i32 : i32
    %c1_i32_187 = arith.constant 1 : i32
    %295 = arith.addi %294, %c1_i32_187 : i32
    %c0_188 = arith.constant 0 : index
    %c0_189 = arith.constant 0 : index
    %296 = arith.index_cast %295 : i32 to index
    %c0_190 = arith.constant 0 : index
    %297 = vector.load %arg6[%c0_188, %c0_189, %296, %c0_190] : memref<1x8x32x32xf32, #tpu.memory_space<vmem>>, vector<1x8x1x32xf32>
    %298 = vector.shape_cast %297 : vector<1x8x1x32xf32> to vector<8x32xf32>
    %299 = vector.shape_cast %293 : vector<8x32xf32> to vector<1x8x1x32xf32>
    tpu.vector_store %arg6[%c0_188, %c0_189, %296, %c0_190], %299 {strides = array<i32>} : memref<1x8x32x32xf32, #tpu.memory_space<vmem>>, vector<1x8x1x32xf32>,
    %c8_i32 = arith.constant 8 : i32
    %300 = arith.addi %0, %c8_i32 : i32
    %c1_i32_191 = arith.constant 1 : i32
    %301 = arith.addi %300, %c1_i32_191 : i32
    %c15_i32_192 = arith.constant 15 : i32
    %302 = arith.minsi %301, %c15_i32_192 : i32
    %c0_193 = arith.constant 0 : index
    %c0_194 = arith.constant 0 : index
    %303 = arith.index_cast %302 : i32 to index
    %c0_195 = arith.constant 0 : index
    %304 = vector.load %arg2[%c0_193, %c0_194, %303, %c0_195] : memref<1x4x16x16xf32, #tpu.memory_space<vmem>>, vector<1x4x1x16xf32>
    %305 = vector.shape_cast %304 : vector<1x4x1x16xf32> to vector<4x16xf32>
    %cst_196 = arith.constant dense<0.000000e+00> : vector<8x16xf32>
    %306 = tpu.matmul %1, %305, %cst_196 {dimension_numbers = #tpu.dot_dimension_numbers<[1], [0], [0], [1], [0, 0, 1, 1], [], []>} : vector<8x4xf32>, vector<4x16xf32>, vector<8x16xf32> -> vector<8x16xf32>
    %307 = vector.broadcast %2 : vector<8x1xf32> to vector<8x16xf32>
    %308 = arith.addf %306, %307 : vector<8x16xf32>
    %cst_197 = arith.constant dense<0.000000e+00> : vector<8x32xf32>
    %309 = tpu.matmul %308, %3, %cst_197 {dimension_numbers = #tpu.dot_dimension_numbers<[1], [0], [0], [1], [0, 0, 1, 1], [], []>} : vector<8x16xf32>, vector<16x32xf32>, vector<8x32xf32> -> vector<8x32xf32>
    %cst_198 = arith.constant 7.500000e-01 : f32
    %310 = vector.broadcast %cst_198 : f32 to vector<8x32xf32>
    %311 = arith.mulf %310, %274 : vector<8x32xf32>
    %cst_199 = arith.constant 2.500000e-01 : f32
    %312 = vector.broadcast %cst_199 : f32 to vector<8x32xf32>
    %313 = arith.mulf %312, %239 : vector<8x32xf32>
    %314 = arith.addf %311, %313 : vector<8x32xf32>
    %cst_200 = arith.constant 0.000000e+00 : f32
    %315 = vector.broadcast %cst_200 : f32 to vector<8x32xf32>
    %316 = arith.maximumf %314, %315 : vector<8x32xf32>
    %c2_i32_201 = arith.constant 2 : i32
    %317 = arith.muli %c2_i32_201, %c8_i32 : i32
    %c0_202 = arith.constant 0 : index
    %c0_203 = arith.constant 0 : index
    %318 = arith.index_cast %317 : i32 to index
    %c0_204 = arith.constant 0 : index
    %319 = vector.load %arg6[%c0_202, %c0_203, %318, %c0_204] : memref<1x8x32x32xf32, #tpu.memory_space<vmem>>, vector<1x8x1x32xf32>
    %320 = vector.shape_cast %319 : vector<1x8x1x32xf32> to vector<8x32xf32>
    %321 = vector.shape_cast %316 : vector<8x32xf32> to vector<1x8x1x32xf32>
    tpu.vector_store %arg6[%c0_202, %c0_203, %318, %c0_204], %321 {strides = array<i32>} : memref<1x8x32x32xf32, #tpu.memory_space<vmem>>, vector<1x8x1x32xf32>,
    %cst_205 = arith.constant 7.500000e-01 : f32
    %322 = vector.broadcast %cst_205 : f32 to vector<8x32xf32>
    %323 = arith.mulf %322, %274 : vector<8x32xf32>
    %cst_206 = arith.constant 2.500000e-01 : f32
    %324 = vector.broadcast %cst_206 : f32 to vector<8x32xf32>
    %325 = arith.mulf %324, %309 : vector<8x32xf32>
    %326 = arith.addf %323, %325 : vector<8x32xf32>
    %cst_207 = arith.constant 0.000000e+00 : f32
    %327 = vector.broadcast %cst_207 : f32 to vector<8x32xf32>
    %328 = arith.maximumf %326, %327 : vector<8x32xf32>
    %c2_i32_208 = arith.constant 2 : i32
    %329 = arith.muli %c2_i32_208, %c8_i32 : i32
    %c1_i32_209 = arith.constant 1 : i32
    %330 = arith.addi %329, %c1_i32_209 : i32
    %c0_210 = arith.constant 0 : index
    %c0_211 = arith.constant 0 : index
    %331 = arith.index_cast %330 : i32 to index
    %c0_212 = arith.constant 0 : index
    %332 = vector.load %arg6[%c0_210, %c0_211, %331, %c0_212] : memref<1x8x32x32xf32, #tpu.memory_space<vmem>>, vector<1x8x1x32xf32>
    %333 = vector.shape_cast %332 : vector<1x8x1x32xf32> to vector<8x32xf32>
    %334 = vector.shape_cast %328 : vector<8x32xf32> to vector<1x8x1x32xf32>
    tpu.vector_store %arg6[%c0_210, %c0_211, %331, %c0_212], %334 {strides = array<i32>} : memref<1x8x32x32xf32, #tpu.memory_space<vmem>>, vector<1x8x1x32xf32>,
    %c9_i32 = arith.constant 9 : i32
    %335 = arith.addi %0, %c9_i32 : i32
    %c1_i32_213 = arith.constant 1 : i32
    %336 = arith.addi %335, %c1_i32_213 : i32
    %c15_i32_214 = arith.constant 15 : i32
    %337 = arith.minsi %336, %c15_i32_214 : i32
    %c0_215 = arith.constant 0 : index
    %c0_216 = arith.constant 0 : index
    %338 = arith.index_cast %337 : i32 to index
    %c0_217 = arith.constant 0 : index
    %339 = vector.load %arg2[%c0_215, %c0_216, %338, %c0_217] : memref<1x4x16x16xf32, #tpu.memory_space<vmem>>, vector<1x4x1x16xf32>
    %340 = vector.shape_cast %339 : vector<1x4x1x16xf32> to vector<4x16xf32>
    %cst_218 = arith.constant dense<0.000000e+00> : vector<8x16xf32>
    %341 = tpu.matmul %1, %340, %cst_218 {dimension_numbers = #tpu.dot_dimension_numbers<[1], [0], [0], [1], [0, 0, 1, 1], [], []>} : vector<8x4xf32>, vector<4x16xf32>, vector<8x16xf32> -> vector<8x16xf32>
    %342 = vector.broadcast %2 : vector<8x1xf32> to vector<8x16xf32>
    %343 = arith.addf %341, %342 : vector<8x16xf32>
    %cst_219 = arith.constant dense<0.000000e+00> : vector<8x32xf32>
    %344 = tpu.matmul %343, %3, %cst_219 {dimension_numbers = #tpu.dot_dimension_numbers<[1], [0], [0], [1], [0, 0, 1, 1], [], []>} : vector<8x16xf32>, vector<16x32xf32>, vector<8x32xf32> -> vector<8x32xf32>
    %cst_220 = arith.constant 7.500000e-01 : f32
    %345 = vector.broadcast %cst_220 : f32 to vector<8x32xf32>
    %346 = arith.mulf %345, %309 : vector<8x32xf32>
    %cst_221 = arith.constant 2.500000e-01 : f32
    %347 = vector.broadcast %cst_221 : f32 to vector<8x32xf32>
    %348 = arith.mulf %347, %274 : vector<8x32xf32>
    %349 = arith.addf %346, %348 : vector<8x32xf32>
    %cst_222 = arith.constant 0.000000e+00 : f32
    %350 = vector.broadcast %cst_222 : f32 to vector<8x32xf32>
    %351 = arith.maximumf %349, %350 : vector<8x32xf32>
    %c2_i32_223 = arith.constant 2 : i32
    %352 = arith.muli %c2_i32_223, %c9_i32 : i32
    %c0_224 = arith.constant 0 : index
    %c0_225 = arith.constant 0 : index
    %353 = arith.index_cast %352 : i32 to index
    %c0_226 = arith.constant 0 : index
    %354 = vector.load %arg6[%c0_224, %c0_225, %353, %c0_226] : memref<1x8x32x32xf32, #tpu.memory_space<vmem>>, vector<1x8x1x32xf32>
    %355 = vector.shape_cast %354 : vector<1x8x1x32xf32> to vector<8x32xf32>
    %356 = vector.shape_cast %351 : vector<8x32xf32> to vector<1x8x1x32xf32>
    tpu.vector_store %arg6[%c0_224, %c0_225, %353, %c0_226], %356 {strides = array<i32>} : memref<1x8x32x32xf32, #tpu.memory_space<vmem>>, vector<1x8x1x32xf32>,
    %cst_227 = arith.constant 7.500000e-01 : f32
    %357 = vector.broadcast %cst_227 : f32 to vector<8x32xf32>
    %358 = arith.mulf %357, %309 : vector<8x32xf32>
    %cst_228 = arith.constant 2.500000e-01 : f32
    %359 = vector.broadcast %cst_228 : f32 to vector<8x32xf32>
    %360 = arith.mulf %359, %344 : vector<8x32xf32>
    %361 = arith.addf %358, %360 : vector<8x32xf32>
    %cst_229 = arith.constant 0.000000e+00 : f32
    %362 = vector.broadcast %cst_229 : f32 to vector<8x32xf32>
    %363 = arith.maximumf %361, %362 : vector<8x32xf32>
    %c2_i32_230 = arith.constant 2 : i32
    %364 = arith.muli %c2_i32_230, %c9_i32 : i32
    %c1_i32_231 = arith.constant 1 : i32
    %365 = arith.addi %364, %c1_i32_231 : i32
    %c0_232 = arith.constant 0 : index
    %c0_233 = arith.constant 0 : index
    %366 = arith.index_cast %365 : i32 to index
    %c0_234 = arith.constant 0 : index
    %367 = vector.load %arg6[%c0_232, %c0_233, %366, %c0_234] : memref<1x8x32x32xf32, #tpu.memory_space<vmem>>, vector<1x8x1x32xf32>
    %368 = vector.shape_cast %367 : vector<1x8x1x32xf32> to vector<8x32xf32>
    %369 = vector.shape_cast %363 : vector<8x32xf32> to vector<1x8x1x32xf32>
    tpu.vector_store %arg6[%c0_232, %c0_233, %366, %c0_234], %369 {strides = array<i32>} : memref<1x8x32x32xf32, #tpu.memory_space<vmem>>, vector<1x8x1x32xf32>,
    %c10_i32 = arith.constant 10 : i32
    %370 = arith.addi %0, %c10_i32 : i32
    %c1_i32_235 = arith.constant 1 : i32
    %371 = arith.addi %370, %c1_i32_235 : i32
    %c15_i32_236 = arith.constant 15 : i32
    %372 = arith.minsi %371, %c15_i32_236 : i32
    %c0_237 = arith.constant 0 : index
    %c0_238 = arith.constant 0 : index
    %373 = arith.index_cast %372 : i32 to index
    %c0_239 = arith.constant 0 : index
    %374 = vector.load %arg2[%c0_237, %c0_238, %373, %c0_239] : memref<1x4x16x16xf32, #tpu.memory_space<vmem>>, vector<1x4x1x16xf32>
    %375 = vector.shape_cast %374 : vector<1x4x1x16xf32> to vector<4x16xf32>
    %cst_240 = arith.constant dense<0.000000e+00> : vector<8x16xf32>
    %376 = tpu.matmul %1, %375, %cst_240 {dimension_numbers = #tpu.dot_dimension_numbers<[1], [0], [0], [1], [0, 0, 1, 1], [], []>} : vector<8x4xf32>, vector<4x16xf32>, vector<8x16xf32> -> vector<8x16xf32>
    %377 = vector.broadcast %2 : vector<8x1xf32> to vector<8x16xf32>
    %378 = arith.addf %376, %377 : vector<8x16xf32>
    %cst_241 = arith.constant dense<0.000000e+00> : vector<8x32xf32>
    %379 = tpu.matmul %378, %3, %cst_241 {dimension_numbers = #tpu.dot_dimension_numbers<[1], [0], [0], [1], [0, 0, 1, 1], [], []>} : vector<8x16xf32>, vector<16x32xf32>, vector<8x32xf32> -> vector<8x32xf32>
    %cst_242 = arith.constant 7.500000e-01 : f32
    %380 = vector.broadcast %cst_242 : f32 to vector<8x32xf32>
    %381 = arith.mulf %380, %344 : vector<8x32xf32>
    %cst_243 = arith.constant 2.500000e-01 : f32
    %382 = vector.broadcast %cst_243 : f32 to vector<8x32xf32>
    %383 = arith.mulf %382, %309 : vector<8x32xf32>
    %384 = arith.addf %381, %383 : vector<8x32xf32>
    %cst_244 = arith.constant 0.000000e+00 : f32
    %385 = vector.broadcast %cst_244 : f32 to vector<8x32xf32>
    %386 = arith.maximumf %384, %385 : vector<8x32xf32>
    %c2_i32_245 = arith.constant 2 : i32
    %387 = arith.muli %c2_i32_245, %c10_i32 : i32
    %c0_246 = arith.constant 0 : index
    %c0_247 = arith.constant 0 : index
    %388 = arith.index_cast %387 : i32 to index
    %c0_248 = arith.constant 0 : index
    %389 = vector.load %arg6[%c0_246, %c0_247, %388, %c0_248] : memref<1x8x32x32xf32, #tpu.memory_space<vmem>>, vector<1x8x1x32xf32>
    %390 = vector.shape_cast %389 : vector<1x8x1x32xf32> to vector<8x32xf32>
    %391 = vector.shape_cast %386 : vector<8x32xf32> to vector<1x8x1x32xf32>
    tpu.vector_store %arg6[%c0_246, %c0_247, %388, %c0_248], %391 {strides = array<i32>} : memref<1x8x32x32xf32, #tpu.memory_space<vmem>>, vector<1x8x1x32xf32>,
    %cst_249 = arith.constant 7.500000e-01 : f32
    %392 = vector.broadcast %cst_249 : f32 to vector<8x32xf32>
    %393 = arith.mulf %392, %344 : vector<8x32xf32>
    %cst_250 = arith.constant 2.500000e-01 : f32
    %394 = vector.broadcast %cst_250 : f32 to vector<8x32xf32>
    %395 = arith.mulf %394, %379 : vector<8x32xf32>
    %396 = arith.addf %393, %395 : vector<8x32xf32>
    %cst_251 = arith.constant 0.000000e+00 : f32
    %397 = vector.broadcast %cst_251 : f32 to vector<8x32xf32>
    %398 = arith.maximumf %396, %397 : vector<8x32xf32>
    %c2_i32_252 = arith.constant 2 : i32
    %399 = arith.muli %c2_i32_252, %c10_i32 : i32
    %c1_i32_253 = arith.constant 1 : i32
    %400 = arith.addi %399, %c1_i32_253 : i32
    %c0_254 = arith.constant 0 : index
    %c0_255 = arith.constant 0 : index
    %401 = arith.index_cast %400 : i32 to index
    %c0_256 = arith.constant 0 : index
    %402 = vector.load %arg6[%c0_254, %c0_255, %401, %c0_256] : memref<1x8x32x32xf32, #tpu.memory_space<vmem>>, vector<1x8x1x32xf32>
    %403 = vector.shape_cast %402 : vector<1x8x1x32xf32> to vector<8x32xf32>
    %404 = vector.shape_cast %398 : vector<8x32xf32> to vector<1x8x1x32xf32>
    tpu.vector_store %arg6[%c0_254, %c0_255, %401, %c0_256], %404 {strides = array<i32>} : memref<1x8x32x32xf32, #tpu.memory_space<vmem>>, vector<1x8x1x32xf32>,
    %c11_i32 = arith.constant 11 : i32
    %405 = arith.addi %0, %c11_i32 : i32
    %c1_i32_257 = arith.constant 1 : i32
    %406 = arith.addi %405, %c1_i32_257 : i32
    %c15_i32_258 = arith.constant 15 : i32
    %407 = arith.minsi %406, %c15_i32_258 : i32
    %c0_259 = arith.constant 0 : index
    %c0_260 = arith.constant 0 : index
    %408 = arith.index_cast %407 : i32 to index
    %c0_261 = arith.constant 0 : index
    %409 = vector.load %arg2[%c0_259, %c0_260, %408, %c0_261] : memref<1x4x16x16xf32, #tpu.memory_space<vmem>>, vector<1x4x1x16xf32>
    %410 = vector.shape_cast %409 : vector<1x4x1x16xf32> to vector<4x16xf32>
    %cst_262 = arith.constant dense<0.000000e+00> : vector<8x16xf32>
    %411 = tpu.matmul %1, %410, %cst_262 {dimension_numbers = #tpu.dot_dimension_numbers<[1], [0], [0], [1], [0, 0, 1, 1], [], []>} : vector<8x4xf32>, vector<4x16xf32>, vector<8x16xf32> -> vector<8x16xf32>
    %412 = vector.broadcast %2 : vector<8x1xf32> to vector<8x16xf32>
    %413 = arith.addf %411, %412 : vector<8x16xf32>
    %cst_263 = arith.constant dense<0.000000e+00> : vector<8x32xf32>
    %414 = tpu.matmul %413, %3, %cst_263 {dimension_numbers = #tpu.dot_dimension_numbers<[1], [0], [0], [1], [0, 0, 1, 1], [], []>} : vector<8x16xf32>, vector<16x32xf32>, vector<8x32xf32> -> vector<8x32xf32>
    %cst_264 = arith.constant 7.500000e-01 : f32
    %415 = vector.broadcast %cst_264 : f32 to vector<8x32xf32>
    %416 = arith.mulf %415, %379 : vector<8x32xf32>
    %cst_265 = arith.constant 2.500000e-01 : f32
    %417 = vector.broadcast %cst_265 : f32 to vector<8x32xf32>
    %418 = arith.mulf %417, %344 : vector<8x32xf32>
    %419 = arith.addf %416, %418 : vector<8x32xf32>
    %cst_266 = arith.constant 0.000000e+00 : f32
    %420 = vector.broadcast %cst_266 : f32 to vector<8x32xf32>
    %421 = arith.maximumf %419, %420 : vector<8x32xf32>
    %c2_i32_267 = arith.constant 2 : i32
    %422 = arith.muli %c2_i32_267, %c11_i32 : i32
    %c0_268 = arith.constant 0 : index
    %c0_269 = arith.constant 0 : index
    %423 = arith.index_cast %422 : i32 to index
    %c0_270 = arith.constant 0 : index
    %424 = vector.load %arg6[%c0_268, %c0_269, %423, %c0_270] : memref<1x8x32x32xf32, #tpu.memory_space<vmem>>, vector<1x8x1x32xf32>
    %425 = vector.shape_cast %424 : vector<1x8x1x32xf32> to vector<8x32xf32>
    %426 = vector.shape_cast %421 : vector<8x32xf32> to vector<1x8x1x32xf32>
    tpu.vector_store %arg6[%c0_268, %c0_269, %423, %c0_270], %426 {strides = array<i32>} : memref<1x8x32x32xf32, #tpu.memory_space<vmem>>, vector<1x8x1x32xf32>,
    %cst_271 = arith.constant 7.500000e-01 : f32
    %427 = vector.broadcast %cst_271 : f32 to vector<8x32xf32>
    %428 = arith.mulf %427, %379 : vector<8x32xf32>
    %cst_272 = arith.constant 2.500000e-01 : f32
    %429 = vector.broadcast %cst_272 : f32 to vector<8x32xf32>
    %430 = arith.mulf %429, %414 : vector<8x32xf32>
    %431 = arith.addf %428, %430 : vector<8x32xf32>
    %cst_273 = arith.constant 0.000000e+00 : f32
    %432 = vector.broadcast %cst_273 : f32 to vector<8x32xf32>
    %433 = arith.maximumf %431, %432 : vector<8x32xf32>
    %c2_i32_274 = arith.constant 2 : i32
    %434 = arith.muli %c2_i32_274, %c11_i32 : i32
    %c1_i32_275 = arith.constant 1 : i32
    %435 = arith.addi %434, %c1_i32_275 : i32
    %c0_276 = arith.constant 0 : index
    %c0_277 = arith.constant 0 : index
    %436 = arith.index_cast %435 : i32 to index
    %c0_278 = arith.constant 0 : index
    %437 = vector.load %arg6[%c0_276, %c0_277, %436, %c0_278] : memref<1x8x32x32xf32, #tpu.memory_space<vmem>>, vector<1x8x1x32xf32>
    %438 = vector.shape_cast %437 : vector<1x8x1x32xf32> to vector<8x32xf32>
    %439 = vector.shape_cast %433 : vector<8x32xf32> to vector<1x8x1x32xf32>
    tpu.vector_store %arg6[%c0_276, %c0_277, %436, %c0_278], %439 {strides = array<i32>} : memref<1x8x32x32xf32, #tpu.memory_space<vmem>>, vector<1x8x1x32xf32>,
    %c12_i32 = arith.constant 12 : i32
    %440 = arith.addi %0, %c12_i32 : i32
    %c1_i32_279 = arith.constant 1 : i32
    %441 = arith.addi %440, %c1_i32_279 : i32
    %c15_i32_280 = arith.constant 15 : i32
    %442 = arith.minsi %441, %c15_i32_280 : i32
    %c0_281 = arith.constant 0 : index
    %c0_282 = arith.constant 0 : index
    %443 = arith.index_cast %442 : i32 to index
    %c0_283 = arith.constant 0 : index
    %444 = vector.load %arg2[%c0_281, %c0_282, %443, %c0_283] : memref<1x4x16x16xf32, #tpu.memory_space<vmem>>, vector<1x4x1x16xf32>
    %445 = vector.shape_cast %444 : vector<1x4x1x16xf32> to vector<4x16xf32>
    %cst_284 = arith.constant dense<0.000000e+00> : vector<8x16xf32>
    %446 = tpu.matmul %1, %445, %cst_284 {dimension_numbers = #tpu.dot_dimension_numbers<[1], [0], [0], [1], [0, 0, 1, 1], [], []>} : vector<8x4xf32>, vector<4x16xf32>, vector<8x16xf32> -> vector<8x16xf32>
    %447 = vector.broadcast %2 : vector<8x1xf32> to vector<8x16xf32>
    %448 = arith.addf %446, %447 : vector<8x16xf32>
    %cst_285 = arith.constant dense<0.000000e+00> : vector<8x32xf32>
    %449 = tpu.matmul %448, %3, %cst_285 {dimension_numbers = #tpu.dot_dimension_numbers<[1], [0], [0], [1], [0, 0, 1, 1], [], []>} : vector<8x16xf32>, vector<16x32xf32>, vector<8x32xf32> -> vector<8x32xf32>
    %cst_286 = arith.constant 7.500000e-01 : f32
    %450 = vector.broadcast %cst_286 : f32 to vector<8x32xf32>
    %451 = arith.mulf %450, %414 : vector<8x32xf32>
    %cst_287 = arith.constant 2.500000e-01 : f32
    %452 = vector.broadcast %cst_287 : f32 to vector<8x32xf32>
    %453 = arith.mulf %452, %379 : vector<8x32xf32>
    %454 = arith.addf %451, %453 : vector<8x32xf32>
    %cst_288 = arith.constant 0.000000e+00 : f32
    %455 = vector.broadcast %cst_288 : f32 to vector<8x32xf32>
    %456 = arith.maximumf %454, %455 : vector<8x32xf32>
    %c2_i32_289 = arith.constant 2 : i32
    %457 = arith.muli %c2_i32_289, %c12_i32 : i32
    %c0_290 = arith.constant 0 : index
    %c0_291 = arith.constant 0 : index
    %458 = arith.index_cast %457 : i32 to index
    %c0_292 = arith.constant 0 : index
    %459 = vector.load %arg6[%c0_290, %c0_291, %458, %c0_292] : memref<1x8x32x32xf32, #tpu.memory_space<vmem>>, vector<1x8x1x32xf32>
    %460 = vector.shape_cast %459 : vector<1x8x1x32xf32> to vector<8x32xf32>
    %461 = vector.shape_cast %456 : vector<8x32xf32> to vector<1x8x1x32xf32>
    tpu.vector_store %arg6[%c0_290, %c0_291, %458, %c0_292], %461 {strides = array<i32>} : memref<1x8x32x32xf32, #tpu.memory_space<vmem>>, vector<1x8x1x32xf32>,
    %cst_293 = arith.constant 7.500000e-01 : f32
    %462 = vector.broadcast %cst_293 : f32 to vector<8x32xf32>
    %463 = arith.mulf %462, %414 : vector<8x32xf32>
    %cst_294 = arith.constant 2.500000e-01 : f32
    %464 = vector.broadcast %cst_294 : f32 to vector<8x32xf32>
    %465 = arith.mulf %464, %449 : vector<8x32xf32>
    %466 = arith.addf %463, %465 : vector<8x32xf32>
    %cst_295 = arith.constant 0.000000e+00 : f32
    %467 = vector.broadcast %cst_295 : f32 to vector<8x32xf32>
    %468 = arith.maximumf %466, %467 : vector<8x32xf32>
    %c2_i32_296 = arith.constant 2 : i32
    %469 = arith.muli %c2_i32_296, %c12_i32 : i32
    %c1_i32_297 = arith.constant 1 : i32
    %470 = arith.addi %469, %c1_i32_297 : i32
    %c0_298 = arith.constant 0 : index
    %c0_299 = arith.constant 0 : index
    %471 = arith.index_cast %470 : i32 to index
    %c0_300 = arith.constant 0 : index
    %472 = vector.load %arg6[%c0_298, %c0_299, %471, %c0_300] : memref<1x8x32x32xf32, #tpu.memory_space<vmem>>, vector<1x8x1x32xf32>
    %473 = vector.shape_cast %472 : vector<1x8x1x32xf32> to vector<8x32xf32>
    %474 = vector.shape_cast %468 : vector<8x32xf32> to vector<1x8x1x32xf32>
    tpu.vector_store %arg6[%c0_298, %c0_299, %471, %c0_300], %474 {strides = array<i32>} : memref<1x8x32x32xf32, #tpu.memory_space<vmem>>, vector<1x8x1x32xf32>,
    %c13_i32 = arith.constant 13 : i32
    %475 = arith.addi %0, %c13_i32 : i32
    %c1_i32_301 = arith.constant 1 : i32
    %476 = arith.addi %475, %c1_i32_301 : i32
    %c15_i32_302 = arith.constant 15 : i32
    %477 = arith.minsi %476, %c15_i32_302 : i32
    %c0_303 = arith.constant 0 : index
    %c0_304 = arith.constant 0 : index
    %478 = arith.index_cast %477 : i32 to index
    %c0_305 = arith.constant 0 : index
    %479 = vector.load %arg2[%c0_303, %c0_304, %478, %c0_305] : memref<1x4x16x16xf32, #tpu.memory_space<vmem>>, vector<1x4x1x16xf32>
    %480 = vector.shape_cast %479 : vector<1x4x1x16xf32> to vector<4x16xf32>
    %cst_306 = arith.constant dense<0.000000e+00> : vector<8x16xf32>
    %481 = tpu.matmul %1, %480, %cst_306 {dimension_numbers = #tpu.dot_dimension_numbers<[1], [0], [0], [1], [0, 0, 1, 1], [], []>} : vector<8x4xf32>, vector<4x16xf32>, vector<8x16xf32> -> vector<8x16xf32>
    %482 = vector.broadcast %2 : vector<8x1xf32> to vector<8x16xf32>
    %483 = arith.addf %481, %482 : vector<8x16xf32>
    %cst_307 = arith.constant dense<0.000000e+00> : vector<8x32xf32>
    %484 = tpu.matmul %483, %3, %cst_307 {dimension_numbers = #tpu.dot_dimension_numbers<[1], [0], [0], [1], [0, 0, 1, 1], [], []>} : vector<8x16xf32>, vector<16x32xf32>, vector<8x32xf32> -> vector<8x32xf32>
    %cst_308 = arith.constant 7.500000e-01 : f32
    %485 = vector.broadcast %cst_308 : f32 to vector<8x32xf32>
    %486 = arith.mulf %485, %449 : vector<8x32xf32>
    %cst_309 = arith.constant 2.500000e-01 : f32
    %487 = vector.broadcast %cst_309 : f32 to vector<8x32xf32>
    %488 = arith.mulf %487, %414 : vector<8x32xf32>
    %489 = arith.addf %486, %488 : vector<8x32xf32>
    %cst_310 = arith.constant 0.000000e+00 : f32
    %490 = vector.broadcast %cst_310 : f32 to vector<8x32xf32>
    %491 = arith.maximumf %489, %490 : vector<8x32xf32>
    %c2_i32_311 = arith.constant 2 : i32
    %492 = arith.muli %c2_i32_311, %c13_i32 : i32
    %c0_312 = arith.constant 0 : index
    %c0_313 = arith.constant 0 : index
    %493 = arith.index_cast %492 : i32 to index
    %c0_314 = arith.constant 0 : index
    %494 = vector.load %arg6[%c0_312, %c0_313, %493, %c0_314] : memref<1x8x32x32xf32, #tpu.memory_space<vmem>>, vector<1x8x1x32xf32>
    %495 = vector.shape_cast %494 : vector<1x8x1x32xf32> to vector<8x32xf32>
    %496 = vector.shape_cast %491 : vector<8x32xf32> to vector<1x8x1x32xf32>
    tpu.vector_store %arg6[%c0_312, %c0_313, %493, %c0_314], %496 {strides = array<i32>} : memref<1x8x32x32xf32, #tpu.memory_space<vmem>>, vector<1x8x1x32xf32>,
    %cst_315 = arith.constant 7.500000e-01 : f32
    %497 = vector.broadcast %cst_315 : f32 to vector<8x32xf32>
    %498 = arith.mulf %497, %449 : vector<8x32xf32>
    %cst_316 = arith.constant 2.500000e-01 : f32
    %499 = vector.broadcast %cst_316 : f32 to vector<8x32xf32>
    %500 = arith.mulf %499, %484 : vector<8x32xf32>
    %501 = arith.addf %498, %500 : vector<8x32xf32>
    %cst_317 = arith.constant 0.000000e+00 : f32
    %502 = vector.broadcast %cst_317 : f32 to vector<8x32xf32>
    %503 = arith.maximumf %501, %502 : vector<8x32xf32>
    %c2_i32_318 = arith.constant 2 : i32
    %504 = arith.muli %c2_i32_318, %c13_i32 : i32
    %c1_i32_319 = arith.constant 1 : i32
    %505 = arith.addi %504, %c1_i32_319 : i32
    %c0_320 = arith.constant 0 : index
    %c0_321 = arith.constant 0 : index
    %506 = arith.index_cast %505 : i32 to index
    %c0_322 = arith.constant 0 : index
    %507 = vector.load %arg6[%c0_320, %c0_321, %506, %c0_322] : memref<1x8x32x32xf32, #tpu.memory_space<vmem>>, vector<1x8x1x32xf32>
    %508 = vector.shape_cast %507 : vector<1x8x1x32xf32> to vector<8x32xf32>
    %509 = vector.shape_cast %503 : vector<8x32xf32> to vector<1x8x1x32xf32>
    tpu.vector_store %arg6[%c0_320, %c0_321, %506, %c0_322], %509 {strides = array<i32>} : memref<1x8x32x32xf32, #tpu.memory_space<vmem>>, vector<1x8x1x32xf32>,
    %c14_i32 = arith.constant 14 : i32
    %510 = arith.addi %0, %c14_i32 : i32
    %c1_i32_323 = arith.constant 1 : i32
    %511 = arith.addi %510, %c1_i32_323 : i32
    %c15_i32_324 = arith.constant 15 : i32
    %512 = arith.minsi %511, %c15_i32_324 : i32
    %c0_325 = arith.constant 0 : index
    %c0_326 = arith.constant 0 : index
    %513 = arith.index_cast %512 : i32 to index
    %c0_327 = arith.constant 0 : index
    %514 = vector.load %arg2[%c0_325, %c0_326, %513, %c0_327] : memref<1x4x16x16xf32, #tpu.memory_space<vmem>>, vector<1x4x1x16xf32>
    %515 = vector.shape_cast %514 : vector<1x4x1x16xf32> to vector<4x16xf32>
    %cst_328 = arith.constant dense<0.000000e+00> : vector<8x16xf32>
    %516 = tpu.matmul %1, %515, %cst_328 {dimension_numbers = #tpu.dot_dimension_numbers<[1], [0], [0], [1], [0, 0, 1, 1], [], []>} : vector<8x4xf32>, vector<4x16xf32>, vector<8x16xf32> -> vector<8x16xf32>
    %517 = vector.broadcast %2 : vector<8x1xf32> to vector<8x16xf32>
    %518 = arith.addf %516, %517 : vector<8x16xf32>
    %cst_329 = arith.constant dense<0.000000e+00> : vector<8x32xf32>
    %519 = tpu.matmul %518, %3, %cst_329 {dimension_numbers = #tpu.dot_dimension_numbers<[1], [0], [0], [1], [0, 0, 1, 1], [], []>} : vector<8x16xf32>, vector<16x32xf32>, vector<8x32xf32> -> vector<8x32xf32>
    %cst_330 = arith.constant 7.500000e-01 : f32
    %520 = vector.broadcast %cst_330 : f32 to vector<8x32xf32>
    %521 = arith.mulf %520, %484 : vector<8x32xf32>
    %cst_331 = arith.constant 2.500000e-01 : f32
    %522 = vector.broadcast %cst_331 : f32 to vector<8x32xf32>
    %523 = arith.mulf %522, %449 : vector<8x32xf32>
    %524 = arith.addf %521, %523 : vector<8x32xf32>
    %cst_332 = arith.constant 0.000000e+00 : f32
    %525 = vector.broadcast %cst_332 : f32 to vector<8x32xf32>
    %526 = arith.maximumf %524, %525 : vector<8x32xf32>
    %c2_i32_333 = arith.constant 2 : i32
    %527 = arith.muli %c2_i32_333, %c14_i32 : i32
    %c0_334 = arith.constant 0 : index
    %c0_335 = arith.constant 0 : index
    %528 = arith.index_cast %527 : i32 to index
    %c0_336 = arith.constant 0 : index
    %529 = vector.load %arg6[%c0_334, %c0_335, %528, %c0_336] : memref<1x8x32x32xf32, #tpu.memory_space<vmem>>, vector<1x8x1x32xf32>
    %530 = vector.shape_cast %529 : vector<1x8x1x32xf32> to vector<8x32xf32>
    %531 = vector.shape_cast %526 : vector<8x32xf32> to vector<1x8x1x32xf32>
    tpu.vector_store %arg6[%c0_334, %c0_335, %528, %c0_336], %531 {strides = array<i32>} : memref<1x8x32x32xf32, #tpu.memory_space<vmem>>, vector<1x8x1x32xf32>,
    %cst_337 = arith.constant 7.500000e-01 : f32
    %532 = vector.broadcast %cst_337 : f32 to vector<8x32xf32>
    %533 = arith.mulf %532, %484 : vector<8x32xf32>
    %cst_338 = arith.constant 2.500000e-01 : f32
    %534 = vector.broadcast %cst_338 : f32 to vector<8x32xf32>
    %535 = arith.mulf %534, %519 : vector<8x32xf32>
    %536 = arith.addf %533, %535 : vector<8x32xf32>
    %cst_339 = arith.constant 0.000000e+00 : f32
    %537 = vector.broadcast %cst_339 : f32 to vector<8x32xf32>
    %538 = arith.maximumf %536, %537 : vector<8x32xf32>
    %c2_i32_340 = arith.constant 2 : i32
    %539 = arith.muli %c2_i32_340, %c14_i32 : i32
    %c1_i32_341 = arith.constant 1 : i32
    %540 = arith.addi %539, %c1_i32_341 : i32
    %c0_342 = arith.constant 0 : index
    %c0_343 = arith.constant 0 : index
    %541 = arith.index_cast %540 : i32 to index
    %c0_344 = arith.constant 0 : index
    %542 = vector.load %arg6[%c0_342, %c0_343, %541, %c0_344] : memref<1x8x32x32xf32, #tpu.memory_space<vmem>>, vector<1x8x1x32xf32>
    %543 = vector.shape_cast %542 : vector<1x8x1x32xf32> to vector<8x32xf32>
    %544 = vector.shape_cast %538 : vector<8x32xf32> to vector<1x8x1x32xf32>
    tpu.vector_store %arg6[%c0_342, %c0_343, %541, %c0_344], %544 {strides = array<i32>} : memref<1x8x32x32xf32, #tpu.memory_space<vmem>>, vector<1x8x1x32xf32>,
    %c15_i32_345 = arith.constant 15 : i32
    %545 = arith.addi %0, %c15_i32_345 : i32
    %c1_i32_346 = arith.constant 1 : i32
    %546 = arith.addi %545, %c1_i32_346 : i32
    %c15_i32_347 = arith.constant 15 : i32
    %547 = arith.minsi %546, %c15_i32_347 : i32
    %c0_348 = arith.constant 0 : index
    %c0_349 = arith.constant 0 : index
    %548 = arith.index_cast %547 : i32 to index
    %c0_350 = arith.constant 0 : index
    %549 = vector.load %arg2[%c0_348, %c0_349, %548, %c0_350] : memref<1x4x16x16xf32, #tpu.memory_space<vmem>>, vector<1x4x1x16xf32>
    %550 = vector.shape_cast %549 : vector<1x4x1x16xf32> to vector<4x16xf32>
    %cst_351 = arith.constant dense<0.000000e+00> : vector<8x16xf32>
    %551 = tpu.matmul %1, %550, %cst_351 {dimension_numbers = #tpu.dot_dimension_numbers<[1], [0], [0], [1], [0, 0, 1, 1], [], []>} : vector<8x4xf32>, vector<4x16xf32>, vector<8x16xf32> -> vector<8x16xf32>
    %552 = vector.broadcast %2 : vector<8x1xf32> to vector<8x16xf32>
    %553 = arith.addf %551, %552 : vector<8x16xf32>
    %cst_352 = arith.constant dense<0.000000e+00> : vector<8x32xf32>
    %554 = tpu.matmul %553, %3, %cst_352 {dimension_numbers = #tpu.dot_dimension_numbers<[1], [0], [0], [1], [0, 0, 1, 1], [], []>} : vector<8x16xf32>, vector<16x32xf32>, vector<8x32xf32> -> vector<8x32xf32>
    %cst_353 = arith.constant 7.500000e-01 : f32
    %555 = vector.broadcast %cst_353 : f32 to vector<8x32xf32>
    %556 = arith.mulf %555, %519 : vector<8x32xf32>
    %cst_354 = arith.constant 2.500000e-01 : f32
    %557 = vector.broadcast %cst_354 : f32 to vector<8x32xf32>
    %558 = arith.mulf %557, %484 : vector<8x32xf32>
    %559 = arith.addf %556, %558 : vector<8x32xf32>
    %cst_355 = arith.constant 0.000000e+00 : f32
    %560 = vector.broadcast %cst_355 : f32 to vector<8x32xf32>
    %561 = arith.maximumf %559, %560 : vector<8x32xf32>
    %c2_i32_356 = arith.constant 2 : i32
    %562 = arith.muli %c2_i32_356, %c15_i32_345 : i32
    %c0_357 = arith.constant 0 : index
    %c0_358 = arith.constant 0 : index
    %563 = arith.index_cast %562 : i32 to index
    %c0_359 = arith.constant 0 : index
    %564 = vector.load %arg6[%c0_357, %c0_358, %563, %c0_359] : memref<1x8x32x32xf32, #tpu.memory_space<vmem>>, vector<1x8x1x32xf32>
    %565 = vector.shape_cast %564 : vector<1x8x1x32xf32> to vector<8x32xf32>
    %566 = vector.shape_cast %561 : vector<8x32xf32> to vector<1x8x1x32xf32>
    tpu.vector_store %arg6[%c0_357, %c0_358, %563, %c0_359], %566 {strides = array<i32>} : memref<1x8x32x32xf32, #tpu.memory_space<vmem>>, vector<1x8x1x32xf32>,
    %cst_360 = arith.constant 7.500000e-01 : f32
    %567 = vector.broadcast %cst_360 : f32 to vector<8x32xf32>
    %568 = arith.mulf %567, %519 : vector<8x32xf32>
    %cst_361 = arith.constant 2.500000e-01 : f32
    %569 = vector.broadcast %cst_361 : f32 to vector<8x32xf32>
    %570 = arith.mulf %569, %554 : vector<8x32xf32>
    %571 = arith.addf %568, %570 : vector<8x32xf32>
    %cst_362 = arith.constant 0.000000e+00 : f32
    %572 = vector.broadcast %cst_362 : f32 to vector<8x32xf32>
    %573 = arith.maximumf %571, %572 : vector<8x32xf32>
    %c2_i32_363 = arith.constant 2 : i32
    %574 = arith.muli %c2_i32_363, %c15_i32_345 : i32
    %c1_i32_364 = arith.constant 1 : i32
    %575 = arith.addi %574, %c1_i32_364 : i32
    %c0_365 = arith.constant 0 : index
    %c0_366 = arith.constant 0 : index
    %576 = arith.index_cast %575 : i32 to index
    %c0_367 = arith.constant 0 : index
    %577 = vector.load %arg6[%c0_365, %c0_366, %576, %c0_367] : memref<1x8x32x32xf32, #tpu.memory_space<vmem>>, vector<1x8x1x32xf32>
    %578 = vector.shape_cast %577 : vector<1x8x1x32xf32> to vector<8x32xf32>
    %579 = vector.shape_cast %573 : vector<8x32xf32> to vector<1x8x1x32xf32>
    tpu.vector_store %arg6[%c0_365, %c0_366, %576, %c0_367], %579 {strides = array<i32>} : memref<1x8x32x32xf32, #tpu.memory_space<vmem>>, vector<1x8x1x32xf32>,
    %c16_i32_368 = arith.constant 16 : i32
    return
  }
  func.func @transform_0(%arg0: i32, %arg1: i32) -> (i32, i32, i32, i32) {
    %c0_i32 = arith.constant 0 : i32
    %c0_i32_0 = arith.constant 0 : i32
    %c0_i32_1 = arith.constant 0 : i32
    %c0_i32_2 = arith.constant 0 : i32
    return %arg0, %c0_i32, %c0_i32_0, %c0_i32_1 : i32, i32, i32, i32
  }
  func.func @transform_1(%arg0: i32, %arg1: i32) -> (i32, i32) {
    %c0_i32 = arith.constant 0 : i32
    %c0_i32_0 = arith.constant 0 : i32
    %c0_i32_1 = arith.constant 0 : i32
    return %c0_i32, %c0_i32_0 : i32, i32
  }
  func.func @transform_2(%arg0: i32, %arg1: i32) -> (i32, i32) {
    %c0_i32 = arith.constant 0 : i32
    %c0_i32_0 = arith.constant 0 : i32
    %c0_i32_1 = arith.constant 0 : i32
    return %c0_i32, %c0_i32_0 : i32, i32
  }
  func.func @transform_3(%arg0: i32, %arg1: i32) -> (i32, i32) {
    %c0_i32 = arith.constant 0 : i32
    %c0_i32_0 = arith.constant 0 : i32
    %c0_i32_1 = arith.constant 0 : i32
    return %c0_i32, %c0_i32_0 : i32, i32
  }
  func.func @transform_4(%arg0: i32, %arg1: i32) -> (i32, i32, i32, i32) {
    %c0_i32 = arith.constant 0 : i32
    %c0_i32_0 = arith.constant 0 : i32
    %c0_i32_1 = arith.constant 0 : i32
    return %arg0, %c0_i32, %arg1, %c0_i32_0 : i32, i32, i32, i32
  }
}

</mosaic_0001>

<llo_original>
// kernel: ico_interp_conv_forward.1
$region0: #{ico_interp_conv_forward.1}
  #allocation0 [shape = 'u32[]', space=smem, size = 0x4, offset = 0x4, fixed_abs, tag = 'smem constant byte address 0x4 - core index']
  #allocation1 [shape = 'u32[144,128]{1,0:T(1,128)}', space=vmem, size = 0x12000, scoped, tag = 'internal scratch']
  %s0 = inlined_call_operand.vmem [shape: f32[2,4,16,16], index: 0, kind: input, shape index: {}]
  %s1 = inlined_call_operand.vmem [shape: f32[8,4], index: 1, kind: input, shape index: {}]
  %s2 = inlined_call_operand.vmem [shape: f32[8,1], index: 2, kind: input, shape index: {}]
  %s3 = inlined_call_operand.vmem [shape: f32[16,32], index: 3, kind: input, shape index: {}]
  %s4 = inlined_call_operand.hbm [shape: f32[2,8,32,32], index: 4, kind: output, shape index: {}]
  %s5 = sld [smem:[#allocation0]]
  $region49: #{ico_interp_conv_forward.1} parent=0
    _
  %s7 = ssub.s32 1, %s5
  %s8 = scalar_select 0, %s7, %s5
  $region1: #{ico_interp_conv_forward.1} parent=0
    #allocation2 [shape = 'u8[262144]{0}', space=vmem, size = 0x40000, scoped, tag = 'output window, operand 0']
    #allocation3 [shape = 's32[2]{0}', space=sflag, size = 0x8, scoped, tag = 'scoped memory for ico_interp_conv_forward.1']
    %9 = vsyncpa [#allocation3], 0
    %s10 = scalar_lea.sflag [#allocation3], 1
    %11 = vsyncpa %s10, 0
    loop: start=0, step=1, limit=4
    $region2: #{ico_interp_conv_forward.1} parent=1 // loop_pre_header
      _
    $region3: #{ico_interp_conv_forward.1} parent=1 // loop_header
      %s13 = sphi 0, %s17
      %p14 = scmp.ge.s32.totalorder %s13, 4
      %s20 = sphi 0, %s32
      %s21 = sphi 0, %s28
      %s22 = sphi 0, %s20
      %s23 = sphi 0, %s21
      %s24 = sphi 0, %s22
      %s25 = sphi 0, %s23
      %s35 = sphi 0, %s37
      %s38 = sphi 0, %s35
      %s39 = sphi 0, %s38
      %s55 = sphi 0, %s39
      %s59 = sphi 0, %s59
      %s61 = sphi 0, %s59
      %s62 = sphi 0, %s61
      %s76 = sphi 0, %s62
      %s80 = sphi 0, %s80
      %s82 = sphi 0, %s80
      %s83 = sphi 0, %s82
      %s97 = sphi 0, %s83
      %s101 = sphi 0, %s101
      %s103 = sphi 0, %s101
      %s104 = sphi 0, %s103
      %s118 = sphi 0, %s104
      %s126 = sphi 0, %s128
      %s129 = sphi 0, %s126
      %s130 = sphi 0, %s129
      %s146 = sphi 0, %s130
    $region4: #{ico_interp_conv_forward.1} parent=1 // loop_header_branch
      %16 = sbr.rel (%p14) target = $region8
    $region5: #{ico_interp_conv_forward.1} parent=1 // loop_body
      %s18 = ssub.s32 %s13, 1
      %s19 = ssub.s32 %s13, 2
      %s26 = sadd.s32 1, %s21
      %p27 = scmp.ge.s32.totalorder %s26, 1
      %s28 = scalar_select %p27, 0, %s26
      %s29 = sadd.s32 1, %s20
      %s30 = scalar_select %p27, %s29, %s20
      %p31 = scmp.ge.s32.totalorder %s30, 2
      %s32 = scalar_select %p31, 0, %s30
      %s33 = ssub.s32 %s20, %s32
      %p34 = scmp.eq.s32.totalorder %s33, 0
      %s36 = sadd.s32 %s35, 1
      %s37 = scalar_select %p34, %s35, %s36
      %p40 = pneg %p34
      %p41 = scmp.eq.s32.totalorder %s13, 1
      %p42 = por %p40, %p41
      %p43 = scmp.ne.s32.totalorder %s35, %s38
      %p44 = scmp.eq.s32.totalorder %s13, 0
      %p45 = por %p43, %p44
      %p46 = scmp.ne.s32.totalorder %s35, %s38
      %p47 = scmp.eq.s32.totalorder %s18, 1
      %p48 = por %p46, %p47
      %p49 = scmp.ne.s32.totalorder %s38, %s39
      %p50 = scmp.eq.s32.totalorder %s18, 0
      %p51 = por %p49, %p50
      %p52 = scmp.ne.s32.totalorder %s38, %s39
      %p53 = scmp.eq.s32.totalorder %s19, 1
      %p54 = por %p52, %p53
      %p56 = scmp.ne.s32.totalorder %s39, %s55
      %p57 = scmp.eq.s32.totalorder %s19, 0
      %p58 = por %p56, %p57
      %s60 = sadd.s32 %s59, 1
      %p63 = scmp.eq.s32.totalorder %s13, 1
      %p64 = scmp.ne.s32.totalorder %s59, %s61
      %p65 = scmp.eq.s32.totalorder %s13, 0
      %p66 = por %p64, %p65
      %p67 = scmp.ne.s32.totalorder %s59, %s61
      %p68 = scmp.eq.s32.totalorder %s18, 1
      %p69 = por %p67, %p68
      %p70 = scmp.ne.s32.totalorder %s61, %s62
      %p71 = scmp.eq.s32.totalorder %s18, 0
      %p72 = por %p70, %p71
      %p73 = scmp.ne.s32.totalorder %s61, %s62
      %p74 = scmp.eq.s32.totalorder %s19, 1
      %p75 = por %p73, %p74
      %p77 = scmp.ne.s32.totalorder %s62, %s76
      %p78 = scmp.eq.s32.totalorder %s19, 0
      %p79 = por %p77, %p78
      %s81 = sadd.s32 %s80, 1
      %p84 = scmp.eq.s32.totalorder %s13, 1
      %p85 = scmp.ne.s32.totalorder %s80, %s82
      %p86 = scmp.eq.s32.totalorder %s13, 0
      %p87 = por %p85, %p86
      %p88 = scmp.ne.s32.totalorder %s80, %s82
      %p89 = scmp.eq.s32.totalorder %s18, 1
      %p90 = por %p88, %p89
      %p91 = scmp.ne.s32.totalorder %s82, %s83
      %p92 = scmp.eq.s32.totalorder %s18, 0
      %p93 = por %p91, %p92
      %p94 = scmp.ne.s32.totalorder %s82, %s83
      %p95 = scmp.eq.s32.totalorder %s19, 1
      %p96 = por %p94, %p95
      %p98 = scmp.ne.s32.totalorder %s83, %s97
      %p99 = scmp.eq.s32.totalorder %s19, 0
      %p100 = por %p98, %p99
      %s102 = sadd.s32 %s101, 1
      %p105 = scmp.eq.s32.totalorder %s13, 1
      %p106 = scmp.ne.s32.totalorder %s101, %s103
      %p107 = scmp.eq.s32.totalorder %s13, 0
      %p108 = por %p106, %p107
      %p109 = scmp.ne.s32.totalorder %s101, %s103
      %p110 = scmp.eq.s32.totalorder %s18, 1
      %p111 = por %p109, %p110
      %p112 = scmp.ne.s32.totalorder %s103, %s104
      %p113 = scmp.eq.s32.totalorder %s18, 0
      %p114 = por %p112, %p113
      %p115 = scmp.ne.s32.totalorder %s103, %s104
      %p116 = scmp.eq.s32.totalorder %s19, 1
      %p117 = por %p115, %p116
      %p119 = scmp.ne.s32.totalorder %s104, %s118
      %p120 = scmp.eq.s32.totalorder %s19, 0
      %p121 = por %p119, %p120
      %s122 = ssub.s32 %s20, %s32
      %s123 = ssub.s32 %s21, %s28
      %s124 = sor.u32 %s122, %s123
      %p125 = scmp.eq.s32.totalorder %s124, 0
      %s127 = sadd.s32 %s126, 1
      %s128 = scalar_select %p125, %s126, %s127
      %p131 = pneg %p125
      %p132 = scmp.eq.s32.totalorder %s13, 1
      %p133 = por %p131, %p132
      %p134 = scmp.ne.s32.totalorder %s126, %s129
      %p135 = scmp.eq.s32.totalorder %s13, 0
      %p136 = por %p134, %p135
      %p137 = scmp.ne.s32.totalorder %s126, %s129
      %p138 = scmp.eq.s32.totalorder %s18, 1
      %p139 = por %p137, %p138
      %p140 = scmp.ne.s32.totalorder %s129, %s130
      %p141 = scmp.eq.s32.totalorder %s18, 0
      %p142 = por %p140, %p141
      %p143 = scmp.ne.s32.totalorder %s129, %s130
      %p144 = scmp.eq.s32.totalorder %s19, 1
      %p145 = por %p143, %p144
      %p147 = scmp.ne.s32.totalorder %s130, %s146
      %p148 = scmp.eq.s32.totalorder %s19, 0
      %p149 = por %p147, %p148
      %p150 = scmp.le.s32.totalorder 1, %s13
      %p151 = scmp.lt.s32.totalorder %s13, 3
      %p152 = pnand %p150, %p151
      %p153 = pneg %p152
      // Predicated region
      $region9: #{ico_interp_conv_forward.1} parent=5 // pred_check
        _
      $region10: #{ico_interp_conv_forward.1} parent=5 // pred_check_branch
        %155 = sbr.rel (%p152) target = $region12
      $region11: #{ico_interp_conv_forward.1} parent=5 // pred_region
        %s156 = ssub.s32 %s13, 1
        // Predicated region
        $region13: #{ico_interp_conv_forward.1} parent=11 // pred_check
          %p157 = pneg %p72
        $region14: #{ico_interp_conv_forward.1} parent=11 // pred_check_branch
          %159 = sbr.rel (%p157) target = $region16
        $region15: #{ico_interp_conv_forward.1} parent=11 // pred_region
          _
        $region16: #{ico_interp_conv_forward.1} parent=11 // pred_fallthru
          _
        // Predicated region
        $region17: #{ico_interp_conv_forward.1} parent=11 // pred_check
          %p160 = pneg %p93
        $region18: #{ico_interp_conv_forward.1} parent=11 // pred_check_branch
          %162 = sbr.rel (%p160) target = $region20
        $region19: #{ico_interp_conv_forward.1} parent=11 // pred_region
          _
        $region20: #{ico_interp_conv_forward.1} parent=11 // pred_fallthru
          _
        // Predicated region
        $region21: #{ico_interp_conv_forward.1} parent=11 // pred_check
          %p163 = pneg %p114
        $region22: #{ico_interp_conv_forward.1} parent=11 // pred_check_branch
          %165 = sbr.rel (%p163) target = $region24
        $region23: #{ico_interp_conv_forward.1} parent=11 // pred_region
          _
        $region24: #{ico_interp_conv_forward.1} parent=11 // pred_fallthru
          _
      $region12: #{ico_interp_conv_forward.1} parent=5 // pred_fallthru
        _
      %p166 = scmp.lt.s32.totalorder %s13, 2
      // Predicated region
      $region25: #{ico_interp_conv_forward.1} parent=5 // pred_check
        %p167 = pneg %p166
      $region26: #{ico_interp_conv_forward.1} parent=5 // pred_check_branch
        %169 = sbr.rel (%p167) target = $region28
      $region27: #{ico_interp_conv_forward.1} parent=5 // pred_region
        // Predicated region
        $region29: #{ico_interp_conv_forward.1} parent=27 // pred_check
          %p170 = pneg %p45
        $region30: #{ico_interp_conv_forward.1} parent=27 // pred_check_branch
          %172 = sbr.rel (%p170) target = $region32
        $region31: #{ico_interp_conv_forward.1} parent=27 // pred_region
          %p173 = scmp.lt.s32.totalorder %s20, 1
          %s174 = scalar_select %p173, %s20, 1
          %s175 = smul.addr %s174, 8
          %s176 = smul.addr %s175, 8
          %s177 = scalar_lea.vmem %s0, %s176
        $region32: #{ico_interp_conv_forward.1} parent=27 // pred_fallthru
          _
      $region28: #{ico_interp_conv_forward.1} parent=5 // pred_fallthru
        _
      %p178 = scmp.le.s32.totalorder 1, %s13
      %p179 = scmp.lt.s32.totalorder %s13, 3
      %p180 = pnand %p178, %p179
      %p181 = pneg %p180
      // Predicated region
      $region33: #{ico_interp_conv_forward.1} parent=5 // pred_check
        _
      $region34: #{ico_interp_conv_forward.1} parent=5 // pred_check_branch
        %183 = sbr.rel (%p180) target = $region36
      $region35: #{ico_interp_conv_forward.1} parent=5 // pred_region
        %s184 = ssub.s32 %s13, 1
        %p185 = scmp.lt.s32.totalorder %s22, 1
        %s186 = scalar_select %p185, %s22, 1
        %s187 = smul.addr %s186, 8
        %s188 = smul.addr %s187, 8
        %s189 = scalar_lea.vmem %s0, %s188
        %p190 = pneg %p51
        %p191 = pneg %p48
        %p192 = pneg %p72
        %p193 = pneg %p69
        %p194 = pneg %p93
        %p195 = pneg %p90
        %p196 = pneg %p114
        %p197 = pneg %p111
        %p198 = pneg %p142
        %p199 = pneg %p139
        %s200 = sand.u32 %s129, 1
        %s201 = scalar_lea.sflag [#allocation3], %s200
        %s202 = sand.u32 %s129, 1
        %s203 = smul.addr %s202, 256
        %s204 = scalar_lea.vmem [#allocation2], %s203
        %p205 = scmp.lt.s32.totalorder %s22, 1
        %s206 = scalar_select %p205, %s22, 1
        %s207 = smul.addr %s206, 8
        %s208 = smul.addr %s207, 8
        %s209 = scalar_lea.vmem %s0, %s208
        %s210 = smul.u32 4, %s23
        %s211 = smul.u32 %s23, 16
        %v212 = vld [vmem:[%s1] sm:$0xff]
        %v213 = vld [vmem:[%s2] sm:$0xff]
        %v214 = vld [vmem:[%s3] sm:$0xff]
        %v215 = vld [vmem:[%s3 + $0x8] sm:$0xff]
        %s216 = ssub.s32 %s211, 1
        %p217 = scmp.gt.s32.totalorder %s216, 0
        %s218 = scalar_select %p217, %s216, 0
        %s219 = scalar_lea.vmem %s209, %s218
        %v220 = vld [vmem:[%s219] sm:$0x1]
        %v221 = vld [vmem:[%s219 + $0x10] sm:$0x1]
        %v222 = vld [vmem:[%s219 + $0x20] sm:$0x1]
        %v223 = vld [vmem:[%s219 + $0x30] sm:$0x1]
        %225 = vset.pattern.permute.xlu0 0
        %226 = vperm.xlu0 %225, %v213
        %v227 = vpop.permute.xlu0 %226
        %v233 = vrot.slane %v221, 7
        %vm234 = vcmask 1041409
        %v235 = vsel %vm234, %v233, %v220
        %v236 = vrot.slane %v222, 6
        %vm237 = vcmask 1042434
        %v238 = vsel %vm237, %v236, %v235
        %v239 = vrot.slane %v223, 5
        %vm240 = vcmask 1043459
        %v241 = vsel %vm240, %v239, %v238
        %vm242 = vcmask 31744
        %v244 = vsel %vm242, %v212, 0
        %vm246 = vcmask 1043456
        %v247 = vsel %vm246, %v241, 0
        %249 = vmatprep.subr.mxu0 0.0
        %250 = vmatpush1.msra.mxu0 %v247
        %251 = vmatprep.subr.mxu0 0.0
        %252 = vmatpush1.msra.mxu0 0.0
        %253 = vmatprep.subr.mxu0 0.0
        %254 = vmatpush1.msra.mxu0 0.0
        %255 = vmatprep.subr.mxu0 0.0
        %256 = vmatpush1.msra.mxu0 0.0
        %257 = vmatprep.subr.mxu0 0.0
        %258 = vmatpush1.msra.mxu0 0.0
        %259 = vmatprep.subr.mxu0 0.0
        %260 = vmatpush1.msra.mxu0 0.0
        %261 = vmatprep.subr.mxu0 0.0
        %262 = vmatpush1.msra.mxu0 0.0
        %263 = vmatprep.subr.mxu0 0.0
        %264 = vmatpush1.msra.mxu0 0.0
        %265 = vmatprep.subr.mxu0 0.0
        %266 = vmatpush1.msra.mxu0 0.0
        %267 = vmatprep.subr.mxu0 0.0
        %268 = vmatpush1.msra.mxu0 0.0
        %269 = vmatprep.subr.mxu0 0.0
        %270 = vmatpush1.msra.mxu0 0.0
        %271 = vmatprep.subr.mxu0 0.0
        %272 = vmatpush1.msra.mxu0 0.0
        %273 = vmatprep.subr.mxu0 0.0
        %274 = vmatpush1.msra.mxu0 0.0
        %275 = vmatprep.subr.mxu0 0.0
        %276 = vmatpush1.msra.mxu0 0.0
        %277 = vmatprep.subr.mxu0 0.0
        %278 = vmatpush1.msra.mxu0 0.0
        %279 = vmatprep.subr.mxu0 0.0
        %280 = vmatpush1.msra.mxu0 0.0
        %281 = vmatprep.subr.mxu0 0.0
        %282 = vmatpush1.msra.mxu0 0.0
        %283 = vmatprep.subr.mxu0 0.0
        %284 = vmatpush1.msra.mxu0 0.0
        %285 = vmatprep.subr.mxu0 0.0
        %286 = vmatpush1.msra.mxu0 0.0
        %287 = vmatprep.subr.mxu0 0.0
        %288 = vmatpush1.msra.mxu0 0.0
        %289 = vmatprep.subr.mxu0 0.0
        %290 = vmatpush1.msra.mxu0 0.0
        %291 = vmatprep.subr.mxu0 0.0
        %292 = vmatpush1.msra.mxu0 0.0
        %293 = vmatprep.subr.mxu0 0.0
        %294 = vmatpush1.msra.mxu0 0.0
        %295 = vmatprep.subr.mxu0 0.0
        %296 = vmatpush1.msra.mxu0 0.0
        %297 = vmatprep.subr.mxu0 0.0
        %298 = vmatpush1.msra.mxu0 0.0
        %299 = vmatprep.subr.mxu0 0.0
        %300 = vmatpush1.msra.mxu0 0.0
        %301 = vmatprep.subr.mxu0 0.0
        %302 = vmatpush1.msra.mxu0 0.0
        %303 = vmatprep.subr.mxu0 0.0
        %304 = vmatpush1.msra.mxu0 0.0
        %305 = vmatprep.subr.mxu0 0.0
        %306 = vmatpush1.msra.mxu0 0.0
        %307 = vmatprep.subr.mxu0 0.0
        %308 = vmatpush1.msra.mxu0 0.0
        %309 = vmatprep.subr.mxu0 0.0
        %310 = vmatpush1.msra.mxu0 0.0
        %311 = vmatprep.subr.mxu0 0.0
        %312 = vmatpush1.msra.mxu0 0.0
        %313 = vmatprep.mubr.f32.mxu0 0.0
        %314 = vmatmul.mubr.f32.gmra.mrb[0].mxu0 %v244
        %v315 = vpop.f32.mrb[0].mxu0
        %v316 = vadd.f32 %v227, %v315
        %v317 = vpop.f32.mrb[0].mxu0
        %318 = vdwg.mxu0
        %vm319 = vcmask 130048
        %v321 = vsel %vm319, %v316, 0
        %323 = vmatprep.subr.mxu0 0.0
        %324 = vmatpush1.msra.mxu0 %v214
        %325 = vmatprep.subr.mxu0 0.0
        %326 = vmatpush1.msra.mxu0 %v215
        %327 = vmatprep.subr.mxu0 0.0
        %328 = vmatpush1.msra.mxu0 0.0
        %329 = vmatprep.subr.mxu0 0.0
        %330 = vmatpush1.msra.mxu0 0.0
        %331 = vmatprep.subr.mxu0 0.0
        %332 = vmatpush1.msra.mxu0 0.0
        %333 = vmatprep.subr.mxu0 0.0
        %334 = vmatpush1.msra.mxu0 0.0
        %335 = vmatprep.subr.mxu0 0.0
        %336 = vmatpush1.msra.mxu0 0.0
        %337 = vmatprep.subr.mxu0 0.0
        %338 = vmatpush1.msra.mxu0 0.0
        %339 = vmatprep.subr.mxu0 0.0
        %340 = vmatpush1.msra.mxu0 0.0
        %341 = vmatprep.subr.mxu0 0.0
        %342 = vmatpush1.msra.mxu0 0.0
        %343 = vmatprep.subr.mxu0 0.0
        %344 = vmatpush1.msra.mxu0 0.0
        %345 = vmatprep.subr.mxu0 0.0
        %346 = vmatpush1.msra.mxu0 0.0
        %347 = vmatprep.subr.mxu0 0.0
        %348 = vmatpush1.msra.mxu0 0.0
        %349 = vmatprep.subr.mxu0 0.0
        %350 = vmatpush1.msra.mxu0 0.0
        %351 = vmatprep.subr.mxu0 0.0
        %352 = vmatpush1.msra.mxu0 0.0
        %353 = vmatprep.subr.mxu0 0.0
        %354 = vmatpush1.msra.mxu0 0.0
        %355 = vmatprep.subr.mxu0 0.0
        %356 = vmatpush1.msra.mxu0 0.0
        %357 = vmatprep.subr.mxu0 0.0
        %358 = vmatpush1.msra.mxu0 0.0
        %359 = vmatprep.subr.mxu0 0.0
        %360 = vmatpush1.msra.mxu0 0.0
        %361 = vmatprep.subr.mxu0 0.0
        %362 = vmatpush1.msra.mxu0 0.0
        %363 = vmatprep.subr.mxu0 0.0
        %364 = vmatpush1.msra.mxu0 0.0
        %365 = vmatprep.subr.mxu0 0.0
        %366 = vmatpush1.msra.mxu0 0.0
        %367 = vmatprep.subr.mxu0 0.0
        %368 = vmatpush1.msra.mxu0 0.0
        %369 = vmatprep.subr.mxu0 0.0
        %370 = vmatpush1.msra.mxu0 0.0
        %371 = vmatprep.subr.mxu0 0.0
        %372 = vmatpush1.msra.mxu0 0.0
        %373 = vmatprep.subr.mxu0 0.0
        %374 = vmatpush1.msra.mxu0 0.0
        %375 = vmatprep.subr.mxu0 0.0
        %376 = vmatpush1.msra.mxu0 0.0
        %377 = vmatprep.subr.mxu0 0.0
        %378 = vmatpush1.msra.mxu0 0.0
        %379 = vmatprep.subr.mxu0 0.0
        %380 = vmatpush1.msra.mxu0 0.0
        %381 = vmatprep.subr.mxu0 0.0
        %382 = vmatpush1.msra.mxu0 0.0
        %383 = vmatprep.subr.mxu0 0.0
        %384 = vmatpush1.msra.mxu0 0.0
        %385 = vmatprep.subr.mxu0 0.0
        %386 = vmatpush1.msra.mxu0 0.0
        %387 = vmatprep.mubr.f32.mxu0 0.0
        %388 = vmatmul.mubr.f32.gmra.mrb[0].mxu0 %v321
        %v389 = vpop.f32.mrb[0].mxu0
        %v390 = vadd.f32 0.0, %v389
        %v391 = vpop.f32.mrb[0].mxu0
        %392 = vdwg.mxu0
        %s393 = scalar_lea.vmem %s209, %s211
        %v394 = vld [vmem:[%s393] sm:$0x1]
        %v395 = vld [vmem:[%s393 + $0x10] sm:$0x1]
        %v396 = vld [vmem:[%s393 + $0x20] sm:$0x1]
        %v397 = vld [vmem:[%s393 + $0x30] sm:$0x1]
        %v402 = vrot.slane %v395, 7
        %v403 = vsel %vm234, %v402, %v394
        %v404 = vrot.slane %v396, 6
        %v405 = vsel %vm237, %v404, %v403
        %v406 = vrot.slane %v397, 5
        %v407 = vsel %vm240, %v406, %v405
        %v408 = vsel %vm246, %v407, 0
        %410 = vmatprep.subr.mxu0 0.0
        %411 = vmatpush1.msra.mxu0 %v408
        %412 = vmatprep.subr.mxu0 0.0
        %413 = vmatpush1.msra.mxu0 0.0
        %414 = vmatprep.subr.mxu0 0.0
        %415 = vmatpush1.msra.mxu0 0.0
        %416 = vmatprep.subr.mxu0 0.0
        %417 = vmatpush1.msra.mxu0 0.0
        %418 = vmatprep.subr.mxu0 0.0
        %419 = vmatpush1.msra.mxu0 0.0
        %420 = vmatprep.subr.mxu0 0.0
        %421 = vmatpush1.msra.mxu0 0.0
        %422 = vmatprep.subr.mxu0 0.0
        %423 = vmatpush1.msra.mxu0 0.0
        %424 = vmatprep.subr.mxu0 0.0
        %425 = vmatpush1.msra.mxu0 0.0
        %426 = vmatprep.subr.mxu0 0.0
        %427 = vmatpush1.msra.mxu0 0.0
        %428 = vmatprep.subr.mxu0 0.0
        %429 = vmatpush1.msra.mxu0 0.0
        %430 = vmatprep.subr.mxu0 0.0
        %431 = vmatpush1.msra.mxu0 0.0
        %432 = vmatprep.subr.mxu0 0.0
        %433 = vmatpush1.msra.mxu0 0.0
        %434 = vmatprep.subr.mxu0 0.0
        %435 = vmatpush1.msra.mxu0 0.0
        %436 = vmatprep.subr.mxu0 0.0
        %437 = vmatpush1.msra.mxu0 0.0
        %438 = vmatprep.subr.mxu0 0.0
        %439 = vmatpush1.msra.mxu0 0.0
        %440 = vmatprep.subr.mxu0 0.0
        %441 = vmatpush1.msra.mxu0 0.0
        %442 = vmatprep.subr.mxu0 0.0
        %443 = vmatpush1.msra.mxu0 0.0
        %444 = vmatprep.subr.mxu0 0.0
        %445 = vmatpush1.msra.mxu0 0.0
        %446 = vmatprep.subr.mxu0 0.0
        %447 = vmatpush1.msra.mxu0 0.0
        %448 = vmatprep.subr.mxu0 0.0
        %449 = vmatpush1.msra.mxu0 0.0
        %450 = vmatprep.subr.mxu0 0.0
        %451 = vmatpush1.msra.mxu0 0.0
        %452 = vmatprep.subr.mxu0 0.0
        %453 = vmatpush1.msra.mxu0 0.0
        %454 = vmatprep.subr.mxu0 0.0
        %455 = vmatpush1.msra.mxu0 0.0
        %456 = vmatprep.subr.mxu0 0.0
        %457 = vmatpush1.msra.mxu0 0.0
        %458 = vmatprep.subr.mxu0 0.0
        %459 = vmatpush1.msra.mxu0 0.0
        %460 = vmatprep.subr.mxu0 0.0
        %461 = vmatpush1.msra.mxu0 0.0
        %462 = vmatprep.subr.mxu0 0.0
        %463 = vmatpush1.msra.mxu0 0.0
        %464 = vmatprep.subr.mxu0 0.0
        %465 = vmatpush1.msra.mxu0 0.0
        %466 = vmatprep.subr.mxu0 0.0
        %467 = vmatpush1.msra.mxu0 0.0
        %468 = vmatprep.subr.mxu0 0.0
        %469 = vmatpush1.msra.mxu0 0.0
        %470 = vmatprep.subr.mxu0 0.0
        %471 = vmatpush1.msra.mxu0 0.0
        %472 = vmatprep.subr.mxu0 0.0
        %473 = vmatpush1.msra.mxu0 0.0
        %474 = vmatprep.mubr.f32.mxu0 0.0
        %475 = vmatmul.mubr.f32.gmra.mrb[0].mxu0 %v244
        %v476 = vpop.f32.mrb[0].mxu0
        %v477 = vadd.f32 %v227, %v476
        %v478 = vpop.f32.mrb[0].mxu0
        %479 = vdwg.mxu0
        %v481 = vsel %vm319, %v477, 0
        %483 = vmatprep.subr.mxu0 0.0
        %484 = vmatpush1.msra.mxu0 %v214
        %485 = vmatprep.subr.mxu0 0.0
        %486 = vmatpush1.msra.mxu0 %v215
        %487 = vmatprep.subr.mxu0 0.0
        %488 = vmatpush1.msra.mxu0 0.0
        %489 = vmatprep.subr.mxu0 0.0
        %490 = vmatpush1.msra.mxu0 0.0
        %491 = vmatprep.subr.mxu0 0.0
        %492 = vmatpush1.msra.mxu0 0.0
        %493 = vmatprep.subr.mxu0 0.0
        %494 = vmatpush1.msra.mxu0 0.0
        %495 = vmatprep.subr.mxu0 0.0
        %496 = vmatpush1.msra.mxu0 0.0
        %497 = vmatprep.subr.mxu0 0.0
        %498 = vmatpush1.msra.mxu0 0.0
        %499 = vmatprep.subr.mxu0 0.0
        %500 = vmatpush1.msra.mxu0 0.0
        %501 = vmatprep.subr.mxu0 0.0
        %502 = vmatpush1.msra.mxu0 0.0
        %503 = vmatprep.subr.mxu0 0.0
        %504 = vmatpush1.msra.mxu0 0.0
        %505 = vmatprep.subr.mxu0 0.0
        %506 = vmatpush1.msra.mxu0 0.0
        %507 = vmatprep.subr.mxu0 0.0
        %508 = vmatpush1.msra.mxu0 0.0
        %509 = vmatprep.subr.mxu0 0.0
        %510 = vmatpush1.msra.mxu0 0.0
        %511 = vmatprep.subr.mxu0 0.0
        %512 = vmatpush1.msra.mxu0 0.0
        %513 = vmatprep.subr.mxu0 0.0
        %514 = vmatpush1.msra.mxu0 0.0
        %515 = vmatprep.subr.mxu0 0.0
        %516 = vmatpush1.msra.mxu0 0.0
        %517 = vmatprep.subr.mxu0 0.0
        %518 = vmatpush1.msra.mxu0 0.0
        %519 = vmatprep.subr.mxu0 0.0
        %520 = vmatpush1.msra.mxu0 0.0
        %521 = vmatprep.subr.mxu0 0.0
        %522 = vmatpush1.msra.mxu0 0.0
        %523 = vmatprep.subr.mxu0 0.0
        %524 = vmatpush1.msra.mxu0 0.0
        %525 = vmatprep.subr.mxu0 0.0
        %526 = vmatpush1.msra.mxu0 0.0
        %527 = vmatprep.subr.mxu0 0.0
        %528 = vmatpush1.msra.mxu0 0.0
        %529 = vmatprep.subr.mxu0 0.0
        %530 = vmatpush1.msra.mxu0 0.0
        %531 = vmatprep.subr.mxu0 0.0
        %532 = vmatpush1.msra.mxu0 0.0
        %533 = vmatprep.subr.mxu0 0.0
        %534 = vmatpush1.msra.mxu0 0.0
        %535 = vmatprep.subr.mxu0 0.0
        %536 = vmatpush1.msra.mxu0 0.0
        %537 = vmatprep.subr.mxu0 0.0
        %538 = vmatpush1.msra.mxu0 0.0
        %539 = vmatprep.subr.mxu0 0.0
        %540 = vmatpush1.msra.mxu0 0.0
        %541 = vmatprep.subr.mxu0 0.0
        %542 = vmatpush1.msra.mxu0 0.0
        %543 = vmatprep.subr.mxu0 0.0
        %544 = vmatpush1.msra.mxu0 0.0
        %545 = vmatprep.subr.mxu0 0.0
        %546 = vmatpush1.msra.mxu0 0.0
        %547 = vmatprep.mubr.f32.mxu0 0.0
        %548 = vmatmul.mubr.f32.gmra.mrb[0].mxu0 %v481
        %v549 = vpop.f32.mrb[0].mxu0
        %v550 = vadd.f32 0.0, %v549
        %v551 = vpop.f32.mrb[0].mxu0
        %552 = vdwg.mxu0
        %s553 = sadd.s32 %s211, 1
        %p554 = scmp.lt.s32.totalorder %s553, 15
        %s555 = scalar_select %p554, %s553, 15
        %s556 = scalar_lea.vmem %s209, %s555
        %v557 = vld [vmem:[%s556] sm:$0x1]
        %v558 = vld [vmem:[%s556 + $0x10] sm:$0x1]
        %v559 = vld [vmem:[%s556 + $0x20] sm:$0x1]
        %v560 = vld [vmem:[%s556 + $0x30] sm:$0x1]
        %v565 = vrot.slane %v558, 7
        %v566 = vsel %vm234, %v565, %v557
        %v567 = vrot.slane %v559, 6
        %v568 = vsel %vm237, %v567, %v566
        %v569 = vrot.slane %v560, 5
        %v570 = vsel %vm240, %v569, %v568
        %v571 = vsel %vm246, %v570, 0
        %573 = vmatprep.subr.mxu0 0.0
        %574 = vmatpush1.msra.mxu0 %v571
        %575 = vmatprep.subr.mxu0 0.0
        %576 = vmatpush1.msra.mxu0 0.0
        %577 = vmatprep.subr.mxu0 0.0
        %578 = vmatpush1.msra.mxu0 0.0
        %579 = vmatprep.subr.mxu0 0.0
        %580 = vmatpush1.msra.mxu0 0.0
        %581 = vmatprep.subr.mxu0 0.0
        %582 = vmatpush1.msra.mxu0 0.0
        %583 = vmatprep.subr.mxu0 0.0
        %584 = vmatpush1.msra.mxu0 0.0
        %585 = vmatprep.subr.mxu0 0.0
        %586 = vmatpush1.msra.mxu0 0.0
        %587 = vmatprep.subr.mxu0 0.0
        %588 = vmatpush1.msra.mxu0 0.0
        %589 = vmatprep.subr.mxu0 0.0
        %590 = vmatpush1.msra.mxu0 0.0
        %591 = vmatprep.subr.mxu0 0.0
        %592 = vmatpush1.msra.mxu0 0.0
        %593 = vmatprep.subr.mxu0 0.0
        %594 = vmatpush1.msra.mxu0 0.0
        %595 = vmatprep.subr.mxu0 0.0
        %596 = vmatpush1.msra.mxu0 0.0
        %597 = vmatprep.subr.mxu0 0.0
        %598 = vmatpush1.msra.mxu0 0.0
        %599 = vmatprep.subr.mxu0 0.0
        %600 = vmatpush1.msra.mxu0 0.0
        %601 = vmatprep.subr.mxu0 0.0
        %602 = vmatpush1.msra.mxu0 0.0
        %603 = vmatprep.subr.mxu0 0.0
        %604 = vmatpush1.msra.mxu0 0.0
        %605 = vmatprep.subr.mxu0 0.0
        %606 = vmatpush1.msra.mxu0 0.0
        %607 = vmatprep.subr.mxu0 0.0
        %608 = vmatpush1.msra.mxu0 0.0
        %609 = vmatprep.subr.mxu0 0.0
        %610 = vmatpush1.msra.mxu0 0.0
        %611 = vmatprep.subr.mxu0 0.0
        %612 = vmatpush1.msra.mxu0 0.0
        %613 = vmatprep.subr.mxu0 0.0
        %614 = vmatpush1.msra.mxu0 0.0
        %615 = vmatprep.subr.mxu0 0.0
        %616 = vmatpush1.msra.mxu0 0.0
        %617 = vmatprep.subr.mxu0 0.0
        %618 = vmatpush1.msra.mxu0 0.0
        %619 = vmatprep.subr.mxu0 0.0
        %620 = vmatpush1.msra.mxu0 0.0
        %621 = vmatprep.subr.mxu0 0.0
        %622 = vmatpush1.msra.mxu0 0.0
        %623 = vmatprep.subr.mxu0 0.0
        %624 = vmatpush1.msra.mxu0 0.0
        %625 = vmatprep.subr.mxu0 0.0
        %626 = vmatpush1.msra.mxu0 0.0
        %627 = vmatprep.subr.mxu0 0.0
        %628 = vmatpush1.msra.mxu0 0.0
        %629 = vmatprep.subr.mxu0 0.0
        %630 = vmatpush1.msra.mxu0 0.0
        %631 = vmatprep.subr.mxu0 0.0
        %632 = vmatpush1.msra.mxu0 0.0
        %633 = vmatprep.subr.mxu0 0.0
        %634 = vmatpush1.msra.mxu0 0.0
        %635 = vmatprep.subr.mxu0 0.0
        %636 = vmatpush1.msra.mxu0 0.0
        %637 = vmatprep.mubr.f32.mxu0 0.0
        %638 = vmatmul.mubr.f32.gmra.mrb[0].mxu0 %v244
        %v639 = vpop.f32.mrb[0].mxu0
        %v640 = vadd.f32 %v227, %v639
        %v641 = vpop.f32.mrb[0].mxu0
        %642 = vdwg.mxu0
        %v644 = vsel %vm319, %v640, 0
        %646 = vmatprep.subr.mxu0 0.0
        %647 = vmatpush1.msra.mxu0 %v214
        %648 = vmatprep.subr.mxu0 0.0
        %649 = vmatpush1.msra.mxu0 %v215
        %650 = vmatprep.subr.mxu0 0.0
        %651 = vmatpush1.msra.mxu0 0.0
        %652 = vmatprep.subr.mxu0 0.0
        %653 = vmatpush1.msra.mxu0 0.0
        %654 = vmatprep.subr.mxu0 0.0
        %655 = vmatpush1.msra.mxu0 0.0
        %656 = vmatprep.subr.mxu0 0.0
        %657 = vmatpush1.msra.mxu0 0.0
        %658 = vmatprep.subr.mxu0 0.0
        %659 = vmatpush1.msra.mxu0 0.0
        %660 = vmatprep.subr.mxu0 0.0
        %661 = vmatpush1.msra.mxu0 0.0
        %662 = vmatprep.subr.mxu0 0.0
        %663 = vmatpush1.msra.mxu0 0.0
        %664 = vmatprep.subr.mxu0 0.0
        %665 = vmatpush1.msra.mxu0 0.0
        %666 = vmatprep.subr.mxu0 0.0
        %667 = vmatpush1.msra.mxu0 0.0
        %668 = vmatprep.subr.mxu0 0.0
        %669 = vmatpush1.msra.mxu0 0.0
        %670 = vmatprep.subr.mxu0 0.0
        %671 = vmatpush1.msra.mxu0 0.0
        %672 = vmatprep.subr.mxu0 0.0
        %673 = vmatpush1.msra.mxu0 0.0
        %674 = vmatprep.subr.mxu0 0.0
        %675 = vmatpush1.msra.mxu0 0.0
        %676 = vmatprep.subr.mxu0 0.0
        %677 = vmatpush1.msra.mxu0 0.0
        %678 = vmatprep.subr.mxu0 0.0
        %679 = vmatpush1.msra.mxu0 0.0
        %680 = vmatprep.subr.mxu0 0.0
        %681 = vmatpush1.msra.mxu0 0.0
        %682 = vmatprep.subr.mxu0 0.0
        %683 = vmatpush1.msra.mxu0 0.0
        %684 = vmatprep.subr.mxu0 0.0
        %685 = vmatpush1.msra.mxu0 0.0
        %686 = vmatprep.subr.mxu0 0.0
        %687 = vmatpush1.msra.mxu0 0.0
        %688 = vmatprep.subr.mxu0 0.0
        %689 = vmatpush1.msra.mxu0 0.0
        %690 = vmatprep.subr.mxu0 0.0
        %691 = vmatpush1.msra.mxu0 0.0
        %692 = vmatprep.subr.mxu0 0.0
        %693 = vmatpush1.msra.mxu0 0.0
        %694 = vmatprep.subr.mxu0 0.0
        %695 = vmatpush1.msra.mxu0 0.0
        %696 = vmatprep.subr.mxu0 0.0
        %697 = vmatpush1.msra.mxu0 0.0
        %698 = vmatprep.subr.mxu0 0.0
        %699 = vmatpush1.msra.mxu0 0.0
        %700 = vmatprep.subr.mxu0 0.0
        %701 = vmatpush1.msra.mxu0 0.0
        %702 = vmatprep.subr.mxu0 0.0
        %703 = vmatpush1.msra.mxu0 0.0
        %704 = vmatprep.subr.mxu0 0.0
        %705 = vmatpush1.msra.mxu0 0.0
        %706 = vmatprep.subr.mxu0 0.0
        %707 = vmatpush1.msra.mxu0 0.0
        %708 = vmatprep.subr.mxu0 0.0
        %709 = vmatpush1.msra.mxu0 0.0
        %710 = vmatprep.mubr.f32.mxu0 0.0
        %711 = vmatmul.mubr.f32.gmra.mrb[0].mxu0 %v644
        %v712 = vpop.f32.mrb[0].mxu0
        %v713 = vadd.f32 0.0, %v712
        %v714 = vpop.f32.mrb[0].mxu0
        %715 = vdwg.mxu0
        %v716 = vmul.f32 %v550, 0.75
        %v717 = vmul.f32 %v390, 0.25
        %v718 = vadd.f32 %v716, %v717
        %v719 = vmax.f32 %v718, 0.0
        %v721 = vcombine.high %v719, %v719
        %v723 = vunpack.c.l.s4 1966171168
        %v724 = vunpack.c.0.s8 %v723
        %v725 = vlaneseq
        %v726 = vshrl.u32 %v725, 7
        %v727 = vsub.s32 %v724, %v726
        %v728 = vrot.slane %v719, %v727
        %v730 = vunpack.c.l.s4 1966171168
        %v731 = vunpack.c.0.s8 %v730
        %v732 = vlaneseq
        %v733 = vshrl.u32 %v732, 7
        %v734 = vsub.s32 %v731, %v733
        %v735 = vrot.slane %v721, %v734
        %v736 = vcombine.high %v728, %v728
        %v737 = vcombine.high %v735, %v735
        %v739 = vunpack.c.l.s4 1966171168
        %v740 = vunpack.c.0.s8 %v739
        %v741 = vlaneseq
        %v742 = vshrl.u32 %v741, 7
        %v743 = vsub.s32 %v740, %v742
        %v744 = vrot.slane %v728, %v743
        %v746 = vunpack.c.l.s4 1966171168
        %v747 = vunpack.c.0.s8 %v746
        %v748 = vlaneseq
        %v749 = vshrl.u32 %v748, 7
        %v750 = vsub.s32 %v747, %v749
        %v751 = vrot.slane %v735, %v750
        %v753 = vunpack.c.l.s4 1966171168
        %v754 = vunpack.c.0.s8 %v753
        %v755 = vlaneseq
        %v756 = vshrl.u32 %v755, 7
        %v757 = vsub.s32 %v754, %v756
        %v758 = vrot.slane %v736, %v757
        %v760 = vunpack.c.l.s4 1966171168
        %v761 = vunpack.c.0.s8 %v760
        %v762 = vlaneseq
        %v763 = vshrl.u32 %v762, 7
        %v764 = vsub.s32 %v761, %v763
        %v765 = vrot.slane %v737, %v764
        %v766 = vcombine.high %v744, %v744
        %v767 = vcombine.high %v751, %v751
        %v768 = vcombine.high %v758, %v758
        %v769 = vcombine.high %v765, %v765
        %vm778 = vcmask 253952
        %779 = vst.msk [vmem:[%s204] sm:$0x1] %vm778, %v744
        %780 = vst.msk [vmem:[%s204 + $0x20] sm:$0x1] %vm778, %v758
        %781 = vst.msk [vmem:[%s204 + $0x40] sm:$0x1] %vm778, %v766
        %782 = vst.msk [vmem:[%s204 + $0x60] sm:$0x1] %vm778, %v768
        %783 = vst.msk [vmem:[%s204 + $0x80] sm:$0x1] %vm778, %v751
        %784 = vst.msk [vmem:[%s204 + $0xa0] sm:$0x1] %vm778, %v765
        %785 = vst.msk [vmem:[%s204 + $0xc0] sm:$0x1] %vm778, %v767
        %786 = vst.msk [vmem:[%s204 + $0xe0] sm:$0x1] %vm778, %v769
        %v787 = vmul.f32 %v713, 0.25
        %v788 = vadd.f32 %v716, %v787
        %v789 = vmax.f32 %v788, 0.0
        %v791 = vcombine.high %v789, %v789
        %v793 = vunpack.c.l.s4 1966171168
        %v794 = vunpack.c.0.s8 %v793
        %v795 = vlaneseq
        %v796 = vshrl.u32 %v795, 7
        %v797 = vsub.s32 %v794, %v796
        %v798 = vrot.slane %v789, %v797
        %v800 = vunpack.c.l.s4 1966171168
        %v801 = vunpack.c.0.s8 %v800
        %v802 = vlaneseq
        %v803 = vshrl.u32 %v802, 7
        %v804 = vsub.s32 %v801, %v803
        %v805 = vrot.slane %v791, %v804
        %v806 = vcombine.high %v798, %v798
        %v807 = vcombine.high %v805, %v805
        %v809 = vunpack.c.l.s4 1966171168
        %v810 = vunpack.c.0.s8 %v809
        %v811 = vlaneseq
        %v812 = vshrl.u32 %v811, 7
        %v813 = vsub.s32 %v810, %v812
        %v814 = vrot.slane %v798, %v813
        %v816 = vunpack.c.l.s4 1966171168
        %v817 = vunpack.c.0.s8 %v816
        %v818 = vlaneseq
        %v819 = vshrl.u32 %v818, 7
        %v820 = vsub.s32 %v817, %v819
        %v821 = vrot.slane %v805, %v820
        %v823 = vunpack.c.l.s4 1966171168
        %v824 = vunpack.c.0.s8 %v823
        %v825 = vlaneseq
        %v826 = vshrl.u32 %v825, 7
        %v827 = vsub.s32 %v824, %v826
        %v828 = vrot.slane %v806, %v827
        %v830 = vunpack.c.l.s4 1966171168
        %v831 = vunpack.c.0.s8 %v830
        %v832 = vlaneseq
        %v833 = vshrl.u32 %v832, 7
        %v834 = vsub.s32 %v831, %v833
        %v835 = vrot.slane %v807, %v834
        %v836 = vcombine.high %v814, %v814
        %v837 = vcombine.high %v821, %v821
        %v838 = vcombine.high %v828, %v828
        %v839 = vcombine.high %v835, %v835
        %848 = vst.msk [vmem:[%s204 + $0x1] sm:$0x1] %vm778, %v814
        %849 = vst.msk [vmem:[%s204 + $0x21] sm:$0x1] %vm778, %v828
        %850 = vst.msk [vmem:[%s204 + $0x41] sm:$0x1] %vm778, %v836
        %851 = vst.msk [vmem:[%s204 + $0x61] sm:$0x1] %vm778, %v838
        %852 = vst.msk [vmem:[%s204 + $0x81] sm:$0x1] %vm778, %v821
        %853 = vst.msk [vmem:[%s204 + $0xa1] sm:$0x1] %vm778, %v835
        %854 = vst.msk [vmem:[%s204 + $0xc1] sm:$0x1] %vm778, %v837
        %855 = vst.msk [vmem:[%s204 + $0xe1] sm:$0x1] %vm778, %v839
        %s856 = sadd.s32 %s211, 2
        %p857 = scmp.lt.s32.totalorder %s856, 15
        %s858 = scalar_select %p857, %s856, 15
        %s859 = scalar_lea.vmem %s209, %s858
        %v860 = vld [vmem:[%s859] sm:$0x1]
        %v861 = vld [vmem:[%s859 + $0x10] sm:$0x1]
        %v862 = vld [vmem:[%s859 + $0x20] sm:$0x1]
        %v863 = vld [vmem:[%s859 + $0x30] sm:$0x1]
        %v868 = vrot.slane %v861, 7
        %v869 = vsel %vm234, %v868, %v860
        %v870 = vrot.slane %v862, 6
        %v871 = vsel %vm237, %v870, %v869
        %v872 = vrot.slane %v863, 5
        %v873 = vsel %vm240, %v872, %v871
        %v874 = vsel %vm246, %v873, 0
        %876 = vmatprep.subr.mxu0 0.0
        %877 = vmatpush1.msra.mxu0 %v874
        %878 = vmatprep.subr.mxu0 0.0
        %879 = vmatpush1.msra.mxu0 0.0
        %880 = vmatprep.subr.mxu0 0.0
        %881 = vmatpush1.msra.mxu0 0.0
        %882 = vmatprep.subr.mxu0 0.0
        %883 = vmatpush1.msra.mxu0 0.0
        %884 = vmatprep.subr.mxu0 0.0
        %885 = vmatpush1.msra.mxu0 0.0
        %886 = vmatprep.subr.mxu0 0.0
        %887 = vmatpush1.msra.mxu0 0.0
        %888 = vmatprep.subr.mxu0 0.0
        %889 = vmatpush1.msra.mxu0 0.0
        %890 = vmatprep.subr.mxu0 0.0
        %891 = vmatpush1.msra.mxu0 0.0
        %892 = vmatprep.subr.mxu0 0.0
        %893 = vmatpush1.msra.mxu0 0.0
        %894 = vmatprep.subr.mxu0 0.0
        %895 = vmatpush1.msra.mxu0 0.0
        %896 = vmatprep.subr.mxu0 0.0
        %897 = vmatpush1.msra.mxu0 0.0
        %898 = vmatprep.subr.mxu0 0.0
        %899 = vmatpush1.msra.mxu0 0.0
        %900 = vmatprep.subr.mxu0 0.0
        %901 = vmatpush1.msra.mxu0 0.0
        %902 = vmatprep.subr.mxu0 0.0
        %903 = vmatpush1.msra.mxu0 0.0
        %904 = vmatprep.subr.mxu0 0.0
        %905 = vmatpush1.msra.mxu0 0.0
        %906 = vmatprep.subr.mxu0 0.0
        %907 = vmatpush1.msra.mxu0 0.0
        %908 = vmatprep.subr.mxu0 0.0
        %909 = vmatpush1.msra.mxu0 0.0
        %910 = vmatprep.subr.mxu0 0.0
        %911 = vmatpush1.msra.mxu0 0.0
        %912 = vmatprep.subr.mxu0 0.0
        %913 = vmatpush1.msra.mxu0 0.0
        %914 = vmatprep.subr.mxu0 0.0
        %915 = vmatpush1.msra.mxu0 0.0
        %916 = vmatprep.subr.mxu0 0.0
        %917 = vmatpush1.msra.mxu0 0.0
        %918 = vmatprep.subr.mxu0 0.0
        %919 = vmatpush1.msra.mxu0 0.0
        %920 = vmatprep.subr.mxu0 0.0
        %921 = vmatpush1.msra.mxu0 0.0
        %922 = vmatprep.subr.mxu0 0.0
        %923 = vmatpush1.msra.mxu0 0.0
        %924 = vmatprep.subr.mxu0 0.0
        %925 = vmatpush1.msra.mxu0 0.0
        %926 = vmatprep.subr.mxu0 0.0
        %927 = vmatpush1.msra.mxu0 0.0
        %928 = vmatprep.subr.mxu0 0.0
        %929 = vmatpush1.msra.mxu0 0.0
        %930 = vmatprep.subr.mxu0 0.0
        %931 = vmatpush1.msra.mxu0 0.0
        %932 = vmatprep.subr.mxu0 0.0
        %933 = vmatpush1.msra.mxu0 0.0
        %934 = vmatprep.subr.mxu0 0.0
        %935 = vmatpush1.msra.mxu0 0.0
        %936 = vmatprep.subr.mxu0 0.0
        %937 = vmatpush1.msra.mxu0 0.0
        %938 = vmatprep.subr.mxu0 0.0
        %939 = vmatpush1.msra.mxu0 0.0
        %940 = vmatprep.mubr.f32.mxu0 0.0
        %941 = vmatmul.mubr.f32.gmra.mrb[0].mxu0 %v244
        %v942 = vpop.f32.mrb[0].mxu0
        %v943 = vadd.f32 %v227, %v942
        %v944 = vpop.f32.mrb[0].mxu0
        %945 = vdwg.mxu0
        %v947 = vsel %vm319, %v943, 0
        %949 = vmatprep.subr.mxu0 0.0
        %950 = vmatpush1.msra.mxu0 %v214
        %951 = vmatprep.subr.mxu0 0.0
        %952 = vmatpush1.msra.mxu0 %v215
        %953 = vmatprep.subr.mxu0 0.0
        %954 = vmatpush1.msra.mxu0 0.0
        %955 = vmatprep.subr.mxu0 0.0
        %956 = vmatpush1.msra.mxu0 0.0
        %957 = vmatprep.subr.mxu0 0.0
        %958 = vmatpush1.msra.mxu0 0.0
        %959 = vmatprep.subr.mxu0 0.0
        %960 = vmatpush1.msra.mxu0 0.0
        %961 = vmatprep.subr.mxu0 0.0
        %962 = vmatpush1.msra.mxu0 0.0
        %963 = vmatprep.subr.mxu0 0.0
        %964 = vmatpush1.msra.mxu0 0.0
        %965 = vmatprep.subr.mxu0 0.0
        %966 = vmatpush1.msra.mxu0 0.0
        %967 = vmatprep.subr.mxu0 0.0
        %968 = vmatpush1.msra.mxu0 0.0
        %969 = vmatprep.subr.mxu0 0.0
        %970 = vmatpush1.msra.mxu0 0.0
        %971 = vmatprep.subr.mxu0 0.0
        %972 = vmatpush1.msra.mxu0 0.0
        %973 = vmatprep.subr.mxu0 0.0
        %974 = vmatpush1.msra.mxu0 0.0
        %975 = vmatprep.subr.mxu0 0.0
        %976 = vmatpush1.msra.mxu0 0.0
        %977 = vmatprep.subr.mxu0 0.0
        %978 = vmatpush1.msra.mxu0 0.0
        %979 = vmatprep.subr.mxu0 0.0
        %980 = vmatpush1.msra.mxu0 0.0
        %981 = vmatprep.subr.mxu0 0.0
        %982 = vmatpush1.msra.mxu0 0.0
        %983 = vmatprep.subr.mxu0 0.0
        %984 = vmatpush1.msra.mxu0 0.0
        %985 = vmatprep.subr.mxu0 0.0
        %986 = vmatpush1.msra.mxu0 0.0
        %987 = vmatprep.subr.mxu0 0.0
        %988 = vmatpush1.msra.mxu0 0.0
        %989 = vmatprep.subr.mxu0 0.0
        %990 = vmatpush1.msra.mxu0 0.0
        %991 = vmatprep.subr.mxu0 0.0
        %992 = vmatpush1.msra.mxu0 0.0
        %993 = vmatprep.subr.mxu0 0.0
        %994 = vmatpush1.msra.mxu0 0.0
        %995 = vmatprep.subr.mxu0 0.0
        %996 = vmatpush1.msra.mxu0 0.0
        %997 = vmatprep.subr.mxu0 0.0
        %998 = vmatpush1.msra.mxu0 0.0
        %999 = vmatprep.subr.mxu0 0.0
        %1000 = vmatpush1.msra.mxu0 0.0
        %1001 = vmatprep.subr.mxu0 0.0
        %1002 = vmatpush1.msra.mxu0 0.0
        %1003 = vmatprep.subr.mxu0 0.0
        %1004 = vmatpush1.msra.mxu0 0.0
        %1005 = vmatprep.subr.mxu0 0.0
        %1006 = vmatpush1.msra.mxu0 0.0
        %1007 = vmatprep.subr.mxu0 0.0
        %1008 = vmatpush1.msra.mxu0 0.0
        %1009 = vmatprep.subr.mxu0 0.0
        %1010 = vmatpush1.msra.mxu0 0.0
        %1011 = vmatprep.subr.mxu0 0.0
        %1012 = vmatpush1.msra.mxu0 0.0
        %1013 = vmatprep.mubr.f32.mxu0 0.0
        %1014 = vmatmul.mubr.f32.gmra.mrb[0].mxu0 %v947
        %v1015 = vpop.f32.mrb[0].mxu0
        %v1016 = vadd.f32 0.0, %v1015
        %v1017 = vpop.f32.mrb[0].mxu0
        %1018 = vdwg.mxu0
        %v1019 = vmul.f32 %v713, 0.75
        %v1020 = vmul.f32 %v550, 0.25
        %v1021 = vadd.f32 %v1019, %v1020
        %v1022 = vmax.f32 %v1021, 0.0
        %v1024 = vcombine.high %v1022, %v1022
        %v1026 = vunpack.c.l.s4 1966171168
        %v1027 = vunpack.c.0.s8 %v1026
        %v1028 = vlaneseq
        %v1029 = vshrl.u32 %v1028, 7
        %v1030 = vsub.s32 %v1027, %v1029
        %v1031 = vrot.slane %v1022, %v1030
        %v1033 = vunpack.c.l.s4 1966171168
        %v1034 = vunpack.c.0.s8 %v1033
        %v1035 = vlaneseq
        %v1036 = vshrl.u32 %v1035, 7
        %v1037 = vsub.s32 %v1034, %v1036
        %v1038 = vrot.slane %v1024, %v1037
        %v1039 = vcombine.high %v1031, %v1031
        %v1040 = vcombine.high %v1038, %v1038
        %v1042 = vunpack.c.l.s4 1966171168
        %v1043 = vunpack.c.0.s8 %v1042
        %v1044 = vlaneseq
        %v1045 = vshrl.u32 %v1044, 7
        %v1046 = vsub.s32 %v1043, %v1045
        %v1047 = vrot.slane %v1031, %v1046
        %v1049 = vunpack.c.l.s4 1966171168
        %v1050 = vunpack.c.0.s8 %v1049
        %v1051 = vlaneseq
        %v1052 = vshrl.u32 %v1051, 7
        %v1053 = vsub.s32 %v1050, %v1052
        %v1054 = vrot.slane %v1038, %v1053
        %v1056 = vunpack.c.l.s4 1966171168
        %v1057 = vunpack.c.0.s8 %v1056
        %v1058 = vlaneseq
        %v1059 = vshrl.u32 %v1058, 7
        %v1060 = vsub.s32 %v1057, %v1059
        %v1061 = vrot.slane %v1039, %v1060
        %v1063 = vunpack.c.l.s4 1966171168
        %v1064 = vunpack.c.0.s8 %v1063
        %v1065 = vlaneseq
        %v1066 = vshrl.u32 %v1065, 7
        %v1067 = vsub.s32 %v1064, %v1066
        %v1068 = vrot.slane %v1040, %v1067
        %v1069 = vcombine.high %v1047, %v1047
        %v1070 = vcombine.high %v1054, %v1054
        %v1071 = vcombine.high %v1061, %v1061
        %v1072 = vcombine.high %v1068, %v1068
        %1081 = vst.msk [vmem:[%s204 + $0x2] sm:$0x1] %vm778, %v1047
        %1082 = vst.msk [vmem:[%s204 + $0x22] sm:$0x1] %vm778, %v1061
        %1083 = vst.msk [vmem:[%s204 + $0x42] sm:$0x1] %vm778, %v1069
        %1084 = vst.msk [vmem:[%s204 + $0x62] sm:$0x1] %vm778, %v1071
        %1085 = vst.msk [vmem:[%s204 + $0x82] sm:$0x1] %vm778, %v1054
        %1086 = vst.msk [vmem:[%s204 + $0xa2] sm:$0x1] %vm778, %v1068
        %1087 = vst.msk [vmem:[%s204 + $0xc2] sm:$0x1] %vm778, %v1070
        %1088 = vst.msk [vmem:[%s204 + $0xe2] sm:$0x1] %vm778, %v1072
        %v1089 = vmul.f32 %v1016, 0.25
        %v1090 = vadd.f32 %v1019, %v1089
        %v1091 = vmax.f32 %v1090, 0.0
        %v1093 = vcombine.high %v1091, %v1091
        %v1095 = vunpack.c.l.s4 1966171168
        %v1096 = vunpack.c.0.s8 %v1095
        %v1097 = vlaneseq
        %v1098 = vshrl.u32 %v1097, 7
        %v1099 = vsub.s32 %v1096, %v1098
        %v1100 = vrot.slane %v1091, %v1099
        %v1102 = vunpack.c.l.s4 1966171168
        %v1103 = vunpack.c.0.s8 %v1102
        %v1104 = vlaneseq
        %v1105 = vshrl.u32 %v1104, 7
        %v1106 = vsub.s32 %v1103, %v1105
        %v1107 = vrot.slane %v1093, %v1106
        %v1108 = vcombine.high %v1100, %v1100
        %v1109 = vcombine.high %v1107, %v1107
        %v1111 = vunpack.c.l.s4 1966171168
        %v1112 = vunpack.c.0.s8 %v1111
        %v1113 = vlaneseq
        %v1114 = vshrl.u32 %v1113, 7
        %v1115 = vsub.s32 %v1112, %v1114
        %v1116 = vrot.slane %v1100, %v1115
        %v1118 = vunpack.c.l.s4 1966171168
        %v1119 = vunpack.c.0.s8 %v1118
        %v1120 = vlaneseq
        %v1121 = vshrl.u32 %v1120, 7
        %v1122 = vsub.s32 %v1119, %v1121
        %v1123 = vrot.slane %v1107, %v1122
        %v1125 = vunpack.c.l.s4 1966171168
        %v1126 = vunpack.c.0.s8 %v1125
        %v1127 = vlaneseq
        %v1128 = vshrl.u32 %v1127, 7
        %v1129 = vsub.s32 %v1126, %v1128
        %v1130 = vrot.slane %v1108, %v1129
        %v1132 = vunpack.c.l.s4 1966171168
        %v1133 = vunpack.c.0.s8 %v1132
        %v1134 = vlaneseq
        %v1135 = vshrl.u32 %v1134, 7
        %v1136 = vsub.s32 %v1133, %v1135
        %v1137 = vrot.slane %v1109, %v1136
        %v1138 = vcombine.high %v1116, %v1116
        %v1139 = vcombine.high %v1123, %v1123
        %v1140 = vcombine.high %v1130, %v1130
        %v1141 = vcombine.high %v1137, %v1137
        %1150 = vst.msk [vmem:[%s204 + $0x3] sm:$0x1] %vm778, %v1116
        %1151 = vst.msk [vmem:[%s204 + $0x23] sm:$0x1] %vm778, %v1130
        %1152 = vst.msk [vmem:[%s204 + $0x43] sm:$0x1] %vm778, %v1138
        %1153 = vst.msk [vmem:[%s204 + $0x63] sm:$0x1] %vm778, %v1140
        %1154 = vst.msk [vmem:[%s204 + $0x83] sm:$0x1] %vm778, %v1123
        %1155 = vst.msk [vmem:[%s204 + $0xa3] sm:$0x1] %vm778, %v1137
        %1156 = vst.msk [vmem:[%s204 + $0xc3] sm:$0x1] %vm778, %v1139
        %1157 = vst.msk [vmem:[%s204 + $0xe3] sm:$0x1] %vm778, %v1141
        %s1158 = sadd.s32 %s211, 3
        %p1159 = scmp.lt.s32.totalorder %s1158, 15
        %s1160 = scalar_select %p1159, %s1158, 15
        %s1161 = scalar_lea.vmem %s209, %s1160
        %v1162 = vld [vmem:[%s1161] sm:$0x1]
        %v1163 = vld [vmem:[%s1161 + $0x10] sm:$0x1]
        %v1164 = vld [vmem:[%s1161 + $0x20] sm:$0x1]
        %v1165 = vld [vmem:[%s1161 + $0x30] sm:$0x1]
        %v1170 = vrot.slane %v1163, 7
        %v1171 = vsel %vm234, %v1170, %v1162
        %v1172 = vrot.slane %v1164, 6
        %v1173 = vsel %vm237, %v1172, %v1171
        %v1174 = vrot.slane %v1165, 5
        %v1175 = vsel %vm240, %v1174, %v1173
        %v1176 = vsel %vm246, %v1175, 0
        %1178 = vmatprep.subr.mxu0 0.0
        %1179 = vmatpush1.msra.mxu0 %v1176
        %1180 = vmatprep.subr.mxu0 0.0
        %1181 = vmatpush1.msra.mxu0 0.0
        %1182 = vmatprep.subr.mxu0 0.0
        %1183 = vmatpush1.msra.mxu0 0.0
        %1184 = vmatprep.subr.mxu0 0.0
        %1185 = vmatpush1.msra.mxu0 0.0
        %1186 = vmatprep.subr.mxu0 0.0
        %1187 = vmatpush1.msra.mxu0 0.0
        %1188 = vmatprep.subr.mxu0 0.0
        %1189 = vmatpush1.msra.mxu0 0.0
        %1190 = vmatprep.subr.mxu0 0.0
        %1191 = vmatpush1.msra.mxu0 0.0
        %1192 = vmatprep.subr.mxu0 0.0
        %1193 = vmatpush1.msra.mxu0 0.0
        %1194 = vmatprep.subr.mxu0 0.0
        %1195 = vmatpush1.msra.mxu0 0.0
        %1196 = vmatprep.subr.mxu0 0.0
        %1197 = vmatpush1.msra.mxu0 0.0
        %1198 = vmatprep.subr.mxu0 0.0
        %1199 = vmatpush1.msra.mxu0 0.0
        %1200 = vmatprep.subr.mxu0 0.0
        %1201 = vmatpush1.msra.mxu0 0.0
        %1202 = vmatprep.subr.mxu0 0.0
        %1203 = vmatpush1.msra.mxu0 0.0
        %1204 = vmatprep.subr.mxu0 0.0
        %1205 = vmatpush1.msra.mxu0 0.0
        %1206 = vmatprep.subr.mxu0 0.0
        %1207 = vmatpush1.msra.mxu0 0.0
        %1208 = vmatprep.subr.mxu0 0.0
        %1209 = vmatpush1.msra.mxu0 0.0
        %1210 = vmatprep.subr.mxu0 0.0
        %1211 = vmatpush1.msra.mxu0 0.0
        %1212 = vmatprep.subr.mxu0 0.0
        %1213 = vmatpush1.msra.mxu0 0.0
        %1214 = vmatprep.subr.mxu0 0.0
        %1215 = vmatpush1.msra.mxu0 0.0
        %1216 = vmatprep.subr.mxu0 0.0
        %1217 = vmatpush1.msra.mxu0 0.0
        %1218 = vmatprep.subr.mxu0 0.0
        %1219 = vmatpush1.msra.mxu0 0.0
        %1220 = vmatprep.subr.mxu0 0.0
        %1221 = vmatpush1.msra.mxu0 0.0
        %1222 = vmatprep.subr.mxu0 0.0
        %1223 = vmatpush1.msra.mxu0 0.0
        %1224 = vmatprep.subr.mxu0 0.0
        %1225 = vmatpush1.msra.mxu0 0.0
        %1226 = vmatprep.subr.mxu0 0.0
        %1227 = vmatpush1.msra.mxu0 0.0
        %1228 = vmatprep.subr.mxu0 0.0
        %1229 = vmatpush1.msra.mxu0 0.0
        %1230 = vmatprep.subr.mxu0 0.0
        %1231 = vmatpush1.msra.mxu0 0.0
        %1232 = vmatprep.subr.mxu0 0.0
        %1233 = vmatpush1.msra.mxu0 0.0
        %1234 = vmatprep.subr.mxu0 0.0
        %1235 = vmatpush1.msra.mxu0 0.0
        %1236 = vmatprep.subr.mxu0 0.0
        %1237 = vmatpush1.msra.mxu0 0.0
        %1238 = vmatprep.subr.mxu0 0.0
        %1239 = vmatpush1.msra.mxu0 0.0
        %1240 = vmatprep.subr.mxu0 0.0
        %1241 = vmatpush1.msra.mxu0 0.0
        %1242 = vmatprep.mubr.f32.mxu0 0.0
        %1243 = vmatmul.mubr.f32.gmra.mrb[0].mxu0 %v244
        %v1244 = vpop.f32.mrb[0].mxu0
        %v1245 = vadd.f32 %v227, %v1244
        %v1246 = vpop.f32.mrb[0].mxu0
        %1247 = vdwg.mxu0
        %v1249 = vsel %vm319, %v1245, 0
        %1251 = vmatprep.subr.mxu0 0.0
        %1252 = vmatpush1.msra.mxu0 %v214
        %1253 = vmatprep.subr.mxu0 0.0
        %1254 = vmatpush1.msra.mxu0 %v215
        %1255 = vmatprep.subr.mxu0 0.0
        %1256 = vmatpush1.msra.mxu0 0.0
        %1257 = vmatprep.subr.mxu0 0.0
        %1258 = vmatpush1.msra.mxu0 0.0
        %1259 = vmatprep.subr.mxu0 0.0
        %1260 = vmatpush1.msra.mxu0 0.0
        %1261 = vmatprep.subr.mxu0 0.0
        %1262 = vmatpush1.msra.mxu0 0.0
        %1263 = vmatprep.subr.mxu0 0.0
        %1264 = vmatpush1.msra.mxu0 0.0
        %1265 = vmatprep.subr.mxu0 0.0
        %1266 = vmatpush1.msra.mxu0 0.0
        %1267 = vmatprep.subr.mxu0 0.0
        %1268 = vmatpush1.msra.mxu0 0.0
        %1269 = vmatprep.subr.mxu0 0.0
        %1270 = vmatpush1.msra.mxu0 0.0
        %1271 = vmatprep.subr.mxu0 0.0
        %1272 = vmatpush1.msra.mxu0 0.0
        %1273 = vmatprep.subr.mxu0 0.0
        %1274 = vmatpush1.msra.mxu0 0.0
        %1275 = vmatprep.subr.mxu0 0.0
        %1276 = vmatpush1.msra.mxu0 0.0
        %1277 = vmatprep.subr.mxu0 0.0
        %1278 = vmatpush1.msra.mxu0 0.0
        %1279 = vmatprep.subr.mxu0 0.0
        %1280 = vmatpush1.msra.mxu0 0.0
        %1281 = vmatprep.subr.mxu0 0.0
        %1282 = vmatpush1.msra.mxu0 0.0
        %1283 = vmatprep.subr.mxu0 0.0
        %1284 = vmatpush1.msra.mxu0 0.0
        %1285 = vmatprep.subr.mxu0 0.0
        %1286 = vmatpush1.msra.mxu0 0.0
        %1287 = vmatprep.subr.mxu0 0.0
        %1288 = vmatpush1.msra.mxu0 0.0
        %1289 = vmatprep.subr.mxu0 0.0
        %1290 = vmatpush1.msra.mxu0 0.0
        %1291 = vmatprep.subr.mxu0 0.0
        %1292 = vmatpush1.msra.mxu0 0.0
        %1293 = vmatprep.subr.mxu0 0.0
        %1294 = vmatpush1.msra.mxu0 0.0
        %1295 = vmatprep.subr.mxu0 0.0
        %1296 = vmatpush1.msra.mxu0 0.0
        %1297 = vmatprep.subr.mxu0 0.0
        %1298 = vmatpush1.msra.mxu0 0.0
        %1299 = vmatprep.subr.mxu0 0.0
        %1300 = vmatpush1.msra.mxu0 0.0
        %1301 = vmatprep.subr.mxu0 0.0
        %1302 = vmatpush1.msra.mxu0 0.0
        %1303 = vmatprep.subr.mxu0 0.0
        %1304 = vmatpush1.msra.mxu0 0.0
        %1305 = vmatprep.subr.mxu0 0.0
        %1306 = vmatpush1.msra.mxu0 0.0
        %1307 = vmatprep.subr.mxu0 0.0
        %1308 = vmatpush1.msra.mxu0 0.0
        %1309 = vmatprep.subr.mxu0 0.0
        %1310 = vmatpush1.msra.mxu0 0.0
        %1311 = vmatprep.subr.mxu0 0.0
        %1312 = vmatpush1.msra.mxu0 0.0
        %1313 = vmatprep.subr.mxu0 0.0
        %1314 = vmatpush1.msra.mxu0 0.0
        %1315 = vmatprep.mubr.f32.mxu0 0.0
        %1316 = vmatmul.mubr.f32.gmra.mrb[0].mxu0 %v1249
        %v1317 = vpop.f32.mrb[0].mxu0
        %v1318 = vadd.f32 0.0, %v1317
        %v1319 = vpop.f32.mrb[0].mxu0
        %1320 = vdwg.mxu0
        %v1321 = vmul.f32 %v1016, 0.75
        %v1322 = vadd.f32 %v1321, %v787
        %v1323 = vmax.f32 %v1322, 0.0
        %v1325 = vcombine.high %v1323, %v1323
        %v1327 = vunpack.c.l.s4 1966171168
        %v1328 = vunpack.c.0.s8 %v1327
        %v1329 = vlaneseq
        %v1330 = vshrl.u32 %v1329, 7
        %v1331 = vsub.s32 %v1328, %v1330
        %v1332 = vrot.slane %v1323, %v1331
        %v1334 = vunpack.c.l.s4 1966171168
        %v1335 = vunpack.c.0.s8 %v1334
        %v1336 = vlaneseq
        %v1337 = vshrl.u32 %v1336, 7
        %v1338 = vsub.s32 %v1335, %v1337
        %v1339 = vrot.slane %v1325, %v1338
        %v1340 = vcombine.high %v1332, %v1332
        %v1341 = vcombine.high %v1339, %v1339
        %v1343 = vunpack.c.l.s4 1966171168
        %v1344 = vunpack.c.0.s8 %v1343
        %v1345 = vlaneseq
        %v1346 = vshrl.u32 %v1345, 7
        %v1347 = vsub.s32 %v1344, %v1346
        %v1348 = vrot.slane %v1332, %v1347
        %v1350 = vunpack.c.l.s4 1966171168
        %v1351 = vunpack.c.0.s8 %v1350
        %v1352 = vlaneseq
        %v1353 = vshrl.u32 %v1352, 7
        %v1354 = vsub.s32 %v1351, %v1353
        %v1355 = vrot.slane %v1339, %v1354
        %v1357 = vunpack.c.l.s4 1966171168
        %v1358 = vunpack.c.0.s8 %v1357
        %v1359 = vlaneseq
        %v1360 = vshrl.u32 %v1359, 7
        %v1361 = vsub.s32 %v1358, %v1360
        %v1362 = vrot.slane %v1340, %v1361
        %v1364 = vunpack.c.l.s4 1966171168
        %v1365 = vunpack.c.0.s8 %v1364
        %v1366 = vlaneseq
        %v1367 = vshrl.u32 %v1366, 7
        %v1368 = vsub.s32 %v1365, %v1367
        %v1369 = vrot.slane %v1341, %v1368
        %v1370 = vcombine.high %v1348, %v1348
        %v1371 = vcombine.high %v1355, %v1355
        %v1372 = vcombine.high %v1362, %v1362
        %v1373 = vcombine.high %v1369, %v1369
        %1382 = vst.msk [vmem:[%s204 + $0x4] sm:$0x1] %vm778, %v1348
        %1383 = vst.msk [vmem:[%s204 + $0x24] sm:$0x1] %vm778, %v1362
        %1384 = vst.msk [vmem:[%s204 + $0x44] sm:$0x1] %vm778, %v1370
        %1385 = vst.msk [vmem:[%s204 + $0x64] sm:$0x1] %vm778, %v1372
        %1386 = vst.msk [vmem:[%s204 + $0x84] sm:$0x1] %vm778, %v1355
        %1387 = vst.msk [vmem:[%s204 + $0xa4] sm:$0x1] %vm778, %v1369
        %1388 = vst.msk [vmem:[%s204 + $0xc4] sm:$0x1] %vm778, %v1371
        %1389 = vst.msk [vmem:[%s204 + $0xe4] sm:$0x1] %vm778, %v1373
        %v1390 = vmul.f32 %v1318, 0.25
        %v1391 = vadd.f32 %v1321, %v1390
        %v1392 = vmax.f32 %v1391, 0.0
        %v1394 = vcombine.high %v1392, %v1392
        %v1396 = vunpack.c.l.s4 1966171168
        %v1397 = vunpack.c.0.s8 %v1396
        %v1398 = vlaneseq
        %v1399 = vshrl.u32 %v1398, 7
        %v1400 = vsub.s32 %v1397, %v1399
        %v1401 = vrot.slane %v1392, %v1400
        %v1403 = vunpack.c.l.s4 1966171168
        %v1404 = vunpack.c.0.s8 %v1403
        %v1405 = vlaneseq
        %v1406 = vshrl.u32 %v1405, 7
        %v1407 = vsub.s32 %v1404, %v1406
        %v1408 = vrot.slane %v1394, %v1407
        %v1409 = vcombine.high %v1401, %v1401
        %v1410 = vcombine.high %v1408, %v1408
        %v1412 = vunpack.c.l.s4 1966171168
        %v1413 = vunpack.c.0.s8 %v1412
        %v1414 = vlaneseq
        %v1415 = vshrl.u32 %v1414, 7
        %v1416 = vsub.s32 %v1413, %v1415
        %v1417 = vrot.slane %v1401, %v1416
        %v1419 = vunpack.c.l.s4 1966171168
        %v1420 = vunpack.c.0.s8 %v1419
        %v1421 = vlaneseq
        %v1422 = vshrl.u32 %v1421, 7
        %v1423 = vsub.s32 %v1420, %v1422
        %v1424 = vrot.slane %v1408, %v1423
        %v1426 = vunpack.c.l.s4 1966171168
        %v1427 = vunpack.c.0.s8 %v1426
        %v1428 = vlaneseq
        %v1429 = vshrl.u32 %v1428, 7
        %v1430 = vsub.s32 %v1427, %v1429
        %v1431 = vrot.slane %v1409, %v1430
        %v1433 = vunpack.c.l.s4 1966171168
        %v1434 = vunpack.c.0.s8 %v1433
        %v1435 = vlaneseq
        %v1436 = vshrl.u32 %v1435, 7
        %v1437 = vsub.s32 %v1434, %v1436
        %v1438 = vrot.slane %v1410, %v1437
        %v1439 = vcombine.high %v1417, %v1417
        %v1440 = vcombine.high %v1424, %v1424
        %v1441 = vcombine.high %v1431, %v1431
        %v1442 = vcombine.high %v1438, %v1438
        %1451 = vst.msk [vmem:[%s204 + $0x5] sm:$0x1] %vm778, %v1417
        %1452 = vst.msk [vmem:[%s204 + $0x25] sm:$0x1] %vm778, %v1431
        %1453 = vst.msk [vmem:[%s204 + $0x45] sm:$0x1] %vm778, %v1439
        %1454 = vst.msk [vmem:[%s204 + $0x65] sm:$0x1] %vm778, %v1441
        %1455 = vst.msk [vmem:[%s204 + $0x85] sm:$0x1] %vm778, %v1424
        %1456 = vst.msk [vmem:[%s204 + $0xa5] sm:$0x1] %vm778, %v1438
        %1457 = vst.msk [vmem:[%s204 + $0xc5] sm:$0x1] %vm778, %v1440
        %1458 = vst.msk [vmem:[%s204 + $0xe5] sm:$0x1] %vm778, %v1442
        %s1459 = sadd.s32 %s211, 4
        %p1460 = scmp.lt.s32.totalorder %s1459, 15
        %s1461 = scalar_select %p1460, %s1459, 15
        %s1462 = scalar_lea.vmem %s209, %s1461
        %v1463 = vld [vmem:[%s1462] sm:$0x1]
        %v1464 = vld [vmem:[%s1462 + $0x10] sm:$0x1]
        %v1465 = vld [vmem:[%s1462 + $0x20] sm:$0x1]
        %v1466 = vld [vmem:[%s1462 + $0x30] sm:$0x1]
        %v1471 = vrot.slane %v1464, 7
        %v1472 = vsel %vm234, %v1471, %v1463
        %v1473 = vrot.slane %v1465, 6
        %v1474 = vsel %vm237, %v1473, %v1472
        %v1475 = vrot.slane %v1466, 5
        %v1476 = vsel %vm240, %v1475, %v1474
        %v1477 = vsel %vm246, %v1476, 0
        %1479 = vmatprep.subr.mxu0 0.0
        %1480 = vmatpush1.msra.mxu0 %v1477
        %1481 = vmatprep.subr.mxu0 0.0
        %1482 = vmatpush1.msra.mxu0 0.0
        %1483 = vmatprep.subr.mxu0 0.0
        %1484 = vmatpush1.msra.mxu0 0.0
        %1485 = vmatprep.subr.mxu0 0.0
        %1486 = vmatpush1.msra.mxu0 0.0
        %1487 = vmatprep.subr.mxu0 0.0
        %1488 = vmatpush1.msra.mxu0 0.0
        %1489 = vmatprep.subr.mxu0 0.0
        %1490 = vmatpush1.msra.mxu0 0.0
        %1491 = vmatprep.subr.mxu0 0.0
        %1492 = vmatpush1.msra.mxu0 0.0
        %1493 = vmatprep.subr.mxu0 0.0
        %1494 = vmatpush1.msra.mxu0 0.0
        %1495 = vmatprep.subr.mxu0 0.0
        %1496 = vmatpush1.msra.mxu0 0.0
        %1497 = vmatprep.subr.mxu0 0.0
        %1498 = vmatpush1.msra.mxu0 0.0
        %1499 = vmatprep.subr.mxu0 0.0
        %1500 = vmatpush1.msra.mxu0 0.0
        %1501 = vmatprep.subr.mxu0 0.0
        %1502 = vmatpush1.msra.mxu0 0.0
        %1503 = vmatprep.subr.mxu0 0.0
        %1504 = vmatpush1.msra.mxu0 0.0
        %1505 = vmatprep.subr.mxu0 0.0
        %1506 = vmatpush1.msra.mxu0 0.0
        %1507 = vmatprep.subr.mxu0 0.0
        %1508 = vmatpush1.msra.mxu0 0.0
        %1509 = vmatprep.subr.mxu0 0.0
        %1510 = vmatpush1.msra.mxu0 0.0
        %1511 = vmatprep.subr.mxu0 0.0
        %1512 = vmatpush1.msra.mxu0 0.0
        %1513 = vmatprep.subr.mxu0 0.0
        %1514 = vmatpush1.msra.mxu0 0.0
        %1515 = vmatprep.subr.mxu0 0.0
        %1516 = vmatpush1.msra.mxu0 0.0
        %1517 = vmatprep.subr.mxu0 0.0
        %1518 = vmatpush1.msra.mxu0 0.0
        %1519 = vmatprep.subr.mxu0 0.0
        %1520 = vmatpush1.msra.mxu0 0.0
        %1521 = vmatprep.subr.mxu0 0.0
        %1522 = vmatpush1.msra.mxu0 0.0
        %1523 = vmatprep.subr.mxu0 0.0
        %1524 = vmatpush1.msra.mxu0 0.0
        %1525 = vmatprep.subr.mxu0 0.0
        %1526 = vmatpush1.msra.mxu0 0.0
        %1527 = vmatprep.subr.mxu0 0.0
        %1528 = vmatpush1.msra.mxu0 0.0
        %1529 = vmatprep.subr.mxu0 0.0
        %1530 = vmatpush1.msra.mxu0 0.0
        %1531 = vmatprep.subr.mxu0 0.0
        %1532 = vmatpush1.msra.mxu0 0.0
        %1533 = vmatprep.subr.mxu0 0.0
        %1534 = vmatpush1.msra.mxu0 0.0
        %1535 = vmatprep.subr.mxu0 0.0
        %1536 = vmatpush1.msra.mxu0 0.0
        %1537 = vmatprep.subr.mxu0 0.0
        %1538 = vmatpush1.msra.mxu0 0.0
        %1539 = vmatprep.subr.mxu0 0.0
        %1540 = vmatpush1.msra.mxu0 0.0
        %1541 = vmatprep.subr.mxu0 0.0
        %1542 = vmatpush1.msra.mxu0 0.0
        %1543 = vmatprep.mubr.f32.mxu0 0.0
        %1544 = vmatmul.mubr.f32.gmra.mrb[0].mxu0 %v244
        %v1545 = vpop.f32.mrb[0].mxu0
        %v1546 = vadd.f32 %v227, %v1545
        %v1547 = vpop.f32.mrb[0].mxu0
        %1548 = vdwg.mxu0
        %v1550 = vsel %vm319, %v1546, 0
        %1552 = vmatprep.subr.mxu0 0.0
        %1553 = vmatpush1.msra.mxu0 %v214
        %1554 = vmatprep.subr.mxu0 0.0
        %1555 = vmatpush1.msra.mxu0 %v215
        %1556 = vmatprep.subr.mxu0 0.0
        %1557 = vmatpush1.msra.mxu0 0.0
        %1558 = vmatprep.subr.mxu0 0.0
        %1559 = vmatpush1.msra.mxu0 0.0
        %1560 = vmatprep.subr.mxu0 0.0
        %1561 = vmatpush1.msra.mxu0 0.0
        %1562 = vmatprep.subr.mxu0 0.0
        %1563 = vmatpush1.msra.mxu0 0.0
        %1564 = vmatprep.subr.mxu0 0.0
        %1565 = vmatpush1.msra.mxu0 0.0
        %1566 = vmatprep.subr.mxu0 0.0
        %1567 = vmatpush1.msra.mxu0 0.0
        %1568 = vmatprep.subr.mxu0 0.0
        %1569 = vmatpush1.msra.mxu0 0.0
        %1570 = vmatprep.subr.mxu0 0.0
        %1571 = vmatpush1.msra.mxu0 0.0
        %1572 = vmatprep.subr.mxu0 0.0
        %1573 = vmatpush1.msra.mxu0 0.0
        %1574 = vmatprep.subr.mxu0 0.0
        %1575 = vmatpush1.msra.mxu0 0.0
        %1576 = vmatprep.subr.mxu0 0.0
        %1577 = vmatpush1.msra.mxu0 0.0
        %1578 = vmatprep.subr.mxu0 0.0
        %1579 = vmatpush1.msra.mxu0 0.0
        %1580 = vmatprep.subr.mxu0 0.0
        %1581 = vmatpush1.msra.mxu0 0.0
        %1582 = vmatprep.subr.mxu0 0.0
        %1583 = vmatpush1.msra.mxu0 0.0
        %1584 = vmatprep.subr.mxu0 0.0
        %1585 = vmatpush1.msra.mxu0 0.0
        %1586 = vmatprep.subr.mxu0 0.0
        %1587 = vmatpush1.msra.mxu0 0.0
        %1588 = vmatprep.subr.mxu0 0.0
        %1589 = vmatpush1.msra.mxu0 0.0
        %1590 = vmatprep.subr.mxu0 0.0
        %1591 = vmatpush1.msra.mxu0 0.0
        %1592 = vmatprep.subr.mxu0 0.0
        %1593 = vmatpush1.msra.mxu0 0.0
        %1594 = vmatprep.subr.mxu0 0.0
        %1595 = vmatpush1.msra.mxu0 0.0
        %1596 = vmatprep.subr.mxu0 0.0
        %1597 = vmatpush1.msra.mxu0 0.0
        %1598 = vmatprep.subr.mxu0 0.0
        %1599 = vmatpush1.msra.mxu0 0.0
        %1600 = vmatprep.subr.mxu0 0.0
        %1601 = vmatpush1.msra.mxu0 0.0
        %1602 = vmatprep.subr.mxu0 0.0
        %1603 = vmatpush1.msra.mxu0 0.0
        %1604 = vmatprep.subr.mxu0 0.0
        %1605 = vmatpush1.msra.mxu0 0.0
        %1606 = vmatprep.subr.mxu0 0.0
        %1607 = vmatpush1.msra.mxu0 0.0
        %1608 = vmatprep.subr.mxu0 0.0
        %1609 = vmatpush1.msra.mxu0 0.0
        %1610 = vmatprep.subr.mxu0 0.0
        %1611 = vmatpush1.msra.mxu0 0.0
        %1612 = vmatprep.subr.mxu0 0.0
        %1613 = vmatpush1.msra.mxu0 0.0
        %1614 = vmatprep.subr.mxu0 0.0
        %1615 = vmatpush1.msra.mxu0 0.0
        %1616 = vmatprep.mubr.f32.mxu0 0.0
        %1617 = vmatmul.mubr.f32.gmra.mrb[0].mxu0 %v1550
        %v1618 = vpop.f32.mrb[0].mxu0
        %v1619 = vadd.f32 0.0, %v1618
        %v1620 = vpop.f32.mrb[0].mxu0
        %1621 = vdwg.mxu0
        %v1622 = vmul.f32 %v1318, 0.75
        %v1623 = vadd.f32 %v1622, %v1089
        %v1624 = vmax.f32 %v1623, 0.0
        %v1626 = vcombine.high %v1624, %v1624
        %v1628 = vunpack.c.l.s4 1966171168
        %v1629 = vunpack.c.0.s8 %v1628
        %v1630 = vlaneseq
        %v1631 = vshrl.u32 %v1630, 7
        %v1632 = vsub.s32 %v1629, %v1631
        %v1633 = vrot.slane %v1624, %v1632
        %v1635 = vunpack.c.l.s4 1966171168
        %v1636 = vunpack.c.0.s8 %v1635
        %v1637 = vlaneseq
        %v1638 = vshrl.u32 %v1637, 7
        %v1639 = vsub.s32 %v1636, %v1638
        %v1640 = vrot.slane %v1626, %v1639
        %v1641 = vcombine.high %v1633, %v1633
        %v1642 = vcombine.high %v1640, %v1640
        %v1644 = vunpack.c.l.s4 1966171168
        %v1645 = vunpack.c.0.s8 %v1644
        %v1646 = vlaneseq
        %v1647 = vshrl.u32 %v1646, 7
        %v1648 = vsub.s32 %v1645, %v1647
        %v1649 = vrot.slane %v1633, %v1648
        %v1651 = vunpack.c.l.s4 1966171168
        %v1652 = vunpack.c.0.s8 %v1651
        %v1653 = vlaneseq
        %v1654 = vshrl.u32 %v1653, 7
        %v1655 = vsub.s32 %v1652, %v1654
        %v1656 = vrot.slane %v1640, %v1655
        %v1658 = vunpack.c.l.s4 1966171168
        %v1659 = vunpack.c.0.s8 %v1658
        %v1660 = vlaneseq
        %v1661 = vshrl.u32 %v1660, 7
        %v1662 = vsub.s32 %v1659, %v1661
        %v1663 = vrot.slane %v1641, %v1662
        %v1665 = vunpack.c.l.s4 1966171168
        %v1666 = vunpack.c.0.s8 %v1665
        %v1667 = vlaneseq
        %v1668 = vshrl.u32 %v1667, 7
        %v1669 = vsub.s32 %v1666, %v1668
        %v1670 = vrot.slane %v1642, %v1669
        %v1671 = vcombine.high %v1649, %v1649
        %v1672 = vcombine.high %v1656, %v1656
        %v1673 = vcombine.high %v1663, %v1663
        %v1674 = vcombine.high %v1670, %v1670
        %1683 = vst.msk [vmem:[%s204 + $0x6] sm:$0x1] %vm778, %v1649
        %1684 = vst.msk [vmem:[%s204 + $0x26] sm:$0x1] %vm778, %v1663
        %1685 = vst.msk [vmem:[%s204 + $0x46] sm:$0x1] %vm778, %v1671
        %1686 = vst.msk [vmem:[%s204 + $0x66] sm:$0x1] %vm778, %v1673
        %1687 = vst.msk [vmem:[%s204 + $0x86] sm:$0x1] %vm778, %v1656
        %1688 = vst.msk [vmem:[%s204 + $0xa6] sm:$0x1] %vm778, %v1670
        %1689 = vst.msk [vmem:[%s204 + $0xc6] sm:$0x1] %vm778, %v1672
        %1690 = vst.msk [vmem:[%s204 + $0xe6] sm:$0x1] %vm778, %v1674
        %v1691 = vmul.f32 %v1619, 0.25
        %v1692 = vadd.f32 %v1622, %v1691
        %v1693 = vmax.f32 %v1692, 0.0
        %v1695 = vcombine.high %v1693, %v1693
        %v1697 = vunpack.c.l.s4 1966171168
        %v1698 = vunpack.c.0.s8 %v1697
        %v1699 = vlaneseq
        %v1700 = vshrl.u32 %v1699, 7
        %v1701 = vsub.s32 %v1698, %v1700
        %v1702 = vrot.slane %v1693, %v1701
        %v1704 = vunpack.c.l.s4 1966171168
        %v1705 = vunpack.c.0.s8 %v1704
        %v1706 = vlaneseq
        %v1707 = vshrl.u32 %v1706, 7
        %v1708 = vsub.s32 %v1705, %v1707
        %v1709 = vrot.slane %v1695, %v1708
        %v1710 = vcombine.high %v1702, %v1702
        %v1711 = vcombine.high %v1709, %v1709
        %v1713 = vunpack.c.l.s4 1966171168
        %v1714 = vunpack.c.0.s8 %v1713
        %v1715 = vlaneseq
        %v1716 = vshrl.u32 %v1715, 7
        %v1717 = vsub.s32 %v1714, %v1716
        %v1718 = vrot.slane %v1702, %v1717
        %v1720 = vunpack.c.l.s4 1966171168
        %v1721 = vunpack.c.0.s8 %v1720
        %v1722 = vlaneseq
        %v1723 = vshrl.u32 %v1722, 7
        %v1724 = vsub.s32 %v1721, %v1723
        %v1725 = vrot.slane %v1709, %v1724
        %v1727 = vunpack.c.l.s4 1966171168
        %v1728 = vunpack.c.0.s8 %v1727
        %v1729 = vlaneseq
        %v1730 = vshrl.u32 %v1729, 7
        %v1731 = vsub.s32 %v1728, %v1730
        %v1732 = vrot.slane %v1710, %v1731
        %v1734 = vunpack.c.l.s4 1966171168
        %v1735 = vunpack.c.0.s8 %v1734
        %v1736 = vlaneseq
        %v1737 = vshrl.u32 %v1736, 7
        %v1738 = vsub.s32 %v1735, %v1737
        %v1739 = vrot.slane %v1711, %v1738
        %v1740 = vcombine.high %v1718, %v1718
        %v1741 = vcombine.high %v1725, %v1725
        %v1742 = vcombine.high %v1732, %v1732
        %v1743 = vcombine.high %v1739, %v1739
        %1752 = vst.msk [vmem:[%s204 + $0x7] sm:$0x1] %vm778, %v1718
        %1753 = vst.msk [vmem:[%s204 + $0x27] sm:$0x1] %vm778, %v1732
        %1754 = vst.msk [vmem:[%s204 + $0x47] sm:$0x1] %vm778, %v1740
        %1755 = vst.msk [vmem:[%s204 + $0x67] sm:$0x1] %vm778, %v1742
        %1756 = vst.msk [vmem:[%s204 + $0x87] sm:$0x1] %vm778, %v1725
        %1757 = vst.msk [vmem:[%s204 + $0xa7] sm:$0x1] %vm778, %v1739
        %1758 = vst.msk [vmem:[%s204 + $0xc7] sm:$0x1] %vm778, %v1741
        %1759 = vst.msk [vmem:[%s204 + $0xe7] sm:$0x1] %vm778, %v1743
        %s1760 = sadd.s32 %s211, 5
        %p1761 = scmp.lt.s32.totalorder %s1760, 15
        %s1762 = scalar_select %p1761, %s1760, 15
        %s1763 = scalar_lea.vmem %s209, %s1762
        %v1764 = vld [vmem:[%s1763] sm:$0x1]
        %v1765 = vld [vmem:[%s1763 + $0x10] sm:$0x1]
        %v1766 = vld [vmem:[%s1763 + $0x20] sm:$0x1]
        %v1767 = vld [vmem:[%s1763 + $0x30] sm:$0x1]
        %v1772 = vrot.slane %v1765, 7
        %v1773 = vsel %vm234, %v1772, %v1764
        %v1774 = vrot.slane %v1766, 6
        %v1775 = vsel %vm237, %v1774, %v1773
        %v1776 = vrot.slane %v1767, 5
        %v1777 = vsel %vm240, %v1776, %v1775
        %v1778 = vsel %vm246, %v1777, 0
        %1780 = vmatprep.subr.mxu0 0.0
        %1781 = vmatpush1.msra.mxu0 %v1778
        %1782 = vmatprep.subr.mxu0 0.0
        %1783 = vmatpush1.msra.mxu0 0.0
        %1784 = vmatprep.subr.mxu0 0.0
        %1785 = vmatpush1.msra.mxu0 0.0
        %1786 = vmatprep.subr.mxu0 0.0
        %1787 = vmatpush1.msra.mxu0 0.0
        %1788 = vmatprep.subr.mxu0 0.0
        %1789 = vmatpush1.msra.mxu0 0.0
        %1790 = vmatprep.subr.mxu0 0.0
        %1791 = vmatpush1.msra.mxu0 0.0
        %1792 = vmatprep.subr.mxu0 0.0
        %1793 = vmatpush1.msra.mxu0 0.0
        %1794 = vmatprep.subr.mxu0 0.0
        %1795 = vmatpush1.msra.mxu0 0.0
        %1796 = vmatprep.subr.mxu0 0.0
        %1797 = vmatpush1.msra.mxu0 0.0
        %1798 = vmatprep.subr.mxu0 0.0
        %1799 = vmatpush1.msra.mxu0 0.0
        %1800 = vmatprep.subr.mxu0 0.0
        %1801 = vmatpush1.msra.mxu0 0.0
        %1802 = vmatprep.subr.mxu0 0.0
        %1803 = vmatpush1.msra.mxu0 0.0
        %1804 = vmatprep.subr.mxu0 0.0
        %1805 = vmatpush1.msra.mxu0 0.0
        %1806 = vmatprep.subr.mxu0 0.0
        %1807 = vmatpush1.msra.mxu0 0.0
        %1808 = vmatprep.subr.mxu0 0.0
        %1809 = vmatpush1.msra.mxu0 0.0
        %1810 = vmatprep.subr.mxu0 0.0
        %1811 = vmatpush1.msra.mxu0 0.0
        %1812 = vmatprep.subr.mxu0 0.0
        %1813 = vmatpush1.msra.mxu0 0.0
        %1814 = vmatprep.subr.mxu0 0.0
        %1815 = vmatpush1.msra.mxu0 0.0
        %1816 = vmatprep.subr.mxu0 0.0
        %1817 = vmatpush1.msra.mxu0 0.0
        %1818 = vmatprep.subr.mxu0 0.0
        %1819 = vmatpush1.msra.mxu0 0.0
        %1820 = vmatprep.subr.mxu0 0.0
        %1821 = vmatpush1.msra.mxu0 0.0
        %1822 = vmatprep.subr.mxu0 0.0
        %1823 = vmatpush1.msra.mxu0 0.0
        %1824 = vmatprep.subr.mxu0 0.0
        %1825 = vmatpush1.msra.mxu0 0.0
        %1826 = vmatprep.subr.mxu0 0.0
        %1827 = vmatpush1.msra.mxu0 0.0
        %1828 = vmatprep.subr.mxu0 0.0
        %1829 = vmatpush1.msra.mxu0 0.0
        %1830 = vmatprep.subr.mxu0 0.0
        %1831 = vmatpush1.msra.mxu0 0.0
        %1832 = vmatprep.subr.mxu0 0.0
        %1833 = vmatpush1.msra.mxu0 0.0
        %1834 = vmatprep.subr.mxu0 0.0
        %1835 = vmatpush1.msra.mxu0 0.0
        %1836 = vmatprep.subr.mxu0 0.0
        %1837 = vmatpush1.msra.mxu0 0.0
        %1838 = vmatprep.subr.mxu0 0.0
        %1839 = vmatpush1.msra.mxu0 0.0
        %1840 = vmatprep.subr.mxu0 0.0
        %1841 = vmatpush1.msra.mxu0 0.0
        %1842 = vmatprep.subr.mxu0 0.0
        %1843 = vmatpush1.msra.mxu0 0.0
        %1844 = vmatprep.mubr.f32.mxu0 0.0
        %1845 = vmatmul.mubr.f32.gmra.mrb[0].mxu0 %v244
        %v1846 = vpop.f32.mrb[0].mxu0
        %v1847 = vadd.f32 %v227, %v1846
        %v1848 = vpop.f32.mrb[0].mxu0
        %1849 = vdwg.mxu0
        %v1851 = vsel %vm319, %v1847, 0
        %1853 = vmatprep.subr.mxu0 0.0
        %1854 = vmatpush1.msra.mxu0 %v214
        %1855 = vmatprep.subr.mxu0 0.0
        %1856 = vmatpush1.msra.mxu0 %v215
        %1857 = vmatprep.subr.mxu0 0.0
        %1858 = vmatpush1.msra.mxu0 0.0
        %1859 = vmatprep.subr.mxu0 0.0
        %1860 = vmatpush1.msra.mxu0 0.0
        %1861 = vmatprep.subr.mxu0 0.0
        %1862 = vmatpush1.msra.mxu0 0.0
        %1863 = vmatprep.subr.mxu0 0.0
        %1864 = vmatpush1.msra.mxu0 0.0
        %1865 = vmatprep.subr.mxu0 0.0
        %1866 = vmatpush1.msra.mxu0 0.0
        %1867 = vmatprep.subr.mxu0 0.0
        %1868 = vmatpush1.msra.mxu0 0.0
        %1869 = vmatprep.subr.mxu0 0.0
        %1870 = vmatpush1.msra.mxu0 0.0
        %1871 = vmatprep.subr.mxu0 0.0
        %1872 = vmatpush1.msra.mxu0 0.0
        %1873 = vmatprep.subr.mxu0 0.0
        %1874 = vmatpush1.msra.mxu0 0.0
        %1875 = vmatprep.subr.mxu0 0.0
        %1876 = vmatpush1.msra.mxu0 0.0
        %1877 = vmatprep.subr.mxu0 0.0
        %1878 = vmatpush1.msra.mxu0 0.0
        %1879 = vmatprep.subr.mxu0 0.0
        %1880 = vmatpush1.msra.mxu0 0.0
        %1881 = vmatprep.subr.mxu0 0.0
        %1882 = vmatpush1.msra.mxu0 0.0
        %1883 = vmatprep.subr.mxu0 0.0
        %1884 = vmatpush1.msra.mxu0 0.0
        %1885 = vmatprep.subr.mxu0 0.0
        %1886 = vmatpush1.msra.mxu0 0.0
        %1887 = vmatprep.subr.mxu0 0.0
        %1888 = vmatpush1.msra.mxu0 0.0
        %1889 = vmatprep.subr.mxu0 0.0
        %1890 = vmatpush1.msra.mxu0 0.0
        %1891 = vmatprep.subr.mxu0 0.0
        %1892 = vmatpush1.msra.mxu0 0.0
        %1893 = vmatprep.subr.mxu0 0.0
        %1894 = vmatpush1.msra.mxu0 0.0
        %1895 = vmatprep.subr.mxu0 0.0
        %1896 = vmatpush1.msra.mxu0 0.0
        %1897 = vmatprep.subr.mxu0 0.0
        %1898 = vmatpush1.msra.mxu0 0.0
        %1899 = vmatprep.subr.mxu0 0.0
        %1900 = vmatpush1.msra.mxu0 0.0
        %1901 = vmatprep.subr.mxu0 0.0
        %1902 = vmatpush1.msra.mxu0 0.0
        %1903 = vmatprep.subr.mxu0 0.0
        %1904 = vmatpush1.msra.mxu0 0.0
        %1905 = vmatprep.subr.mxu0 0.0
        %1906 = vmatpush1.msra.mxu0 0.0
        %1907 = vmatprep.subr.mxu0 0.0
        %1908 = vmatpush1.msra.mxu0 0.0
        %1909 = vmatprep.subr.mxu0 0.0
        %1910 = vmatpush1.msra.mxu0 0.0
        %1911 = vmatprep.subr.mxu0 0.0
        %1912 = vmatpush1.msra.mxu0 0.0
        %1913 = vmatprep.subr.mxu0 0.0
        %1914 = vmatpush1.msra.mxu0 0.0
        %1915 = vmatprep.subr.mxu0 0.0
        %1916 = vmatpush1.msra.mxu0 0.0
        %1917 = vmatprep.mubr.f32.mxu0 0.0
        %1918 = vmatmul.mubr.f32.gmra.mrb[0].mxu0 %v1851
        %v1919 = vpop.f32.mrb[0].mxu0
        %v1920 = vadd.f32 0.0, %v1919
        %v1921 = vpop.f32.mrb[0].mxu0
        %1922 = vdwg.mxu0
        %v1923 = vmul.f32 %v1619, 0.75
        %v1924 = vadd.f32 %v1923, %v1390
        %v1925 = vmax.f32 %v1924, 0.0
        %v1927 = vcombine.high %v1925, %v1925
        %v1929 = vunpack.c.l.s4 1966171168
        %v1930 = vunpack.c.0.s8 %v1929
        %v1931 = vlaneseq
        %v1932 = vshrl.u32 %v1931, 7
        %v1933 = vsub.s32 %v1930, %v1932
        %v1934 = vrot.slane %v1925, %v1933
        %v1936 = vunpack.c.l.s4 1966171168
        %v1937 = vunpack.c.0.s8 %v1936
        %v1938 = vlaneseq
        %v1939 = vshrl.u32 %v1938, 7
        %v1940 = vsub.s32 %v1937, %v1939
        %v1941 = vrot.slane %v1927, %v1940
        %v1942 = vcombine.high %v1934, %v1934
        %v1943 = vcombine.high %v1941, %v1941
        %v1945 = vunpack.c.l.s4 1966171168
        %v1946 = vunpack.c.0.s8 %v1945
        %v1947 = vlaneseq
        %v1948 = vshrl.u32 %v1947, 7
        %v1949 = vsub.s32 %v1946, %v1948
        %v1950 = vrot.slane %v1934, %v1949
        %v1952 = vunpack.c.l.s4 1966171168
        %v1953 = vunpack.c.0.s8 %v1952
        %v1954 = vlaneseq
        %v1955 = vshrl.u32 %v1954, 7
        %v1956 = vsub.s32 %v1953, %v1955
        %v1957 = vrot.slane %v1941, %v1956
        %v1959 = vunpack.c.l.s4 1966171168
        %v1960 = vunpack.c.0.s8 %v1959
        %v1961 = vlaneseq
        %v1962 = vshrl.u32 %v1961, 7
        %v1963 = vsub.s32 %v1960, %v1962
        %v1964 = vrot.slane %v1942, %v1963
        %v1966 = vunpack.c.l.s4 1966171168
        %v1967 = vunpack.c.0.s8 %v1966
        %v1968 = vlaneseq
        %v1969 = vshrl.u32 %v1968, 7
        %v1970 = vsub.s32 %v1967, %v1969
        %v1971 = vrot.slane %v1943, %v1970
        %v1972 = vcombine.high %v1950, %v1950
        %v1973 = vcombine.high %v1957, %v1957
        %v1974 = vcombine.high %v1964, %v1964
        %v1975 = vcombine.high %v1971, %v1971
        %1984 = vst.msk [vmem:[%s204 + $0x8] sm:$0x1] %vm778, %v1950
        %1985 = vst.msk [vmem:[%s204 + $0x28] sm:$0x1] %vm778, %v1964
        %1986 = vst.msk [vmem:[%s204 + $0x48] sm:$0x1] %vm778, %v1972
        %1987 = vst.msk [vmem:[%s204 + $0x68] sm:$0x1] %vm778, %v1974
        %1988 = vst.msk [vmem:[%s204 + $0x88] sm:$0x1] %vm778, %v1957
        %1989 = vst.msk [vmem:[%s204 + $0xa8] sm:$0x1] %vm778, %v1971
        %1990 = vst.msk [vmem:[%s204 + $0xc8] sm:$0x1] %vm778, %v1973
        %1991 = vst.msk [vmem:[%s204 + $0xe8] sm:$0x1] %vm778, %v1975
        %v1992 = vmul.f32 %v1920, 0.25
        %v1993 = vadd.f32 %v1923, %v1992
        %v1994 = vmax.f32 %v1993, 0.0
        %v1996 = vcombine.high %v1994, %v1994
        %v1998 = vunpack.c.l.s4 1966171168
        %v1999 = vunpack.c.0.s8 %v1998
        %v2000 = vlaneseq
        %v2001 = vshrl.u32 %v2000, 7
        %v2002 = vsub.s32 %v1999, %v2001
        %v2003 = vrot.slane %v1994, %v2002
        %v2005 = vunpack.c.l.s4 1966171168
        %v2006 = vunpack.c.0.s8 %v2005
        %v2007 = vlaneseq
        %v2008 = vshrl.u32 %v2007, 7
        %v2009 = vsub.s32 %v2006, %v2008
        %v2010 = vrot.slane %v1996, %v2009
        %v2011 = vcombine.high %v2003, %v2003
        %v2012 = vcombine.high %v2010, %v2010
        %v2014 = vunpack.c.l.s4 1966171168
        %v2015 = vunpack.c.0.s8 %v2014
        %v2016 = vlaneseq
        %v2017 = vshrl.u32 %v2016, 7
        %v2018 = vsub.s32 %v2015, %v2017
        %v2019 = vrot.slane %v2003, %v2018
        %v2021 = vunpack.c.l.s4 1966171168
        %v2022 = vunpack.c.0.s8 %v2021
        %v2023 = vlaneseq
        %v2024 = vshrl.u32 %v2023, 7
        %v2025 = vsub.s32 %v2022, %v2024
        %v2026 = vrot.slane %v2010, %v2025
        %v2028 = vunpack.c.l.s4 1966171168
        %v2029 = vunpack.c.0.s8 %v2028
        %v2030 = vlaneseq
        %v2031 = vshrl.u32 %v2030, 7
        %v2032 = vsub.s32 %v2029, %v2031
        %v2033 = vrot.slane %v2011, %v2032
        %v2035 = vunpack.c.l.s4 1966171168
        %v2036 = vunpack.c.0.s8 %v2035
        %v2037 = vlaneseq
        %v2038 = vshrl.u32 %v2037, 7
        %v2039 = vsub.s32 %v2036, %v2038
        %v2040 = vrot.slane %v2012, %v2039
        %v2041 = vcombine.high %v2019, %v2019
        %v2042 = vcombine.high %v2026, %v2026
        %v2043 = vcombine.high %v2033, %v2033
        %v2044 = vcombine.high %v2040, %v2040
        %2053 = vst.msk [vmem:[%s204 + $0x9] sm:$0x1] %vm778, %v2019
        %2054 = vst.msk [vmem:[%s204 + $0x29] sm:$0x1] %vm778, %v2033
        %2055 = vst.msk [vmem:[%s204 + $0x49] sm:$0x1] %vm778, %v2041
        %2056 = vst.msk [vmem:[%s204 + $0x69] sm:$0x1] %vm778, %v2043
        %2057 = vst.msk [vmem:[%s204 + $0x89] sm:$0x1] %vm778, %v2026
        %2058 = vst.msk [vmem:[%s204 + $0xa9] sm:$0x1] %vm778, %v2040
        %2059 = vst.msk [vmem:[%s204 + $0xc9] sm:$0x1] %vm778, %v2042
        %2060 = vst.msk [vmem:[%s204 + $0xe9] sm:$0x1] %vm778, %v2044
        %s2061 = sadd.s32 %s211, 6
        %p2062 = scmp.lt.s32.totalorder %s2061, 15
        %s2063 = scalar_select %p2062, %s2061, 15
        %s2064 = scalar_lea.vmem %s209, %s2063
        %v2065 = vld [vmem:[%s2064] sm:$0x1]
        %v2066 = vld [vmem:[%s2064 + $0x10] sm:$0x1]
        %v2067 = vld [vmem:[%s2064 + $0x20] sm:$0x1]
        %v2068 = vld [vmem:[%s2064 + $0x30] sm:$0x1]
        %v2073 = vrot.slane %v2066, 7
        %v2074 = vsel %vm234, %v2073, %v2065
        %v2075 = vrot.slane %v2067, 6
        %v2076 = vsel %vm237, %v2075, %v2074
        %v2077 = vrot.slane %v2068, 5
        %v2078 = vsel %vm240, %v2077, %v2076
        %v2079 = vsel %vm246, %v2078, 0
        %2081 = vmatprep.subr.mxu0 0.0
        %2082 = vmatpush1.msra.mxu0 %v2079
        %2083 = vmatprep.subr.mxu0 0.0
        %2084 = vmatpush1.msra.mxu0 0.0
        %2085 = vmatprep.subr.mxu0 0.0
        %2086 = vmatpush1.msra.mxu0 0.0
        %2087 = vmatprep.subr.mxu0 0.0
        %2088 = vmatpush1.msra.mxu0 0.0
        %2089 = vmatprep.subr.mxu0 0.0
        %2090 = vmatpush1.msra.mxu0 0.0
        %2091 = vmatprep.subr.mxu0 0.0
        %2092 = vmatpush1.msra.mxu0 0.0
        %2093 = vmatprep.subr.mxu0 0.0
        %2094 = vmatpush1.msra.mxu0 0.0
        %2095 = vmatprep.subr.mxu0 0.0
        %2096 = vmatpush1.msra.mxu0 0.0
        %2097 = vmatprep.subr.mxu0 0.0
        %2098 = vmatpush1.msra.mxu0 0.0
        %2099 = vmatprep.subr.mxu0 0.0
        %2100 = vmatpush1.msra.mxu0 0.0
        %2101 = vmatprep.subr.mxu0 0.0
        %2102 = vmatpush1.msra.mxu0 0.0
        %2103 = vmatprep.subr.mxu0 0.0
        %2104 = vmatpush1.msra.mxu0 0.0
        %2105 = vmatprep.subr.mxu0 0.0
        %2106 = vmatpush1.msra.mxu0 0.0
        %2107 = vmatprep.subr.mxu0 0.0
        %2108 = vmatpush1.msra.mxu0 0.0
        %2109 = vmatprep.subr.mxu0 0.0
        %2110 = vmatpush1.msra.mxu0 0.0
        %2111 = vmatprep.subr.mxu0 0.0
        %2112 = vmatpush1.msra.mxu0 0.0
        %2113 = vmatprep.subr.mxu0 0.0
        %2114 = vmatpush1.msra.mxu0 0.0
        %2115 = vmatprep.subr.mxu0 0.0
        %2116 = vmatpush1.msra.mxu0 0.0
        %2117 = vmatprep.subr.mxu0 0.0
        %2118 = vmatpush1.msra.mxu0 0.0
        %2119 = vmatprep.subr.mxu0 0.0
        %2120 = vmatpush1.msra.mxu0 0.0
        %2121 = vmatprep.subr.mxu0 0.0
        %2122 = vmatpush1.msra.mxu0 0.0
        %2123 = vmatprep.subr.mxu0 0.0
        %2124 = vmatpush1.msra.mxu0 0.0
        %2125 = vmatprep.subr.mxu0 0.0
        %2126 = vmatpush1.msra.mxu0 0.0
        %2127 = vmatprep.subr.mxu0 0.0
        %2128 = vmatpush1.msra.mxu0 0.0
        %2129 = vmatprep.subr.mxu0 0.0
        %2130 = vmatpush1.msra.mxu0 0.0
        %2131 = vmatprep.subr.mxu0 0.0
        %2132 = vmatpush1.msra.mxu0 0.0
        %2133 = vmatprep.subr.mxu0 0.0
        %2134 = vmatpush1.msra.mxu0 0.0
        %2135 = vmatprep.subr.mxu0 0.0
        %2136 = vmatpush1.msra.mxu0 0.0
        %2137 = vmatprep.subr.mxu0 0.0
        %2138 = vmatpush1.msra.mxu0 0.0
        %2139 = vmatprep.subr.mxu0 0.0
        %2140 = vmatpush1.msra.mxu0 0.0
        %2141 = vmatprep.subr.mxu0 0.0
        %2142 = vmatpush1.msra.mxu0 0.0
        %2143 = vmatprep.subr.mxu0 0.0
        %2144 = vmatpush1.msra.mxu0 0.0
        %2145 = vmatprep.mubr.f32.mxu0 0.0
        %2146 = vmatmul.mubr.f32.gmra.mrb[0].mxu0 %v244
        %v2147 = vpop.f32.mrb[0].mxu0
        %v2148 = vadd.f32 %v227, %v2147
        %v2149 = vpop.f32.mrb[0].mxu0
        %2150 = vdwg.mxu0
        %v2152 = vsel %vm319, %v2148, 0
        %2154 = vmatprep.subr.mxu0 0.0
        %2155 = vmatpush1.msra.mxu0 %v214
        %2156 = vmatprep.subr.mxu0 0.0
        %2157 = vmatpush1.msra.mxu0 %v215
        %2158 = vmatprep.subr.mxu0 0.0
        %2159 = vmatpush1.msra.mxu0 0.0
        %2160 = vmatprep.subr.mxu0 0.0
        %2161 = vmatpush1.msra.mxu0 0.0
        %2162 = vmatprep.subr.mxu0 0.0
        %2163 = vmatpush1.msra.mxu0 0.0
        %2164 = vmatprep.subr.mxu0 0.0
        %2165 = vmatpush1.msra.mxu0 0.0
        %2166 = vmatprep.subr.mxu0 0.0
        %2167 = vmatpush1.msra.mxu0 0.0
        %2168 = vmatprep.subr.mxu0 0.0
        %2169 = vmatpush1.msra.mxu0 0.0
        %2170 = vmatprep.subr.mxu0 0.0
        %2171 = vmatpush1.msra.mxu0 0.0
        %2172 = vmatprep.subr.mxu0 0.0
        %2173 = vmatpush1.msra.mxu0 0.0
        %2174 = vmatprep.subr.mxu0 0.0
        %2175 = vmatpush1.msra.mxu0 0.0
        %2176 = vmatprep.subr.mxu0 0.0
        %2177 = vmatpush1.msra.mxu0 0.0
        %2178 = vmatprep.subr.mxu0 0.0
        %2179 = vmatpush1.msra.mxu0 0.0
        %2180 = vmatprep.subr.mxu0 0.0
        %2181 = vmatpush1.msra.mxu0 0.0
        %2182 = vmatprep.subr.mxu0 0.0
        %2183 = vmatpush1.msra.mxu0 0.0
        %2184 = vmatprep.subr.mxu0 0.0
        %2185 = vmatpush1.msra.mxu0 0.0
        %2186 = vmatprep.subr.mxu0 0.0
        %2187 = vmatpush1.msra.mxu0 0.0
        %2188 = vmatprep.subr.mxu0 0.0
        %2189 = vmatpush1.msra.mxu0 0.0
        %2190 = vmatprep.subr.mxu0 0.0
        %2191 = vmatpush1.msra.mxu0 0.0
        %2192 = vmatprep.subr.mxu0 0.0
        %2193 = vmatpush1.msra.mxu0 0.0
        %2194 = vmatprep.subr.mxu0 0.0
        %2195 = vmatpush1.msra.mxu0 0.0
        %2196 = vmatprep.subr.mxu0 0.0
        %2197 = vmatpush1.msra.mxu0 0.0
        %2198 = vmatprep.subr.mxu0 0.0
        %2199 = vmatpush1.msra.mxu0 0.0
        %2200 = vmatprep.subr.mxu0 0.0
        %2201 = vmatpush1.msra.mxu0 0.0
        %2202 = vmatprep.subr.mxu0 0.0
        %2203 = vmatpush1.msra.mxu0 0.0
        %2204 = vmatprep.subr.mxu0 0.0
        %2205 = vmatpush1.msra.mxu0 0.0
        %2206 = vmatprep.subr.mxu0 0.0
        %2207 = vmatpush1.msra.mxu0 0.0
        %2208 = vmatprep.subr.mxu0 0.0
        %2209 = vmatpush1.msra.mxu0 0.0
        %2210 = vmatprep.subr.mxu0 0.0
        %2211 = vmatpush1.msra.mxu0 0.0
        %2212 = vmatprep.subr.mxu0 0.0
        %2213 = vmatpush1.msra.mxu0 0.0
        %2214 = vmatprep.subr.mxu0 0.0
        %2215 = vmatpush1.msra.mxu0 0.0
        %2216 = vmatprep.subr.mxu0 0.0
        %2217 = vmatpush1.msra.mxu0 0.0
        %2218 = vmatprep.mubr.f32.mxu0 0.0
        %2219 = vmatmul.mubr.f32.gmra.mrb[0].mxu0 %v2152
        %v2220 = vpop.f32.mrb[0].mxu0
        %v2221 = vadd.f32 0.0, %v2220
        %v2222 = vpop.f32.mrb[0].mxu0
        %2223 = vdwg.mxu0
        %v2224 = vmul.f32 %v1920, 0.75
        %v2225 = vadd.f32 %v2224, %v1691
        %v2226 = vmax.f32 %v2225, 0.0
        %v2228 = vcombine.high %v2226, %v2226
        %v2230 = vunpack.c.l.s4 1966171168
        %v2231 = vunpack.c.0.s8 %v2230
        %v2232 = vlaneseq
        %v2233 = vshrl.u32 %v2232, 7
        %v2234 = vsub.s32 %v2231, %v2233
        %v2235 = vrot.slane %v2226, %v2234
        %v2237 = vunpack.c.l.s4 1966171168
        %v2238 = vunpack.c.0.s8 %v2237
        %v2239 = vlaneseq
        %v2240 = vshrl.u32 %v2239, 7
        %v2241 = vsub.s32 %v2238, %v2240
        %v2242 = vrot.slane %v2228, %v2241
        %v2243 = vcombine.high %v2235, %v2235
        %v2244 = vcombine.high %v2242, %v2242
        %v2246 = vunpack.c.l.s4 1966171168
        %v2247 = vunpack.c.0.s8 %v2246
        %v2248 = vlaneseq
        %v2249 = vshrl.u32 %v2248, 7
        %v2250 = vsub.s32 %v2247, %v2249
        %v2251 = vrot.slane %v2235, %v2250
        %v2253 = vunpack.c.l.s4 1966171168
        %v2254 = vunpack.c.0.s8 %v2253
        %v2255 = vlaneseq
        %v2256 = vshrl.u32 %v2255, 7
        %v2257 = vsub.s32 %v2254, %v2256
        %v2258 = vrot.slane %v2242, %v2257
        %v2260 = vunpack.c.l.s4 1966171168
        %v2261 = vunpack.c.0.s8 %v2260
        %v2262 = vlaneseq
        %v2263 = vshrl.u32 %v2262, 7
        %v2264 = vsub.s32 %v2261, %v2263
        %v2265 = vrot.slane %v2243, %v2264
        %v2267 = vunpack.c.l.s4 1966171168
        %v2268 = vunpack.c.0.s8 %v2267
        %v2269 = vlaneseq
        %v2270 = vshrl.u32 %v2269, 7
        %v2271 = vsub.s32 %v2268, %v2270
        %v2272 = vrot.slane %v2244, %v2271
        %v2273 = vcombine.high %v2251, %v2251
        %v2274 = vcombine.high %v2258, %v2258
        %v2275 = vcombine.high %v2265, %v2265
        %v2276 = vcombine.high %v2272, %v2272
        %2285 = vst.msk [vmem:[%s204 + $0xa] sm:$0x1] %vm778, %v2251
        %2286 = vst.msk [vmem:[%s204 + $0x2a] sm:$0x1] %vm778, %v2265
        %2287 = vst.msk [vmem:[%s204 + $0x4a] sm:$0x1] %vm778, %v2273
        %2288 = vst.msk [vmem:[%s204 + $0x6a] sm:$0x1] %vm778, %v2275
        %2289 = vst.msk [vmem:[%s204 + $0x8a] sm:$0x1] %vm778, %v2258
        %2290 = vst.msk [vmem:[%s204 + $0xaa] sm:$0x1] %vm778, %v2272
        %2291 = vst.msk [vmem:[%s204 + $0xca] sm:$0x1] %vm778, %v2274
        %2292 = vst.msk [vmem:[%s204 + $0xea] sm:$0x1] %vm778, %v2276
        %v2293 = vmul.f32 %v2221, 0.25
        %v2294 = vadd.f32 %v2224, %v2293
        %v2295 = vmax.f32 %v2294, 0.0
        %v2297 = vcombine.high %v2295, %v2295
        %v2299 = vunpack.c.l.s4 1966171168
        %v2300 = vunpack.c.0.s8 %v2299
        %v2301 = vlaneseq
        %v2302 = vshrl.u32 %v2301, 7
        %v2303 = vsub.s32 %v2300, %v2302
        %v2304 = vrot.slane %v2295, %v2303
        %v2306 = vunpack.c.l.s4 1966171168
        %v2307 = vunpack.c.0.s8 %v2306
        %v2308 = vlaneseq
        %v2309 = vshrl.u32 %v2308, 7
        %v2310 = vsub.s32 %v2307, %v2309
        %v2311 = vrot.slane %v2297, %v2310
        %v2312 = vcombine.high %v2304, %v2304
        %v2313 = vcombine.high %v2311, %v2311
        %v2315 = vunpack.c.l.s4 1966171168
        %v2316 = vunpack.c.0.s8 %v2315
        %v2317 = vlaneseq
        %v2318 = vshrl.u32 %v2317, 7
        %v2319 = vsub.s32 %v2316, %v2318
        %v2320 = vrot.slane %v2304, %v2319
        %v2322 = vunpack.c.l.s4 1966171168
        %v2323 = vunpack.c.0.s8 %v2322
        %v2324 = vlaneseq
        %v2325 = vshrl.u32 %v2324, 7
        %v2326 = vsub.s32 %v2323, %v2325
        %v2327 = vrot.slane %v2311, %v2326
        %v2329 = vunpack.c.l.s4 1966171168
        %v2330 = vunpack.c.0.s8 %v2329
        %v2331 = vlaneseq
        %v2332 = vshrl.u32 %v2331, 7
        %v2333 = vsub.s32 %v2330, %v2332
        %v2334 = vrot.slane %v2312, %v2333
        %v2336 = vunpack.c.l.s4 1966171168
        %v2337 = vunpack.c.0.s8 %v2336
        %v2338 = vlaneseq
        %v2339 = vshrl.u32 %v2338, 7
        %v2340 = vsub.s32 %v2337, %v2339
        %v2341 = vrot.slane %v2313, %v2340
        %v2342 = vcombine.high %v2320, %v2320
        %v2343 = vcombine.high %v2327, %v2327
        %v2344 = vcombine.high %v2334, %v2334
        %v2345 = vcombine.high %v2341, %v2341
        %2354 = vst.msk [vmem:[%s204 + $0xb] sm:$0x1] %vm778, %v2320
        %2355 = vst.msk [vmem:[%s204 + $0x2b] sm:$0x1] %vm778, %v2334
        %2356 = vst.msk [vmem:[%s204 + $0x4b] sm:$0x1] %vm778, %v2342
        %2357 = vst.msk [vmem:[%s204 + $0x6b] sm:$0x1] %vm778, %v2344
        %2358 = vst.msk [vmem:[%s204 + $0x8b] sm:$0x1] %vm778, %v2327
        %2359 = vst.msk [vmem:[%s204 + $0xab] sm:$0x1] %vm778, %v2341
        %2360 = vst.msk [vmem:[%s204 + $0xcb] sm:$0x1] %vm778, %v2343
        %2361 = vst.msk [vmem:[%s204 + $0xeb] sm:$0x1] %vm778, %v2345
        %s2362 = sadd.s32 %s211, 7
        %p2363 = scmp.lt.s32.totalorder %s2362, 15
        %s2364 = scalar_select %p2363, %s2362, 15
        %s2365 = scalar_lea.vmem %s209, %s2364
        %v2366 = vld [vmem:[%s2365] sm:$0x1]
        %v2367 = vld [vmem:[%s2365 + $0x10] sm:$0x1]
        %v2368 = vld [vmem:[%s2365 + $0x20] sm:$0x1]
        %v2369 = vld [vmem:[%s2365 + $0x30] sm:$0x1]
        %v2374 = vrot.slane %v2367, 7
        %v2375 = vsel %vm234, %v2374, %v2366
        %v2376 = vrot.slane %v2368, 6
        %v2377 = vsel %vm237, %v2376, %v2375
        %v2378 = vrot.slane %v2369, 5
        %v2379 = vsel %vm240, %v2378, %v2377
        %v2380 = vsel %vm246, %v2379, 0
        %2382 = vmatprep.subr.mxu0 0.0
        %2383 = vmatpush1.msra.mxu0 %v2380
        %2384 = vmatprep.subr.mxu0 0.0
        %2385 = vmatpush1.msra.mxu0 0.0
        %2386 = vmatprep.subr.mxu0 0.0
        %2387 = vmatpush1.msra.mxu0 0.0
        %2388 = vmatprep.subr.mxu0 0.0
        %2389 = vmatpush1.msra.mxu0 0.0
        %2390 = vmatprep.subr.mxu0 0.0
        %2391 = vmatpush1.msra.mxu0 0.0
        %2392 = vmatprep.subr.mxu0 0.0
        %2393 = vmatpush1.msra.mxu0 0.0
        %2394 = vmatprep.subr.mxu0 0.0
        %2395 = vmatpush1.msra.mxu0 0.0
        %2396 = vmatprep.subr.mxu0 0.0
        %2397 = vmatpush1.msra.mxu0 0.0
        %2398 = vmatprep.subr.mxu0 0.0
        %2399 = vmatpush1.msra.mxu0 0.0
        %2400 = vmatprep.subr.mxu0 0.0
        %2401 = vmatpush1.msra.mxu0 0.0
        %2402 = vmatprep.subr.mxu0 0.0
        %2403 = vmatpush1.msra.mxu0 0.0
        %2404 = vmatprep.subr.mxu0 0.0
        %2405 = vmatpush1.msra.mxu0 0.0
        %2406 = vmatprep.subr.mxu0 0.0
        %2407 = vmatpush1.msra.mxu0 0.0
        %2408 = vmatprep.subr.mxu0 0.0
        %2409 = vmatpush1.msra.mxu0 0.0
        %2410 = vmatprep.subr.mxu0 0.0
        %2411 = vmatpush1.msra.mxu0 0.0
        %2412 = vmatprep.subr.mxu0 0.0
        %2413 = vmatpush1.msra.mxu0 0.0
        %2414 = vmatprep.subr.mxu0 0.0
        %2415 = vmatpush1.msra.mxu0 0.0
        %2416 = vmatprep.subr.mxu0 0.0
        %2417 = vmatpush1.msra.mxu0 0.0
        %2418 = vmatprep.subr.mxu0 0.0
        %2419 = vmatpush1.msra.mxu0 0.0
        %2420 = vmatprep.subr.mxu0 0.0
        %2421 = vmatpush1.msra.mxu0 0.0
        %2422 = vmatprep.subr.mxu0 0.0
        %2423 = vmatpush1.msra.mxu0 0.0
        %2424 = vmatprep.subr.mxu0 0.0
        %2425 = vmatpush1.msra.mxu0 0.0
        %2426 = vmatprep.subr.mxu0 0.0
        %2427 = vmatpush1.msra.mxu0 0.0
        %2428 = vmatprep.subr.mxu0 0.0
        %2429 = vmatpush1.msra.mxu0 0.0
        %2430 = vmatprep.subr.mxu0 0.0
        %2431 = vmatpush1.msra.mxu0 0.0
        %2432 = vmatprep.subr.mxu0 0.0
        %2433 = vmatpush1.msra.mxu0 0.0
        %2434 = vmatprep.subr.mxu0 0.0
        %2435 = vmatpush1.msra.mxu0 0.0
        %2436 = vmatprep.subr.mxu0 0.0
        %2437 = vmatpush1.msra.mxu0 0.0
        %2438 = vmatprep.subr.mxu0 0.0
        %2439 = vmatpush1.msra.mxu0 0.0
        %2440 = vmatprep.subr.mxu0 0.0
        %2441 = vmatpush1.msra.mxu0 0.0
        %2442 = vmatprep.subr.mxu0 0.0
        %2443 = vmatpush1.msra.mxu0 0.0
        %2444 = vmatprep.subr.mxu0 0.0
        %2445 = vmatpush1.msra.mxu0 0.0
        %2446 = vmatprep.mubr.f32.mxu0 0.0
        %2447 = vmatmul.mubr.f32.gmra.mrb[0].mxu0 %v244
        %v2448 = vpop.f32.mrb[0].mxu0
        %v2449 = vadd.f32 %v227, %v2448
        %v2450 = vpop.f32.mrb[0].mxu0
        %2451 = vdwg.mxu0
        %v2453 = vsel %vm319, %v2449, 0
        %2455 = vmatprep.subr.mxu0 0.0
        %2456 = vmatpush1.msra.mxu0 %v214
        %2457 = vmatprep.subr.mxu0 0.0
        %2458 = vmatpush1.msra.mxu0 %v215
        %2459 = vmatprep.subr.mxu0 0.0
        %2460 = vmatpush1.msra.mxu0 0.0
        %2461 = vmatprep.subr.mxu0 0.0
        %2462 = vmatpush1.msra.mxu0 0.0
        %2463 = vmatprep.subr.mxu0 0.0
        %2464 = vmatpush1.msra.mxu0 0.0
        %2465 = vmatprep.subr.mxu0 0.0
        %2466 = vmatpush1.msra.mxu0 0.0
        %2467 = vmatprep.subr.mxu0 0.0
        %2468 = vmatpush1.msra.mxu0 0.0
        %2469 = vmatprep.subr.mxu0 0.0
        %2470 = vmatpush1.msra.mxu0 0.0
        %2471 = vmatprep.subr.mxu0 0.0
        %2472 = vmatpush1.msra.mxu0 0.0
        %2473 = vmatprep.subr.mxu0 0.0
        %2474 = vmatpush1.msra.mxu0 0.0
        %2475 = vmatprep.subr.mxu0 0.0
        %2476 = vmatpush1.msra.mxu0 0.0
        %2477 = vmatprep.subr.mxu0 0.0
        %2478 = vmatpush1.msra.mxu0 0.0
        %2479 = vmatprep.subr.mxu0 0.0
        %2480 = vmatpush1.msra.mxu0 0.0
        %2481 = vmatprep.subr.mxu0 0.0
        %2482 = vmatpush1.msra.mxu0 0.0
        %2483 = vmatprep.subr.mxu0 0.0
        %2484 = vmatpush1.msra.mxu0 0.0
        %2485 = vmatprep.subr.mxu0 0.0
        %2486 = vmatpush1.msra.mxu0 0.0
        %2487 = vmatprep.subr.mxu0 0.0
        %2488 = vmatpush1.msra.mxu0 0.0
        %2489 = vmatprep.subr.mxu0 0.0
        %2490 = vmatpush1.msra.mxu0 0.0
        %2491 = vmatprep.subr.mxu0 0.0
        %2492 = vmatpush1.msra.mxu0 0.0
        %2493 = vmatprep.subr.mxu0 0.0
        %2494 = vmatpush1.msra.mxu0 0.0
        %2495 = vmatprep.subr.mxu0 0.0
        %2496 = vmatpush1.msra.mxu0 0.0
        %2497 = vmatprep.subr.mxu0 0.0
        %2498 = vmatpush1.msra.mxu0 0.0
        %2499 = vmatprep.subr.mxu0 0.0
        %2500 = vmatpush1.msra.mxu0 0.0
        %2501 = vmatprep.subr.mxu0 0.0
        %2502 = vmatpush1.msra.mxu0 0.0
        %2503 = vmatprep.subr.mxu0 0.0
        %2504 = vmatpush1.msra.mxu0 0.0
        %2505 = vmatprep.subr.mxu0 0.0
        %2506 = vmatpush1.msra.mxu0 0.0
        %2507 = vmatprep.subr.mxu0 0.0
        %2508 = vmatpush1.msra.mxu0 0.0
        %2509 = vmatprep.subr.mxu0 0.0
        %2510 = vmatpush1.msra.mxu0 0.0
        %2511 = vmatprep.subr.mxu0 0.0
        %2512 = vmatpush1.msra.mxu0 0.0
        %2513 = vmatprep.subr.mxu0 0.0
        %2514 = vmatpush1.msra.mxu0 0.0
        %2515 = vmatprep.subr.mxu0 0.0
        %2516 = vmatpush1.msra.mxu0 0.0
        %2517 = vmatprep.subr.mxu0 0.0
        %2518 = vmatpush1.msra.mxu0 0.0
        %2519 = vmatprep.mubr.f32.mxu0 0.0
        %2520 = vmatmul.mubr.f32.gmra.mrb[0].mxu0 %v2453
        %v2521 = vpop.f32.mrb[0].mxu0
        %v2522 = vadd.f32 0.0, %v2521
        %v2523 = vpop.f32.mrb[0].mxu0
        %2524 = vdwg.mxu0
        %v2525 = vmul.f32 %v2221, 0.75
        %v2526 = vadd.f32 %v2525, %v1992
        %v2527 = vmax.f32 %v2526, 0.0
        %v2529 = vcombine.high %v2527, %v2527
        %v2531 = vunpack.c.l.s4 1966171168
        %v2532 = vunpack.c.0.s8 %v2531
        %v2533 = vlaneseq
        %v2534 = vshrl.u32 %v2533, 7
        %v2535 = vsub.s32 %v2532, %v2534
        %v2536 = vrot.slane %v2527, %v2535
        %v2538 = vunpack.c.l.s4 1966171168
        %v2539 = vunpack.c.0.s8 %v2538
        %v2540 = vlaneseq
        %v2541 = vshrl.u32 %v2540, 7
        %v2542 = vsub.s32 %v2539, %v2541
        %v2543 = vrot.slane %v2529, %v2542
        %v2544 = vcombine.high %v2536, %v2536
        %v2545 = vcombine.high %v2543, %v2543
        %v2547 = vunpack.c.l.s4 1966171168
        %v2548 = vunpack.c.0.s8 %v2547
        %v2549 = vlaneseq
        %v2550 = vshrl.u32 %v2549, 7
        %v2551 = vsub.s32 %v2548, %v2550
        %v2552 = vrot.slane %v2536, %v2551
        %v2554 = vunpack.c.l.s4 1966171168
        %v2555 = vunpack.c.0.s8 %v2554
        %v2556 = vlaneseq
        %v2557 = vshrl.u32 %v2556, 7
        %v2558 = vsub.s32 %v2555, %v2557
        %v2559 = vrot.slane %v2543, %v2558
        %v2561 = vunpack.c.l.s4 1966171168
        %v2562 = vunpack.c.0.s8 %v2561
        %v2563 = vlaneseq
        %v2564 = vshrl.u32 %v2563, 7
        %v2565 = vsub.s32 %v2562, %v2564
        %v2566 = vrot.slane %v2544, %v2565
        %v2568 = vunpack.c.l.s4 1966171168
        %v2569 = vunpack.c.0.s8 %v2568
        %v2570 = vlaneseq
        %v2571 = vshrl.u32 %v2570, 7
        %v2572 = vsub.s32 %v2569, %v2571
        %v2573 = vrot.slane %v2545, %v2572
        %v2574 = vcombine.high %v2552, %v2552
        %v2575 = vcombine.high %v2559, %v2559
        %v2576 = vcombine.high %v2566, %v2566
        %v2577 = vcombine.high %v2573, %v2573
        %2586 = vst.msk [vmem:[%s204 + $0xc] sm:$0x1] %vm778, %v2552
        %2587 = vst.msk [vmem:[%s204 + $0x2c] sm:$0x1] %vm778, %v2566
        %2588 = vst.msk [vmem:[%s204 + $0x4c] sm:$0x1] %vm778, %v2574
        %2589 = vst.msk [vmem:[%s204 + $0x6c] sm:$0x1] %vm778, %v2576
        %2590 = vst.msk [vmem:[%s204 + $0x8c] sm:$0x1] %vm778, %v2559
        %2591 = vst.msk [vmem:[%s204 + $0xac] sm:$0x1] %vm778, %v2573
        %2592 = vst.msk [vmem:[%s204 + $0xcc] sm:$0x1] %vm778, %v2575
        %2593 = vst.msk [vmem:[%s204 + $0xec] sm:$0x1] %vm778, %v2577
        %v2594 = vmul.f32 %v2522, 0.25
        %v2595 = vadd.f32 %v2525, %v2594
        %v2596 = vmax.f32 %v2595, 0.0
        %v2598 = vcombine.high %v2596, %v2596
        %v2600 = vunpack.c.l.s4 1966171168
        %v2601 = vunpack.c.0.s8 %v2600
        %v2602 = vlaneseq
        %v2603 = vshrl.u32 %v2602, 7
        %v2604 = vsub.s32 %v2601, %v2603
        %v2605 = vrot.slane %v2596, %v2604
        %v2607 = vunpack.c.l.s4 1966171168
        %v2608 = vunpack.c.0.s8 %v2607
        %v2609 = vlaneseq
        %v2610 = vshrl.u32 %v2609, 7
        %v2611 = vsub.s32 %v2608, %v2610
        %v2612 = vrot.slane %v2598, %v2611
        %v2613 = vcombine.high %v2605, %v2605
        %v2614 = vcombine.high %v2612, %v2612
        %v2616 = vunpack.c.l.s4 1966171168
        %v2617 = vunpack.c.0.s8 %v2616
        %v2618 = vlaneseq
        %v2619 = vshrl.u32 %v2618, 7
        %v2620 = vsub.s32 %v2617, %v2619
        %v2621 = vrot.slane %v2605, %v2620
        %v2623 = vunpack.c.l.s4 1966171168
        %v2624 = vunpack.c.0.s8 %v2623
        %v2625 = vlaneseq
        %v2626 = vshrl.u32 %v2625, 7
        %v2627 = vsub.s32 %v2624, %v2626
        %v2628 = vrot.slane %v2612, %v2627
        %v2630 = vunpack.c.l.s4 1966171168
        %v2631 = vunpack.c.0.s8 %v2630
        %v2632 = vlaneseq
        %v2633 = vshrl.u32 %v2632, 7
        %v2634 = vsub.s32 %v2631, %v2633
        %v2635 = vrot.slane %v2613, %v2634
        %v2637 = vunpack.c.l.s4 1966171168
        %v2638 = vunpack.c.0.s8 %v2637
        %v2639 = vlaneseq
        %v2640 = vshrl.u32 %v2639, 7
        %v2641 = vsub.s32 %v2638, %v2640
        %v2642 = vrot.slane %v2614, %v2641
        %v2643 = vcombine.high %v2621, %v2621
        %v2644 = vcombine.high %v2628, %v2628
        %v2645 = vcombine.high %v2635, %v2635
        %v2646 = vcombine.high %v2642, %v2642
        %2655 = vst.msk [vmem:[%s204 + $0xd] sm:$0x1] %vm778, %v2621
        %2656 = vst.msk [vmem:[%s204 + $0x2d] sm:$0x1] %vm778, %v2635
        %2657 = vst.msk [vmem:[%s204 + $0x4d] sm:$0x1] %vm778, %v2643
        %2658 = vst.msk [vmem:[%s204 + $0x6d] sm:$0x1] %vm778, %v2645
        %2659 = vst.msk [vmem:[%s204 + $0x8d] sm:$0x1] %vm778, %v2628
        %2660 = vst.msk [vmem:[%s204 + $0xad] sm:$0x1] %vm778, %v2642
        %2661 = vst.msk [vmem:[%s204 + $0xcd] sm:$0x1] %vm778, %v2644
        %2662 = vst.msk [vmem:[%s204 + $0xed] sm:$0x1] %vm778, %v2646
        %s2663 = sadd.s32 %s211, 8
        %p2664 = scmp.lt.s32.totalorder %s2663, 15
        %s2665 = scalar_select %p2664, %s2663, 15
        %s2666 = scalar_lea.vmem %s209, %s2665
        %v2667 = vld [vmem:[%s2666] sm:$0x1]
        %v2668 = vld [vmem:[%s2666 + $0x10] sm:$0x1]
        %v2669 = vld [vmem:[%s2666 + $0x20] sm:$0x1]
        %v2670 = vld [vmem:[%s2666 + $0x30] sm:$0x1]
        %v2675 = vrot.slane %v2668, 7
        %v2676 = vsel %vm234, %v2675, %v2667
        %v2677 = vrot.slane %v2669, 6
        %v2678 = vsel %vm237, %v2677, %v2676
        %v2679 = vrot.slane %v2670, 5
        %v2680 = vsel %vm240, %v2679, %v2678
        %v2681 = vsel %vm246, %v2680, 0
        %2683 = vmatprep.subr.mxu0 0.0
        %2684 = vmatpush1.msra.mxu0 %v2681
        %2685 = vmatprep.subr.mxu0 0.0
        %2686 = vmatpush1.msra.mxu0 0.0
        %2687 = vmatprep.subr.mxu0 0.0
        %2688 = vmatpush1.msra.mxu0 0.0
        %2689 = vmatprep.subr.mxu0 0.0
        %2690 = vmatpush1.msra.mxu0 0.0
        %2691 = vmatprep.subr.mxu0 0.0
        %2692 = vmatpush1.msra.mxu0 0.0
        %2693 = vmatprep.subr.mxu0 0.0
        %2694 = vmatpush1.msra.mxu0 0.0
        %2695 = vmatprep.subr.mxu0 0.0
        %2696 = vmatpush1.msra.mxu0 0.0
        %2697 = vmatprep.subr.mxu0 0.0
        %2698 = vmatpush1.msra.mxu0 0.0
        %2699 = vmatprep.subr.mxu0 0.0
        %2700 = vmatpush1.msra.mxu0 0.0
        %2701 = vmatprep.subr.mxu0 0.0
        %2702 = vmatpush1.msra.mxu0 0.0
        %2703 = vmatprep.subr.mxu0 0.0
        %2704 = vmatpush1.msra.mxu0 0.0
        %2705 = vmatprep.subr.mxu0 0.0
        %2706 = vmatpush1.msra.mxu0 0.0
        %2707 = vmatprep.subr.mxu0 0.0
        %2708 = vmatpush1.msra.mxu0 0.0
        %2709 = vmatprep.subr.mxu0 0.0
        %2710 = vmatpush1.msra.mxu0 0.0
        %2711 = vmatprep.subr.mxu0 0.0
        %2712 = vmatpush1.msra.mxu0 0.0
        %2713 = vmatprep.subr.mxu0 0.0
        %2714 = vmatpush1.msra.mxu0 0.0
        %2715 = vmatprep.subr.mxu0 0.0
        %2716 = vmatpush1.msra.mxu0 0.0
        %2717 = vmatprep.subr.mxu0 0.0
        %2718 = vmatpush1.msra.mxu0 0.0
        %2719 = vmatprep.subr.mxu0 0.0
        %2720 = vmatpush1.msra.mxu0 0.0
        %2721 = vmatprep.subr.mxu0 0.0
        %2722 = vmatpush1.msra.mxu0 0.0
        %2723 = vmatprep.subr.mxu0 0.0
        %2724 = vmatpush1.msra.mxu0 0.0
        %2725 = vmatprep.subr.mxu0 0.0
        %2726 = vmatpush1.msra.mxu0 0.0
        %2727 = vmatprep.subr.mxu0 0.0
        %2728 = vmatpush1.msra.mxu0 0.0
        %2729 = vmatprep.subr.mxu0 0.0
        %2730 = vmatpush1.msra.mxu0 0.0
        %2731 = vmatprep.subr.mxu0 0.0
        %2732 = vmatpush1.msra.mxu0 0.0
        %2733 = vmatprep.subr.mxu0 0.0
        %2734 = vmatpush1.msra.mxu0 0.0
        %2735 = vmatprep.subr.mxu0 0.0
        %2736 = vmatpush1.msra.mxu0 0.0
        %2737 = vmatprep.subr.mxu0 0.0
        %2738 = vmatpush1.msra.mxu0 0.0
        %2739 = vmatprep.subr.mxu0 0.0
        %2740 = vmatpush1.msra.mxu0 0.0
        %2741 = vmatprep.subr.mxu0 0.0
        %2742 = vmatpush1.msra.mxu0 0.0
        %2743 = vmatprep.subr.mxu0 0.0
        %2744 = vmatpush1.msra.mxu0 0.0
        %2745 = vmatprep.subr.mxu0 0.0
        %2746 = vmatpush1.msra.mxu0 0.0
        %2747 = vmatprep.mubr.f32.mxu0 0.0
        %2748 = vmatmul.mubr.f32.gmra.mrb[0].mxu0 %v244
        %v2749 = vpop.f32.mrb[0].mxu0
        %v2750 = vadd.f32 %v227, %v2749
        %v2751 = vpop.f32.mrb[0].mxu0
        %2752 = vdwg.mxu0
        %v2754 = vsel %vm319, %v2750, 0
        %2756 = vmatprep.subr.mxu0 0.0
        %2757 = vmatpush1.msra.mxu0 %v214
        %2758 = vmatprep.subr.mxu0 0.0
        %2759 = vmatpush1.msra.mxu0 %v215
        %2760 = vmatprep.subr.mxu0 0.0
        %2761 = vmatpush1.msra.mxu0 0.0
        %2762 = vmatprep.subr.mxu0 0.0
        %2763 = vmatpush1.msra.mxu0 0.0
        %2764 = vmatprep.subr.mxu0 0.0
        %2765 = vmatpush1.msra.mxu0 0.0
        %2766 = vmatprep.subr.mxu0 0.0
        %2767 = vmatpush1.msra.mxu0 0.0
        %2768 = vmatprep.subr.mxu0 0.0
        %2769 = vmatpush1.msra.mxu0 0.0
        %2770 = vmatprep.subr.mxu0 0.0
        %2771 = vmatpush1.msra.mxu0 0.0
        %2772 = vmatprep.subr.mxu0 0.0
        %2773 = vmatpush1.msra.mxu0 0.0
        %2774 = vmatprep.subr.mxu0 0.0
        %2775 = vmatpush1.msra.mxu0 0.0
        %2776 = vmatprep.subr.mxu0 0.0
        %2777 = vmatpush1.msra.mxu0 0.0
        %2778 = vmatprep.subr.mxu0 0.0
        %2779 = vmatpush1.msra.mxu0 0.0
        %2780 = vmatprep.subr.mxu0 0.0
        %2781 = vmatpush1.msra.mxu0 0.0
        %2782 = vmatprep.subr.mxu0 0.0
        %2783 = vmatpush1.msra.mxu0 0.0
        %2784 = vmatprep.subr.mxu0 0.0
        %2785 = vmatpush1.msra.mxu0 0.0
        %2786 = vmatprep.subr.mxu0 0.0
        %2787 = vmatpush1.msra.mxu0 0.0
        %2788 = vmatprep.subr.mxu0 0.0
        %2789 = vmatpush1.msra.mxu0 0.0
        %2790 = vmatprep.subr.mxu0 0.0
        %2791 = vmatpush1.msra.mxu0 0.0
        %2792 = vmatprep.subr.mxu0 0.0
        %2793 = vmatpush1.msra.mxu0 0.0
        %2794 = vmatprep.subr.mxu0 0.0
        %2795 = vmatpush1.msra.mxu0 0.0
        %2796 = vmatprep.subr.mxu0 0.0
        %2797 = vmatpush1.msra.mxu0 0.0
        %2798 = vmatprep.subr.mxu0 0.0
        %2799 = vmatpush1.msra.mxu0 0.0
        %2800 = vmatprep.subr.mxu0 0.0
        %2801 = vmatpush1.msra.mxu0 0.0
        %2802 = vmatprep.subr.mxu0 0.0
        %2803 = vmatpush1.msra.mxu0 0.0
        %2804 = vmatprep.subr.mxu0 0.0
        %2805 = vmatpush1.msra.mxu0 0.0
        %2806 = vmatprep.subr.mxu0 0.0
        %2807 = vmatpush1.msra.mxu0 0.0
        %2808 = vmatprep.subr.mxu0 0.0
        %2809 = vmatpush1.msra.mxu0 0.0
        %2810 = vmatprep.subr.mxu0 0.0
        %2811 = vmatpush1.msra.mxu0 0.0
        %2812 = vmatprep.subr.mxu0 0.0
        %2813 = vmatpush1.msra.mxu0 0.0
        %2814 = vmatprep.subr.mxu0 0.0
        %2815 = vmatpush1.msra.mxu0 0.0
        %2816 = vmatprep.subr.mxu0 0.0
        %2817 = vmatpush1.msra.mxu0 0.0
        %2818 = vmatprep.subr.mxu0 0.0
        %2819 = vmatpush1.msra.mxu0 0.0
        %2820 = vmatprep.mubr.f32.mxu0 0.0
        %2821 = vmatmul.mubr.f32.gmra.mrb[0].mxu0 %v2754
        %v2822 = vpop.f32.mrb[0].mxu0
        %v2823 = vadd.f32 0.0, %v2822
        %v2824 = vpop.f32.mrb[0].mxu0
        %2825 = vdwg.mxu0
        %v2826 = vmul.f32 %v2522, 0.75
        %v2827 = vadd.f32 %v2826, %v2293
        %v2828 = vmax.f32 %v2827, 0.0
        %v2830 = vcombine.high %v2828, %v2828
        %v2832 = vunpack.c.l.s4 1966171168
        %v2833 = vunpack.c.0.s8 %v2832
        %v2834 = vlaneseq
        %v2835 = vshrl.u32 %v2834, 7
        %v2836 = vsub.s32 %v2833, %v2835
        %v2837 = vrot.slane %v2828, %v2836
        %v2839 = vunpack.c.l.s4 1966171168
        %v2840 = vunpack.c.0.s8 %v2839
        %v2841 = vlaneseq
        %v2842 = vshrl.u32 %v2841, 7
        %v2843 = vsub.s32 %v2840, %v2842
        %v2844 = vrot.slane %v2830, %v2843
        %v2845 = vcombine.high %v2837, %v2837
        %v2846 = vcombine.high %v2844, %v2844
        %v2848 = vunpack.c.l.s4 1966171168
        %v2849 = vunpack.c.0.s8 %v2848
        %v2850 = vlaneseq
        %v2851 = vshrl.u32 %v2850, 7
        %v2852 = vsub.s32 %v2849, %v2851
        %v2853 = vrot.slane %v2837, %v2852
        %v2855 = vunpack.c.l.s4 1966171168
        %v2856 = vunpack.c.0.s8 %v2855
        %v2857 = vlaneseq
        %v2858 = vshrl.u32 %v2857, 7
        %v2859 = vsub.s32 %v2856, %v2858
        %v2860 = vrot.slane %v2844, %v2859
        %v2862 = vunpack.c.l.s4 1966171168
        %v2863 = vunpack.c.0.s8 %v2862
        %v2864 = vlaneseq
        %v2865 = vshrl.u32 %v2864, 7
        %v2866 = vsub.s32 %v2863, %v2865
        %v2867 = vrot.slane %v2845, %v2866
        %v2869 = vunpack.c.l.s4 1966171168
        %v2870 = vunpack.c.0.s8 %v2869
        %v2871 = vlaneseq
        %v2872 = vshrl.u32 %v2871, 7
        %v2873 = vsub.s32 %v2870, %v2872
        %v2874 = vrot.slane %v2846, %v2873
        %v2875 = vcombine.high %v2853, %v2853
        %v2876 = vcombine.high %v2860, %v2860
        %v2877 = vcombine.high %v2867, %v2867
        %v2878 = vcombine.high %v2874, %v2874
        %2887 = vst.msk [vmem:[%s204 + $0xe] sm:$0x1] %vm778, %v2853
        %2888 = vst.msk [vmem:[%s204 + $0x2e] sm:$0x1] %vm778, %v2867
        %2889 = vst.msk [vmem:[%s204 + $0x4e] sm:$0x1] %vm778, %v2875
        %2890 = vst.msk [vmem:[%s204 + $0x6e] sm:$0x1] %vm778, %v2877
        %2891 = vst.msk [vmem:[%s204 + $0x8e] sm:$0x1] %vm778, %v2860
        %2892 = vst.msk [vmem:[%s204 + $0xae] sm:$0x1] %vm778, %v2874
        %2893 = vst.msk [vmem:[%s204 + $0xce] sm:$0x1] %vm778, %v2876
        %2894 = vst.msk [vmem:[%s204 + $0xee] sm:$0x1] %vm778, %v2878
        %v2895 = vmul.f32 %v2823, 0.25
        %v2896 = vadd.f32 %v2826, %v2895
        %v2897 = vmax.f32 %v2896, 0.0
        %v2899 = vcombine.high %v2897, %v2897
        %v2901 = vunpack.c.l.s4 1966171168
        %v2902 = vunpack.c.0.s8 %v2901
        %v2903 = vlaneseq
        %v2904 = vshrl.u32 %v2903, 7
        %v2905 = vsub.s32 %v2902, %v2904
        %v2906 = vrot.slane %v2897, %v2905
        %v2908 = vunpack.c.l.s4 1966171168
        %v2909 = vunpack.c.0.s8 %v2908
        %v2910 = vlaneseq
        %v2911 = vshrl.u32 %v2910, 7
        %v2912 = vsub.s32 %v2909, %v2911
        %v2913 = vrot.slane %v2899, %v2912
        %v2914 = vcombine.high %v2906, %v2906
        %v2915 = vcombine.high %v2913, %v2913
        %v2917 = vunpack.c.l.s4 1966171168
        %v2918 = vunpack.c.0.s8 %v2917
        %v2919 = vlaneseq
        %v2920 = vshrl.u32 %v2919, 7
        %v2921 = vsub.s32 %v2918, %v2920
        %v2922 = vrot.slane %v2906, %v2921
        %v2924 = vunpack.c.l.s4 1966171168
        %v2925 = vunpack.c.0.s8 %v2924
        %v2926 = vlaneseq
        %v2927 = vshrl.u32 %v2926, 7
        %v2928 = vsub.s32 %v2925, %v2927
        %v2929 = vrot.slane %v2913, %v2928
        %v2931 = vunpack.c.l.s4 1966171168
        %v2932 = vunpack.c.0.s8 %v2931
        %v2933 = vlaneseq
        %v2934 = vshrl.u32 %v2933, 7
        %v2935 = vsub.s32 %v2932, %v2934
        %v2936 = vrot.slane %v2914, %v2935
        %v2938 = vunpack.c.l.s4 1966171168
        %v2939 = vunpack.c.0.s8 %v2938
        %v2940 = vlaneseq
        %v2941 = vshrl.u32 %v2940, 7
        %v2942 = vsub.s32 %v2939, %v2941
        %v2943 = vrot.slane %v2915, %v2942
        %v2944 = vcombine.high %v2922, %v2922
        %v2945 = vcombine.high %v2929, %v2929
        %v2946 = vcombine.high %v2936, %v2936
        %v2947 = vcombine.high %v2943, %v2943
        %2956 = vst.msk [vmem:[%s204 + $0xf] sm:$0x1] %vm778, %v2922
        %2957 = vst.msk [vmem:[%s204 + $0x2f] sm:$0x1] %vm778, %v2936
        %2958 = vst.msk [vmem:[%s204 + $0x4f] sm:$0x1] %vm778, %v2944
        %2959 = vst.msk [vmem:[%s204 + $0x6f] sm:$0x1] %vm778, %v2946
        %2960 = vst.msk [vmem:[%s204 + $0x8f] sm:$0x1] %vm778, %v2929
        %2961 = vst.msk [vmem:[%s204 + $0xaf] sm:$0x1] %vm778, %v2943
        %2962 = vst.msk [vmem:[%s204 + $0xcf] sm:$0x1] %vm778, %v2945
        %2963 = vst.msk [vmem:[%s204 + $0xef] sm:$0x1] %vm778, %v2947
        %s2964 = sadd.s32 %s211, 9
        %p2965 = scmp.lt.s32.totalorder %s2964, 15
        %s2966 = scalar_select %p2965, %s2964, 15
        %s2967 = scalar_lea.vmem %s209, %s2966
        %v2968 = vld [vmem:[%s2967] sm:$0x1]
        %v2969 = vld [vmem:[%s2967 + $0x10] sm:$0x1]
        %v2970 = vld [vmem:[%s2967 + $0x20] sm:$0x1]
        %v2971 = vld [vmem:[%s2967 + $0x30] sm:$0x1]
        %v2976 = vrot.slane %v2969, 7
        %v2977 = vsel %vm234, %v2976, %v2968
        %v2978 = vrot.slane %v2970, 6
        %v2979 = vsel %vm237, %v2978, %v2977
        %v2980 = vrot.slane %v2971, 5
        %v2981 = vsel %vm240, %v2980, %v2979
        %v2982 = vsel %vm246, %v2981, 0
        %2984 = vmatprep.subr.mxu0 0.0
        %2985 = vmatpush1.msra.mxu0 %v2982
        %2986 = vmatprep.subr.mxu0 0.0
        %2987 = vmatpush1.msra.mxu0 0.0
        %2988 = vmatprep.subr.mxu0 0.0
        %2989 = vmatpush1.msra.mxu0 0.0
        %2990 = vmatprep.subr.mxu0 0.0
        %2991 = vmatpush1.msra.mxu0 0.0
        %2992 = vmatprep.subr.mxu0 0.0
        %2993 = vmatpush1.msra.mxu0 0.0
        %2994 = vmatprep.subr.mxu0 0.0
        %2995 = vmatpush1.msra.mxu0 0.0
        %2996 = vmatprep.subr.mxu0 0.0
        %2997 = vmatpush1.msra.mxu0 0.0
        %2998 = vmatprep.subr.mxu0 0.0
        %2999 = vmatpush1.msra.mxu0 0.0
        %3000 = vmatprep.subr.mxu0 0.0
        %3001 = vmatpush1.msra.mxu0 0.0
        %3002 = vmatprep.subr.mxu0 0.0
        %3003 = vmatpush1.msra.mxu0 0.0
        %3004 = vmatprep.subr.mxu0 0.0
        %3005 = vmatpush1.msra.mxu0 0.0
        %3006 = vmatprep.subr.mxu0 0.0
        %3007 = vmatpush1.msra.mxu0 0.0
        %3008 = vmatprep.subr.mxu0 0.0
        %3009 = vmatpush1.msra.mxu0 0.0
        %3010 = vmatprep.subr.mxu0 0.0
        %3011 = vmatpush1.msra.mxu0 0.0
        %3012 = vmatprep.subr.mxu0 0.0
        %3013 = vmatpush1.msra.mxu0 0.0
        %3014 = vmatprep.subr.mxu0 0.0
        %3015 = vmatpush1.msra.mxu0 0.0
        %3016 = vmatprep.subr.mxu0 0.0
        %3017 = vmatpush1.msra.mxu0 0.0
        %3018 = vmatprep.subr.mxu0 0.0
        %3019 = vmatpush1.msra.mxu0 0.0
        %3020 = vmatprep.subr.mxu0 0.0
        %3021 = vmatpush1.msra.mxu0 0.0
        %3022 = vmatprep.subr.mxu0 0.0
        %3023 = vmatpush1.msra.mxu0 0.0
        %3024 = vmatprep.subr.mxu0 0.0
        %3025 = vmatpush1.msra.mxu0 0.0
        %3026 = vmatprep.subr.mxu0 0.0
        %3027 = vmatpush1.msra.mxu0 0.0
        %3028 = vmatprep.subr.mxu0 0.0
        %3029 = vmatpush1.msra.mxu0 0.0
        %3030 = vmatprep.subr.mxu0 0.0
        %3031 = vmatpush1.msra.mxu0 0.0
        %3032 = vmatprep.subr.mxu0 0.0
        %3033 = vmatpush1.msra.mxu0 0.0
        %3034 = vmatprep.subr.mxu0 0.0
        %3035 = vmatpush1.msra.mxu0 0.0
        %3036 = vmatprep.subr.mxu0 0.0
        %3037 = vmatpush1.msra.mxu0 0.0
        %3038 = vmatprep.subr.mxu0 0.0
        %3039 = vmatpush1.msra.mxu0 0.0
        %3040 = vmatprep.subr.mxu0 0.0
        %3041 = vmatpush1.msra.mxu0 0.0
        %3042 = vmatprep.subr.mxu0 0.0
        %3043 = vmatpush1.msra.mxu0 0.0
        %3044 = vmatprep.subr.mxu0 0.0
        %3045 = vmatpush1.msra.mxu0 0.0
        %3046 = vmatprep.subr.mxu0 0.0
        %3047 = vmatpush1.msra.mxu0 0.0
        %3048 = vmatprep.mubr.f32.mxu0 0.0
        %3049 = vmatmul.mubr.f32.gmra.mrb[0].mxu0 %v244
        %v3050 = vpop.f32.mrb[0].mxu0
        %v3051 = vadd.f32 %v227, %v3050
        %v3052 = vpop.f32.mrb[0].mxu0
        %3053 = vdwg.mxu0
        %v3055 = vsel %vm319, %v3051, 0
        %3057 = vmatprep.subr.mxu0 0.0
        %3058 = vmatpush1.msra.mxu0 %v214
        %3059 = vmatprep.subr.mxu0 0.0
        %3060 = vmatpush1.msra.mxu0 %v215
        %3061 = vmatprep.subr.mxu0 0.0
        %3062 = vmatpush1.msra.mxu0 0.0
        %3063 = vmatprep.subr.mxu0 0.0
        %3064 = vmatpush1.msra.mxu0 0.0
        %3065 = vmatprep.subr.mxu0 0.0
        %3066 = vmatpush1.msra.mxu0 0.0
        %3067 = vmatprep.subr.mxu0 0.0
        %3068 = vmatpush1.msra.mxu0 0.0
        %3069 = vmatprep.subr.mxu0 0.0
        %3070 = vmatpush1.msra.mxu0 0.0
        %3071 = vmatprep.subr.mxu0 0.0
        %3072 = vmatpush1.msra.mxu0 0.0
        %3073 = vmatprep.subr.mxu0 0.0
        %3074 = vmatpush1.msra.mxu0 0.0
        %3075 = vmatprep.subr.mxu0 0.0
        %3076 = vmatpush1.msra.mxu0 0.0
        %3077 = vmatprep.subr.mxu0 0.0
        %3078 = vmatpush1.msra.mxu0 0.0
        %3079 = vmatprep.subr.mxu0 0.0
        %3080 = vmatpush1.msra.mxu0 0.0
        %3081 = vmatprep.subr.mxu0 0.0
        %3082 = vmatpush1.msra.mxu0 0.0
        %3083 = vmatprep.subr.mxu0 0.0
        %3084 = vmatpush1.msra.mxu0 0.0
        %3085 = vmatprep.subr.mxu0 0.0
        %3086 = vmatpush1.msra.mxu0 0.0
        %3087 = vmatprep.subr.mxu0 0.0
        %3088 = vmatpush1.msra.mxu0 0.0
        %3089 = vmatprep.subr.mxu0 0.0
        %3090 = vmatpush1.msra.mxu0 0.0
        %3091 = vmatprep.subr.mxu0 0.0
        %3092 = vmatpush1.msra.mxu0 0.0
        %3093 = vmatprep.subr.mxu0 0.0
        %3094 = vmatpush1.msra.mxu0 0.0
        %3095 = vmatprep.subr.mxu0 0.0
        %3096 = vmatpush1.msra.mxu0 0.0
        %3097 = vmatprep.subr.mxu0 0.0
        %3098 = vmatpush1.msra.mxu0 0.0
        %3099 = vmatprep.subr.mxu0 0.0
        %3100 = vmatpush1.msra.mxu0 0.0
        %3101 = vmatprep.subr.mxu0 0.0
        %3102 = vmatpush1.msra.mxu0 0.0
        %3103 = vmatprep.subr.mxu0 0.0
        %3104 = vmatpush1.msra.mxu0 0.0
        %3105 = vmatprep.subr.mxu0 0.0
        %3106 = vmatpush1.msra.mxu0 0.0
        %3107 = vmatprep.subr.mxu0 0.0
        %3108 = vmatpush1.msra.mxu0 0.0
        %3109 = vmatprep.subr.mxu0 0.0
        %3110 = vmatpush1.msra.mxu0 0.0
        %3111 = vmatprep.subr.mxu0 0.0
        %3112 = vmatpush1.msra.mxu0 0.0
        %3113 = vmatprep.subr.mxu0 0.0
        %3114 = vmatpush1.msra.mxu0 0.0
        %3115 = vmatprep.subr.mxu0 0.0
        %3116 = vmatpush1.msra.mxu0 0.0
        %3117 = vmatprep.subr.mxu0 0.0
        %3118 = vmatpush1.msra.mxu0 0.0
        %3119 = vmatprep.subr.mxu0 0.0
        %3120 = vmatpush1.msra.mxu0 0.0
        %3121 = vmatprep.mubr.f32.mxu0 0.0
        %3122 = vmatmul.mubr.f32.gmra.mrb[0].mxu0 %v3055
        %v3123 = vpop.f32.mrb[0].mxu0
        %v3124 = vadd.f32 0.0, %v3123
        %v3125 = vpop.f32.mrb[0].mxu0
        %3126 = vdwg.mxu0
        %v3127 = vmul.f32 %v2823, 0.75
        %v3128 = vadd.f32 %v3127, %v2594
        %v3129 = vmax.f32 %v3128, 0.0
        %v3131 = vcombine.high %v3129, %v3129
        %v3133 = vunpack.c.l.s4 1966171168
        %v3134 = vunpack.c.0.s8 %v3133
        %v3135 = vlaneseq
        %v3136 = vshrl.u32 %v3135, 7
        %v3137 = vsub.s32 %v3134, %v3136
        %v3138 = vrot.slane %v3129, %v3137
        %v3140 = vunpack.c.l.s4 1966171168
        %v3141 = vunpack.c.0.s8 %v3140
        %v3142 = vlaneseq
        %v3143 = vshrl.u32 %v3142, 7
        %v3144 = vsub.s32 %v3141, %v3143
        %v3145 = vrot.slane %v3131, %v3144
        %v3146 = vcombine.high %v3138, %v3138
        %v3147 = vcombine.high %v3145, %v3145
        %v3149 = vunpack.c.l.s4 1966171168
        %v3150 = vunpack.c.0.s8 %v3149
        %v3151 = vlaneseq
        %v3152 = vshrl.u32 %v3151, 7
        %v3153 = vsub.s32 %v3150, %v3152
        %v3154 = vrot.slane %v3138, %v3153
        %v3156 = vunpack.c.l.s4 1966171168
        %v3157 = vunpack.c.0.s8 %v3156
        %v3158 = vlaneseq
        %v3159 = vshrl.u32 %v3158, 7
        %v3160 = vsub.s32 %v3157, %v3159
        %v3161 = vrot.slane %v3145, %v3160
        %v3163 = vunpack.c.l.s4 1966171168
        %v3164 = vunpack.c.0.s8 %v3163
        %v3165 = vlaneseq
        %v3166 = vshrl.u32 %v3165, 7
        %v3167 = vsub.s32 %v3164, %v3166
        %v3168 = vrot.slane %v3146, %v3167
        %v3170 = vunpack.c.l.s4 1966171168
        %v3171 = vunpack.c.0.s8 %v3170
        %v3172 = vlaneseq
        %v3173 = vshrl.u32 %v3172, 7
        %v3174 = vsub.s32 %v3171, %v3173
        %v3175 = vrot.slane %v3147, %v3174
        %v3176 = vcombine.high %v3154, %v3154
        %v3177 = vcombine.high %v3161, %v3161
        %v3178 = vcombine.high %v3168, %v3168
        %v3179 = vcombine.high %v3175, %v3175
        %3188 = vst.msk [vmem:[%s204 + $0x10] sm:$0x1] %vm778, %v3154
        %3189 = vst.msk [vmem:[%s204 + $0x30] sm:$0x1] %vm778, %v3168
        %3190 = vst.msk [vmem:[%s204 + $0x50] sm:$0x1] %vm778, %v3176
        %3191 = vst.msk [vmem:[%s204 + $0x70] sm:$0x1] %vm778, %v3178
        %3192 = vst.msk [vmem:[%s204 + $0x90] sm:$0x1] %vm778, %v3161
        %3193 = vst.msk [vmem:[%s204 + $0xb0] sm:$0x1] %vm778, %v3175
        %3194 = vst.msk [vmem:[%s204 + $0xd0] sm:$0x1] %vm778, %v3177
        %3195 = vst.msk [vmem:[%s204 + $0xf0] sm:$0x1] %vm778, %v3179
        %v3196 = vmul.f32 %v3124, 0.25
        %v3197 = vadd.f32 %v3127, %v3196
        %v3198 = vmax.f32 %v3197, 0.0
        %v3200 = vcombine.high %v3198, %v3198
        %v3202 = vunpack.c.l.s4 1966171168
        %v3203 = vunpack.c.0.s8 %v3202
        %v3204 = vlaneseq
        %v3205 = vshrl.u32 %v3204, 7
        %v3206 = vsub.s32 %v3203, %v3205
        %v3207 = vrot.slane %v3198, %v3206
        %v3209 = vunpack.c.l.s4 1966171168
        %v3210 = vunpack.c.0.s8 %v3209
        %v3211 = vlaneseq
        %v3212 = vshrl.u32 %v3211, 7
        %v3213 = vsub.s32 %v3210, %v3212
        %v3214 = vrot.slane %v3200, %v3213
        %v3215 = vcombine.high %v3207, %v3207
        %v3216 = vcombine.high %v3214, %v3214
        %v3218 = vunpack.c.l.s4 1966171168
        %v3219 = vunpack.c.0.s8 %v3218
        %v3220 = vlaneseq
        %v3221 = vshrl.u32 %v3220, 7
        %v3222 = vsub.s32 %v3219, %v3221
        %v3223 = vrot.slane %v3207, %v3222
        %v3225 = vunpack.c.l.s4 1966171168
        %v3226 = vunpack.c.0.s8 %v3225
        %v3227 = vlaneseq
        %v3228 = vshrl.u32 %v3227, 7
        %v3229 = vsub.s32 %v3226, %v3228
        %v3230 = vrot.slane %v3214, %v3229
        %v3232 = vunpack.c.l.s4 1966171168
        %v3233 = vunpack.c.0.s8 %v3232
        %v3234 = vlaneseq
        %v3235 = vshrl.u32 %v3234, 7
        %v3236 = vsub.s32 %v3233, %v3235
        %v3237 = vrot.slane %v3215, %v3236
        %v3239 = vunpack.c.l.s4 1966171168
        %v3240 = vunpack.c.0.s8 %v3239
        %v3241 = vlaneseq
        %v3242 = vshrl.u32 %v3241, 7
        %v3243 = vsub.s32 %v3240, %v3242
        %v3244 = vrot.slane %v3216, %v3243
        %v3245 = vcombine.high %v3223, %v3223
        %v3246 = vcombine.high %v3230, %v3230
        %v3247 = vcombine.high %v3237, %v3237
        %v3248 = vcombine.high %v3244, %v3244
        %3257 = vst.msk [vmem:[%s204 + $0x11] sm:$0x1] %vm778, %v3223
        %3258 = vst.msk [vmem:[%s204 + $0x31] sm:$0x1] %vm778, %v3237
        %3259 = vst.msk [vmem:[%s204 + $0x51] sm:$0x1] %vm778, %v3245
        %3260 = vst.msk [vmem:[%s204 + $0x71] sm:$0x1] %vm778, %v3247
        %3261 = vst.msk [vmem:[%s204 + $0x91] sm:$0x1] %vm778, %v3230
        %3262 = vst.msk [vmem:[%s204 + $0xb1] sm:$0x1] %vm778, %v3244
        %3263 = vst.msk [vmem:[%s204 + $0xd1] sm:$0x1] %vm778, %v3246
        %3264 = vst.msk [vmem:[%s204 + $0xf1] sm:$0x1] %vm778, %v3248
        %s3265 = sadd.s32 %s211, 10
        %p3266 = scmp.lt.s32.totalorder %s3265, 15
        %s3267 = scalar_select %p3266, %s3265, 15
        %s3268 = scalar_lea.vmem %s209, %s3267
        %v3269 = vld [vmem:[%s3268] sm:$0x1]
        %v3270 = vld [vmem:[%s3268 + $0x10] sm:$0x1]
        %v3271 = vld [vmem:[%s3268 + $0x20] sm:$0x1]
        %v3272 = vld [vmem:[%s3268 + $0x30] sm:$0x1]
        %v3277 = vrot.slane %v3270, 7
        %v3278 = vsel %vm234, %v3277, %v3269
        %v3279 = vrot.slane %v3271, 6
        %v3280 = vsel %vm237, %v3279, %v3278
        %v3281 = vrot.slane %v3272, 5
        %v3282 = vsel %vm240, %v3281, %v3280
        %v3283 = vsel %vm246, %v3282, 0
        %3285 = vmatprep.subr.mxu0 0.0
        %3286 = vmatpush1.msra.mxu0 %v3283
        %3287 = vmatprep.subr.mxu0 0.0
        %3288 = vmatpush1.msra.mxu0 0.0
        %3289 = vmatprep.subr.mxu0 0.0
        %3290 = vmatpush1.msra.mxu0 0.0
        %3291 = vmatprep.subr.mxu0 0.0
        %3292 = vmatpush1.msra.mxu0 0.0
        %3293 = vmatprep.subr.mxu0 0.0
        %3294 = vmatpush1.msra.mxu0 0.0
        %3295 = vmatprep.subr.mxu0 0.0
        %3296 = vmatpush1.msra.mxu0 0.0
        %3297 = vmatprep.subr.mxu0 0.0
        %3298 = vmatpush1.msra.mxu0 0.0
        %3299 = vmatprep.subr.mxu0 0.0
        %3300 = vmatpush1.msra.mxu0 0.0
        %3301 = vmatprep.subr.mxu0 0.0
        %3302 = vmatpush1.msra.mxu0 0.0
        %3303 = vmatprep.subr.mxu0 0.0
        %3304 = vmatpush1.msra.mxu0 0.0
        %3305 = vmatprep.subr.mxu0 0.0
        %3306 = vmatpush1.msra.mxu0 0.0
        %3307 = vmatprep.subr.mxu0 0.0
        %3308 = vmatpush1.msra.mxu0 0.0
        %3309 = vmatprep.subr.mxu0 0.0
        %3310 = vmatpush1.msra.mxu0 0.0
        %3311 = vmatprep.subr.mxu0 0.0
        %3312 = vmatpush1.msra.mxu0 0.0
        %3313 = vmatprep.subr.mxu0 0.0
        %3314 = vmatpush1.msra.mxu0 0.0
        %3315 = vmatprep.subr.mxu0 0.0
        %3316 = vmatpush1.msra.mxu0 0.0
        %3317 = vmatprep.subr.mxu0 0.0
        %3318 = vmatpush1.msra.mxu0 0.0
        %3319 = vmatprep.subr.mxu0 0.0
        %3320 = vmatpush1.msra.mxu0 0.0
        %3321 = vmatprep.subr.mxu0 0.0
        %3322 = vmatpush1.msra.mxu0 0.0
        %3323 = vmatprep.subr.mxu0 0.0
        %3324 = vmatpush1.msra.mxu0 0.0
        %3325 = vmatprep.subr.mxu0 0.0
        %3326 = vmatpush1.msra.mxu0 0.0
        %3327 = vmatprep.subr.mxu0 0.0
        %3328 = vmatpush1.msra.mxu0 0.0
        %3329 = vmatprep.subr.mxu0 0.0
        %3330 = vmatpush1.msra.mxu0 0.0
        %3331 = vmatprep.subr.mxu0 0.0
        %3332 = vmatpush1.msra.mxu0 0.0
        %3333 = vmatprep.subr.mxu0 0.0
        %3334 = vmatpush1.msra.mxu0 0.0
        %3335 = vmatprep.subr.mxu0 0.0
        %3336 = vmatpush1.msra.mxu0 0.0
        %3337 = vmatprep.subr.mxu0 0.0
        %3338 = vmatpush1.msra.mxu0 0.0
        %3339 = vmatprep.subr.mxu0 0.0
        %3340 = vmatpush1.msra.mxu0 0.0
        %3341 = vmatprep.subr.mxu0 0.0
        %3342 = vmatpush1.msra.mxu0 0.0
        %3343 = vmatprep.subr.mxu0 0.0
        %3344 = vmatpush1.msra.mxu0 0.0
        %3345 = vmatprep.subr.mxu0 0.0
        %3346 = vmatpush1.msra.mxu0 0.0
        %3347 = vmatprep.subr.mxu0 0.0
        %3348 = vmatpush1.msra.mxu0 0.0
        %3349 = vmatprep.mubr.f32.mxu0 0.0
        %3350 = vmatmul.mubr.f32.gmra.mrb[0].mxu0 %v244
        %v3351 = vpop.f32.mrb[0].mxu0
        %v3352 = vadd.f32 %v227, %v3351
        %v3353 = vpop.f32.mrb[0].mxu0
        %3354 = vdwg.mxu0
        %v3356 = vsel %vm319, %v3352, 0
        %3358 = vmatprep.subr.mxu0 0.0
        %3359 = vmatpush1.msra.mxu0 %v214
        %3360 = vmatprep.subr.mxu0 0.0
        %3361 = vmatpush1.msra.mxu0 %v215
        %3362 = vmatprep.subr.mxu0 0.0
        %3363 = vmatpush1.msra.mxu0 0.0
        %3364 = vmatprep.subr.mxu0 0.0
        %3365 = vmatpush1.msra.mxu0 0.0
        %3366 = vmatprep.subr.mxu0 0.0
        %3367 = vmatpush1.msra.mxu0 0.0
        %3368 = vmatprep.subr.mxu0 0.0
        %3369 = vmatpush1.msra.mxu0 0.0
        %3370 = vmatprep.subr.mxu0 0.0
        %3371 = vmatpush1.msra.mxu0 0.0
        %3372 = vmatprep.subr.mxu0 0.0
        %3373 = vmatpush1.msra.mxu0 0.0
        %3374 = vmatprep.subr.mxu0 0.0
        %3375 = vmatpush1.msra.mxu0 0.0
        %3376 = vmatprep.subr.mxu0 0.0
        %3377 = vmatpush1.msra.mxu0 0.0
        %3378 = vmatprep.subr.mxu0 0.0
        %3379 = vmatpush1.msra.mxu0 0.0
        %3380 = vmatprep.subr.mxu0 0.0
        %3381 = vmatpush1.msra.mxu0 0.0
        %3382 = vmatprep.subr.mxu0 0.0
        %3383 = vmatpush1.msra.mxu0 0.0
        %3384 = vmatprep.subr.mxu0 0.0
        %3385 = vmatpush1.msra.mxu0 0.0
        %3386 = vmatprep.subr.mxu0 0.0
        %3387 = vmatpush1.msra.mxu0 0.0
        %3388 = vmatprep.subr.mxu0 0.0
        %3389 = vmatpush1.msra.mxu0 0.0
        %3390 = vmatprep.subr.mxu0 0.0
        %3391 = vmatpush1.msra.mxu0 0.0
        %3392 = vmatprep.subr.mxu0 0.0
        %3393 = vmatpush1.msra.mxu0 0.0
        %3394 = vmatprep.subr.mxu0 0.0
        %3395 = vmatpush1.msra.mxu0 0.0
        %3396 = vmatprep.subr.mxu0 0.0
        %3397 = vmatpush1.msra.mxu0 0.0
        %3398 = vmatprep.subr.mxu0 0.0
        %3399 = vmatpush1.msra.mxu0 0.0
        %3400 = vmatprep.subr.mxu0 0.0
        %3401 = vmatpush1.msra.mxu0 0.0
        %3402 = vmatprep.subr.mxu0 0.0
        %3403 = vmatpush1.msra.mxu0 0.0
        %3404 = vmatprep.subr.mxu0 0.0
        %3405 = vmatpush1.msra.mxu0 0.0
        %3406 = vmatprep.subr.mxu0 0.0
        %3407 = vmatpush1.msra.mxu0 0.0
        %3408 = vmatprep.subr.mxu0 0.0
        %3409 = vmatpush1.msra.mxu0 0.0
        %3410 = vmatprep.subr.mxu0 0.0
        %3411 = vmatpush1.msra.mxu0 0.0
        %3412 = vmatprep.subr.mxu0 0.0
        %3413 = vmatpush1.msra.mxu0 0.0
        %3414 = vmatprep.subr.mxu0 0.0
        %3415 = vmatpush1.msra.mxu0 0.0
        %3416 = vmatprep.subr.mxu0 0.0
        %3417 = vmatpush1.msra.mxu0 0.0
        %3418 = vmatprep.subr.mxu0 0.0
        %3419 = vmatpush1.msra.mxu0 0.0
        %3420 = vmatprep.subr.mxu0 0.0
        %3421 = vmatpush1.msra.mxu0 0.0
        %3422 = vmatprep.mubr.f32.mxu0 0.0
        %3423 = vmatmul.mubr.f32.gmra.mrb[0].mxu0 %v3356
        %v3424 = vpop.f32.mrb[0].mxu0
        %v3425 = vadd.f32 0.0, %v3424
        %v3426 = vpop.f32.mrb[0].mxu0
        %3427 = vdwg.mxu0
        %v3428 = vmul.f32 %v3124, 0.75
        %v3429 = vadd.f32 %v3428, %v2895
        %v3430 = vmax.f32 %v3429, 0.0
        %v3432 = vcombine.high %v3430, %v3430
        %v3434 = vunpack.c.l.s4 1966171168
        %v3435 = vunpack.c.0.s8 %v3434
        %v3436 = vlaneseq
        %v3437 = vshrl.u32 %v3436, 7
        %v3438 = vsub.s32 %v3435, %v3437
        %v3439 = vrot.slane %v3430, %v3438
        %v3441 = vunpack.c.l.s4 1966171168
        %v3442 = vunpack.c.0.s8 %v3441
        %v3443 = vlaneseq
        %v3444 = vshrl.u32 %v3443, 7
        %v3445 = vsub.s32 %v3442, %v3444
        %v3446 = vrot.slane %v3432, %v3445
        %v3447 = vcombine.high %v3439, %v3439
        %v3448 = vcombine.high %v3446, %v3446
        %v3450 = vunpack.c.l.s4 1966171168
        %v3451 = vunpack.c.0.s8 %v3450
        %v3452 = vlaneseq
        %v3453 = vshrl.u32 %v3452, 7
        %v3454 = vsub.s32 %v3451, %v3453
        %v3455 = vrot.slane %v3439, %v3454
        %v3457 = vunpack.c.l.s4 1966171168
        %v3458 = vunpack.c.0.s8 %v3457
        %v3459 = vlaneseq
        %v3460 = vshrl.u32 %v3459, 7
        %v3461 = vsub.s32 %v3458, %v3460
        %v3462 = vrot.slane %v3446, %v3461
        %v3464 = vunpack.c.l.s4 1966171168
        %v3465 = vunpack.c.0.s8 %v3464
        %v3466 = vlaneseq
        %v3467 = vshrl.u32 %v3466, 7
        %v3468 = vsub.s32 %v3465, %v3467
        %v3469 = vrot.slane %v3447, %v3468
        %v3471 = vunpack.c.l.s4 1966171168
        %v3472 = vunpack.c.0.s8 %v3471
        %v3473 = vlaneseq
        %v3474 = vshrl.u32 %v3473, 7
        %v3475 = vsub.s32 %v3472, %v3474
        %v3476 = vrot.slane %v3448, %v3475
        %v3477 = vcombine.high %v3455, %v3455
        %v3478 = vcombine.high %v3462, %v3462
        %v3479 = vcombine.high %v3469, %v3469
        %v3480 = vcombine.high %v3476, %v3476
        %3489 = vst.msk [vmem:[%s204 + $0x12] sm:$0x1] %vm778, %v3455
        %3490 = vst.msk [vmem:[%s204 + $0x32] sm:$0x1] %vm778, %v3469
        %3491 = vst.msk [vmem:[%s204 + $0x52] sm:$0x1] %vm778, %v3477
        %3492 = vst.msk [vmem:[%s204 + $0x72] sm:$0x1] %vm778, %v3479
        %3493 = vst.msk [vmem:[%s204 + $0x92] sm:$0x1] %vm778, %v3462
        %3494 = vst.msk [vmem:[%s204 + $0xb2] sm:$0x1] %vm778, %v3476
        %3495 = vst.msk [vmem:[%s204 + $0xd2] sm:$0x1] %vm778, %v3478
        %3496 = vst.msk [vmem:[%s204 + $0xf2] sm:$0x1] %vm778, %v3480
        %v3497 = vmul.f32 %v3425, 0.25
        %v3498 = vadd.f32 %v3428, %v3497
        %v3499 = vmax.f32 %v3498, 0.0
        %v3501 = vcombine.high %v3499, %v3499
        %v3503 = vunpack.c.l.s4 1966171168
        %v3504 = vunpack.c.0.s8 %v3503
        %v3505 = vlaneseq
        %v3506 = vshrl.u32 %v3505, 7
        %v3507 = vsub.s32 %v3504, %v3506
        %v3508 = vrot.slane %v3499, %v3507
        %v3510 = vunpack.c.l.s4 1966171168
        %v3511 = vunpack.c.0.s8 %v3510
        %v3512 = vlaneseq
        %v3513 = vshrl.u32 %v3512, 7
        %v3514 = vsub.s32 %v3511, %v3513
        %v3515 = vrot.slane %v3501, %v3514
        %v3516 = vcombine.high %v3508, %v3508
        %v3517 = vcombine.high %v3515, %v3515
        %v3519 = vunpack.c.l.s4 1966171168
        %v3520 = vunpack.c.0.s8 %v3519
        %v3521 = vlaneseq
        %v3522 = vshrl.u32 %v3521, 7
        %v3523 = vsub.s32 %v3520, %v3522
        %v3524 = vrot.slane %v3508, %v3523
        %v3526 = vunpack.c.l.s4 1966171168
        %v3527 = vunpack.c.0.s8 %v3526
        %v3528 = vlaneseq
        %v3529 = vshrl.u32 %v3528, 7
        %v3530 = vsub.s32 %v3527, %v3529
        %v3531 = vrot.slane %v3515, %v3530
        %v3533 = vunpack.c.l.s4 1966171168
        %v3534 = vunpack.c.0.s8 %v3533
        %v3535 = vlaneseq
        %v3536 = vshrl.u32 %v3535, 7
        %v3537 = vsub.s32 %v3534, %v3536
        %v3538 = vrot.slane %v3516, %v3537
        %v3540 = vunpack.c.l.s4 1966171168
        %v3541 = vunpack.c.0.s8 %v3540
        %v3542 = vlaneseq
        %v3543 = vshrl.u32 %v3542, 7
        %v3544 = vsub.s32 %v3541, %v3543
        %v3545 = vrot.slane %v3517, %v3544
        %v3546 = vcombine.high %v3524, %v3524
        %v3547 = vcombine.high %v3531, %v3531
        %v3548 = vcombine.high %v3538, %v3538
        %v3549 = vcombine.high %v3545, %v3545
        %3558 = vst.msk [vmem:[%s204 + $0x13] sm:$0x1] %vm778, %v3524
        %3559 = vst.msk [vmem:[%s204 + $0x33] sm:$0x1] %vm778, %v3538
        %3560 = vst.msk [vmem:[%s204 + $0x53] sm:$0x1] %vm778, %v3546
        %3561 = vst.msk [vmem:[%s204 + $0x73] sm:$0x1] %vm778, %v3548
        %3562 = vst.msk [vmem:[%s204 + $0x93] sm:$0x1] %vm778, %v3531
        %3563 = vst.msk [vmem:[%s204 + $0xb3] sm:$0x1] %vm778, %v3545
        %3564 = vst.msk [vmem:[%s204 + $0xd3] sm:$0x1] %vm778, %v3547
        %3565 = vst.msk [vmem:[%s204 + $0xf3] sm:$0x1] %vm778, %v3549
        %s3566 = sadd.s32 %s211, 11
        %p3567 = scmp.lt.s32.totalorder %s3566, 15
        %s3568 = scalar_select %p3567, %s3566, 15
        %s3569 = scalar_lea.vmem %s209, %s3568
        %v3570 = vld [vmem:[%s3569] sm:$0x1]
        %v3571 = vld [vmem:[%s3569 + $0x10] sm:$0x1]
        %v3572 = vld [vmem:[%s3569 + $0x20] sm:$0x1]
        %v3573 = vld [vmem:[%s3569 + $0x30] sm:$0x1]
        %v3578 = vrot.slane %v3571, 7
        %v3579 = vsel %vm234, %v3578, %v3570
        %v3580 = vrot.slane %v3572, 6
        %v3581 = vsel %vm237, %v3580, %v3579
        %v3582 = vrot.slane %v3573, 5
        %v3583 = vsel %vm240, %v3582, %v3581
        %v3584 = vsel %vm246, %v3583, 0
        %3586 = vmatprep.subr.mxu0 0.0
        %3587 = vmatpush1.msra.mxu0 %v3584
        %3588 = vmatprep.subr.mxu0 0.0
        %3589 = vmatpush1.msra.mxu0 0.0
        %3590 = vmatprep.subr.mxu0 0.0
        %3591 = vmatpush1.msra.mxu0 0.0
        %3592 = vmatprep.subr.mxu0 0.0
        %3593 = vmatpush1.msra.mxu0 0.0
        %3594 = vmatprep.subr.mxu0 0.0
        %3595 = vmatpush1.msra.mxu0 0.0
        %3596 = vmatprep.subr.mxu0 0.0
        %3597 = vmatpush1.msra.mxu0 0.0
        %3598 = vmatprep.subr.mxu0 0.0
        %3599 = vmatpush1.msra.mxu0 0.0
        %3600 = vmatprep.subr.mxu0 0.0
        %3601 = vmatpush1.msra.mxu0 0.0
        %3602 = vmatprep.subr.mxu0 0.0
        %3603 = vmatpush1.msra.mxu0 0.0
        %3604 = vmatprep.subr.mxu0 0.0
        %3605 = vmatpush1.msra.mxu0 0.0
        %3606 = vmatprep.subr.mxu0 0.0
        %3607 = vmatpush1.msra.mxu0 0.0
        %3608 = vmatprep.subr.mxu0 0.0
        %3609 = vmatpush1.msra.mxu0 0.0
        %3610 = vmatprep.subr.mxu0 0.0
        %3611 = vmatpush1.msra.mxu0 0.0
        %3612 = vmatprep.subr.mxu0 0.0
        %3613 = vmatpush1.msra.mxu0 0.0
        %3614 = vmatprep.subr.mxu0 0.0
        %3615 = vmatpush1.msra.mxu0 0.0
        %3616 = vmatprep.subr.mxu0 0.0
        %3617 = vmatpush1.msra.mxu0 0.0
        %3618 = vmatprep.subr.mxu0 0.0
        %3619 = vmatpush1.msra.mxu0 0.0
        %3620 = vmatprep.subr.mxu0 0.0
        %3621 = vmatpush1.msra.mxu0 0.0
        %3622 = vmatprep.subr.mxu0 0.0
        %3623 = vmatpush1.msra.mxu0 0.0
        %3624 = vmatprep.subr.mxu0 0.0
        %3625 = vmatpush1.msra.mxu0 0.0
        %3626 = vmatprep.subr.mxu0 0.0
        %3627 = vmatpush1.msra.mxu0 0.0
        %3628 = vmatprep.subr.mxu0 0.0
        %3629 = vmatpush1.msra.mxu0 0.0
        %3630 = vmatprep.subr.mxu0 0.0
        %3631 = vmatpush1.msra.mxu0 0.0
        %3632 = vmatprep.subr.mxu0 0.0
        %3633 = vmatpush1.msra.mxu0 0.0
        %3634 = vmatprep.subr.mxu0 0.0
        %3635 = vmatpush1.msra.mxu0 0.0
        %3636 = vmatprep.subr.mxu0 0.0
        %3637 = vmatpush1.msra.mxu0 0.0
        %3638 = vmatprep.subr.mxu0 0.0
        %3639 = vmatpush1.msra.mxu0 0.0
        %3640 = vmatprep.subr.mxu0 0.0
        %3641 = vmatpush1.msra.mxu0 0.0
        %3642 = vmatprep.subr.mxu0 0.0
        %3643 = vmatpush1.msra.mxu0 0.0
        %3644 = vmatprep.subr.mxu0 0.0
        %3645 = vmatpush1.msra.mxu0 0.0
        %3646 = vmatprep.subr.mxu0 0.0
        %3647 = vmatpush1.msra.mxu0 0.0
        %3648 = vmatprep.subr.mxu0 0.0
        %3649 = vmatpush1.msra.mxu0 0.0
        %3650 = vmatprep.mubr.f32.mxu0 0.0
        %3651 = vmatmul.mubr.f32.gmra.mrb[0].mxu0 %v244
        %v3652 = vpop.f32.mrb[0].mxu0
        %v3653 = vadd.f32 %v227, %v3652
        %v3654 = vpop.f32.mrb[0].mxu0
        %3655 = vdwg.mxu0
        %v3657 = vsel %vm319, %v3653, 0
        %3659 = vmatprep.subr.mxu0 0.0
        %3660 = vmatpush1.msra.mxu0 %v214
        %3661 = vmatprep.subr.mxu0 0.0
        %3662 = vmatpush1.msra.mxu0 %v215
        %3663 = vmatprep.subr.mxu0 0.0
        %3664 = vmatpush1.msra.mxu0 0.0
        %3665 = vmatprep.subr.mxu0 0.0
        %3666 = vmatpush1.msra.mxu0 0.0
        %3667 = vmatprep.subr.mxu0 0.0
        %3668 = vmatpush1.msra.mxu0 0.0
        %3669 = vmatprep.subr.mxu0 0.0
        %3670 = vmatpush1.msra.mxu0 0.0
        %3671 = vmatprep.subr.mxu0 0.0
        %3672 = vmatpush1.msra.mxu0 0.0
        %3673 = vmatprep.subr.mxu0 0.0
        %3674 = vmatpush1.msra.mxu0 0.0
        %3675 = vmatprep.subr.mxu0 0.0
        %3676 = vmatpush1.msra.mxu0 0.0
        %3677 = vmatprep.subr.mxu0 0.0
        %3678 = vmatpush1.msra.mxu0 0.0
        %3679 = vmatprep.subr.mxu0 0.0
        %3680 = vmatpush1.msra.mxu0 0.0
        %3681 = vmatprep.subr.mxu0 0.0
        %3682 = vmatpush1.msra.mxu0 0.0
        %3683 = vmatprep.subr.mxu0 0.0
        %3684 = vmatpush1.msra.mxu0 0.0
        %3685 = vmatprep.subr.mxu0 0.0
        %3686 = vmatpush1.msra.mxu0 0.0
        %3687 = vmatprep.subr.mxu0 0.0
        %3688 = vmatpush1.msra.mxu0 0.0
        %3689 = vmatprep.subr.mxu0 0.0
        %3690 = vmatpush1.msra.mxu0 0.0
        %3691 = vmatprep.subr.mxu0 0.0
        %3692 = vmatpush1.msra.mxu0 0.0
        %3693 = vmatprep.subr.mxu0 0.0
        %3694 = vmatpush1.msra.mxu0 0.0
        %3695 = vmatprep.subr.mxu0 0.0
        %3696 = vmatpush1.msra.mxu0 0.0
        %3697 = vmatprep.subr.mxu0 0.0
        %3698 = vmatpush1.msra.mxu0 0.0
        %3699 = vmatprep.subr.mxu0 0.0
        %3700 = vmatpush1.msra.mxu0 0.0
        %3701 = vmatprep.subr.mxu0 0.0
        %3702 = vmatpush1.msra.mxu0 0.0
        %3703 = vmatprep.subr.mxu0 0.0
        %3704 = vmatpush1.msra.mxu0 0.0
        %3705 = vmatprep.subr.mxu0 0.0
        %3706 = vmatpush1.msra.mxu0 0.0
        %3707 = vmatprep.subr.mxu0 0.0
        %3708 = vmatpush1.msra.mxu0 0.0
        %3709 = vmatprep.subr.mxu0 0.0
        %3710 = vmatpush1.msra.mxu0 0.0
        %3711 = vmatprep.subr.mxu0 0.0
        %3712 = vmatpush1.msra.mxu0 0.0
        %3713 = vmatprep.subr.mxu0 0.0
        %3714 = vmatpush1.msra.mxu0 0.0
        %3715 = vmatprep.subr.mxu0 0.0
        %3716 = vmatpush1.msra.mxu0 0.0
        %3717 = vmatprep.subr.mxu0 0.0
        %3718 = vmatpush1.msra.mxu0 0.0
        %3719 = vmatprep.subr.mxu0 0.0
        %3720 = vmatpush1.msra.mxu0 0.0
        %3721 = vmatprep.subr.mxu0 0.0
        %3722 = vmatpush1.msra.mxu0 0.0
        %3723 = vmatprep.mubr.f32.mxu0 0.0
        %3724 = vmatmul.mubr.f32.gmra.mrb[0].mxu0 %v3657
        %v3725 = vpop.f32.mrb[0].mxu0
        %v3726 = vadd.f32 0.0, %v3725
        %v3727 = vpop.f32.mrb[0].mxu0
        %3728 = vdwg.mxu0
        %v3729 = vmul.f32 %v3425, 0.75
        %v3730 = vadd.f32 %v3729, %v3196
        %v3731 = vmax.f32 %v3730, 0.0
        %v3733 = vcombine.high %v3731, %v3731
        %v3735 = vunpack.c.l.s4 1966171168
        %v3736 = vunpack.c.0.s8 %v3735
        %v3737 = vlaneseq
        %v3738 = vshrl.u32 %v3737, 7
        %v3739 = vsub.s32 %v3736, %v3738
        %v3740 = vrot.slane %v3731, %v3739
        %v3742 = vunpack.c.l.s4 1966171168
        %v3743 = vunpack.c.0.s8 %v3742
        %v3744 = vlaneseq
        %v3745 = vshrl.u32 %v3744, 7
        %v3746 = vsub.s32 %v3743, %v3745
        %v3747 = vrot.slane %v3733, %v3746
        %v3748 = vcombine.high %v3740, %v3740
        %v3749 = vcombine.high %v3747, %v3747
        %v3751 = vunpack.c.l.s4 1966171168
        %v3752 = vunpack.c.0.s8 %v3751
        %v3753 = vlaneseq
        %v3754 = vshrl.u32 %v3753, 7
        %v3755 = vsub.s32 %v3752, %v3754
        %v3756 = vrot.slane %v3740, %v3755
        %v3758 = vunpack.c.l.s4 1966171168
        %v3759 = vunpack.c.0.s8 %v3758
        %v3760 = vlaneseq
        %v3761 = vshrl.u32 %v3760, 7
        %v3762 = vsub.s32 %v3759, %v3761
        %v3763 = vrot.slane %v3747, %v3762
        %v3765 = vunpack.c.l.s4 1966171168
        %v3766 = vunpack.c.0.s8 %v3765
        %v3767 = vlaneseq
        %v3768 = vshrl.u32 %v3767, 7
        %v3769 = vsub.s32 %v3766, %v3768
        %v3770 = vrot.slane %v3748, %v3769
        %v3772 = vunpack.c.l.s4 1966171168
        %v3773 = vunpack.c.0.s8 %v3772
        %v3774 = vlaneseq
        %v3775 = vshrl.u32 %v3774, 7
        %v3776 = vsub.s32 %v3773, %v3775
        %v3777 = vrot.slane %v3749, %v3776
        %v3778 = vcombine.high %v3756, %v3756
        %v3779 = vcombine.high %v3763, %v3763
        %v3780 = vcombine.high %v3770, %v3770
        %v3781 = vcombine.high %v3777, %v3777
        %3790 = vst.msk [vmem:[%s204 + $0x14] sm:$0x1] %vm778, %v3756
        %3791 = vst.msk [vmem:[%s204 + $0x34] sm:$0x1] %vm778, %v3770
        %3792 = vst.msk [vmem:[%s204 + $0x54] sm:$0x1] %vm778, %v3778
        %3793 = vst.msk [vmem:[%s204 + $0x74] sm:$0x1] %vm778, %v3780
        %3794 = vst.msk [vmem:[%s204 + $0x94] sm:$0x1] %vm778, %v3763
        %3795 = vst.msk [vmem:[%s204 + $0xb4] sm:$0x1] %vm778, %v3777
        %3796 = vst.msk [vmem:[%s204 + $0xd4] sm:$0x1] %vm778, %v3779
        %3797 = vst.msk [vmem:[%s204 + $0xf4] sm:$0x1] %vm778, %v3781
        %v3798 = vmul.f32 %v3726, 0.25
        %v3799 = vadd.f32 %v3729, %v3798
        %v3800 = vmax.f32 %v3799, 0.0
        %v3802 = vcombine.high %v3800, %v3800
        %v3804 = vunpack.c.l.s4 1966171168
        %v3805 = vunpack.c.0.s8 %v3804
        %v3806 = vlaneseq
        %v3807 = vshrl.u32 %v3806, 7
        %v3808 = vsub.s32 %v3805, %v3807
        %v3809 = vrot.slane %v3800, %v3808
        %v3811 = vunpack.c.l.s4 1966171168
        %v3812 = vunpack.c.0.s8 %v3811
        %v3813 = vlaneseq
        %v3814 = vshrl.u32 %v3813, 7
        %v3815 = vsub.s32 %v3812, %v3814
        %v3816 = vrot.slane %v3802, %v3815
        %v3817 = vcombine.high %v3809, %v3809
        %v3818 = vcombine.high %v3816, %v3816
        %v3820 = vunpack.c.l.s4 1966171168
        %v3821 = vunpack.c.0.s8 %v3820
        %v3822 = vlaneseq
        %v3823 = vshrl.u32 %v3822, 7
        %v3824 = vsub.s32 %v3821, %v3823
        %v3825 = vrot.slane %v3809, %v3824
        %v3827 = vunpack.c.l.s4 1966171168
        %v3828 = vunpack.c.0.s8 %v3827
        %v3829 = vlaneseq
        %v3830 = vshrl.u32 %v3829, 7
        %v3831 = vsub.s32 %v3828, %v3830
        %v3832 = vrot.slane %v3816, %v3831
        %v3834 = vunpack.c.l.s4 1966171168
        %v3835 = vunpack.c.0.s8 %v3834
        %v3836 = vlaneseq
        %v3837 = vshrl.u32 %v3836, 7
        %v3838 = vsub.s32 %v3835, %v3837
        %v3839 = vrot.slane %v3817, %v3838
        %v3841 = vunpack.c.l.s4 1966171168
        %v3842 = vunpack.c.0.s8 %v3841
        %v3843 = vlaneseq
        %v3844 = vshrl.u32 %v3843, 7
        %v3845 = vsub.s32 %v3842, %v3844
        %v3846 = vrot.slane %v3818, %v3845
        %v3847 = vcombine.high %v3825, %v3825
        %v3848 = vcombine.high %v3832, %v3832
        %v3849 = vcombine.high %v3839, %v3839
        %v3850 = vcombine.high %v3846, %v3846
        %3859 = vst.msk [vmem:[%s204 + $0x15] sm:$0x1] %vm778, %v3825
        %3860 = vst.msk [vmem:[%s204 + $0x35] sm:$0x1] %vm778, %v3839
        %3861 = vst.msk [vmem:[%s204 + $0x55] sm:$0x1] %vm778, %v3847
        %3862 = vst.msk [vmem:[%s204 + $0x75] sm:$0x1] %vm778, %v3849
        %3863 = vst.msk [vmem:[%s204 + $0x95] sm:$0x1] %vm778, %v3832
        %3864 = vst.msk [vmem:[%s204 + $0xb5] sm:$0x1] %vm778, %v3846
        %3865 = vst.msk [vmem:[%s204 + $0xd5] sm:$0x1] %vm778, %v3848
        %3866 = vst.msk [vmem:[%s204 + $0xf5] sm:$0x1] %vm778, %v3850
        %s3867 = sadd.s32 %s211, 12
        %p3868 = scmp.lt.s32.totalorder %s3867, 15
        %s3869 = scalar_select %p3868, %s3867, 15
        %s3870 = scalar_lea.vmem %s209, %s3869
        %v3871 = vld [vmem:[%s3870] sm:$0x1]
        %v3872 = vld [vmem:[%s3870 + $0x10] sm:$0x1]
        %v3873 = vld [vmem:[%s3870 + $0x20] sm:$0x1]
        %v3874 = vld [vmem:[%s3870 + $0x30] sm:$0x1]
        %v3879 = vrot.slane %v3872, 7
        %v3880 = vsel %vm234, %v3879, %v3871
        %v3881 = vrot.slane %v3873, 6
        %v3882 = vsel %vm237, %v3881, %v3880
        %v3883 = vrot.slane %v3874, 5
        %v3884 = vsel %vm240, %v3883, %v3882
        %v3885 = vsel %vm246, %v3884, 0
        %3887 = vmatprep.subr.mxu0 0.0
        %3888 = vmatpush1.msra.mxu0 %v3885
        %3889 = vmatprep.subr.mxu0 0.0
        %3890 = vmatpush1.msra.mxu0 0.0
        %3891 = vmatprep.subr.mxu0 0.0
        %3892 = vmatpush1.msra.mxu0 0.0
        %3893 = vmatprep.subr.mxu0 0.0
        %3894 = vmatpush1.msra.mxu0 0.0
        %3895 = vmatprep.subr.mxu0 0.0
        %3896 = vmatpush1.msra.mxu0 0.0
        %3897 = vmatprep.subr.mxu0 0.0
        %3898 = vmatpush1.msra.mxu0 0.0
        %3899 = vmatprep.subr.mxu0 0.0
        %3900 = vmatpush1.msra.mxu0 0.0
        %3901 = vmatprep.subr.mxu0 0.0
        %3902 = vmatpush1.msra.mxu0 0.0
        %3903 = vmatprep.subr.mxu0 0.0
        %3904 = vmatpush1.msra.mxu0 0.0
        %3905 = vmatprep.subr.mxu0 0.0
        %3906 = vmatpush1.msra.mxu0 0.0
        %3907 = vmatprep.subr.mxu0 0.0
        %3908 = vmatpush1.msra.mxu0 0.0
        %3909 = vmatprep.subr.mxu0 0.0
        %3910 = vmatpush1.msra.mxu0 0.0
        %3911 = vmatprep.subr.mxu0 0.0
        %3912 = vmatpush1.msra.mxu0 0.0
        %3913 = vmatprep.subr.mxu0 0.0
        %3914 = vmatpush1.msra.mxu0 0.0
        %3915 = vmatprep.subr.mxu0 0.0
        %3916 = vmatpush1.msra.mxu0 0.0
        %3917 = vmatprep.subr.mxu0 0.0
        %3918 = vmatpush1.msra.mxu0 0.0
        %3919 = vmatprep.subr.mxu0 0.0
        %3920 = vmatpush1.msra.mxu0 0.0
        %3921 = vmatprep.subr.mxu0 0.0
        %3922 = vmatpush1.msra.mxu0 0.0
        %3923 = vmatprep.subr.mxu0 0.0
        %3924 = vmatpush1.msra.mxu0 0.0
        %3925 = vmatprep.subr.mxu0 0.0
        %3926 = vmatpush1.msra.mxu0 0.0
        %3927 = vmatprep.subr.mxu0 0.0
        %3928 = vmatpush1.msra.mxu0 0.0
        %3929 = vmatprep.subr.mxu0 0.0
        %3930 = vmatpush1.msra.mxu0 0.0
        %3931 = vmatprep.subr.mxu0 0.0
        %3932 = vmatpush1.msra.mxu0 0.0
        %3933 = vmatprep.subr.mxu0 0.0
        %3934 = vmatpush1.msra.mxu0 0.0
        %3935 = vmatprep.subr.mxu0 0.0
        %3936 = vmatpush1.msra.mxu0 0.0
        %3937 = vmatprep.subr.mxu0 0.0
        %3938 = vmatpush1.msra.mxu0 0.0
        %3939 = vmatprep.subr.mxu0 0.0
        %3940 = vmatpush1.msra.mxu0 0.0
        %3941 = vmatprep.subr.mxu0 0.0
        %3942 = vmatpush1.msra.mxu0 0.0
        %3943 = vmatprep.subr.mxu0 0.0
        %3944 = vmatpush1.msra.mxu0 0.0
        %3945 = vmatprep.subr.mxu0 0.0
        %3946 = vmatpush1.msra.mxu0 0.0
        %3947 = vmatprep.subr.mxu0 0.0
        %3948 = vmatpush1.msra.mxu0 0.0
        %3949 = vmatprep.subr.mxu0 0.0
        %3950 = vmatpush1.msra.mxu0 0.0
        %3951 = vmatprep.mubr.f32.mxu0 0.0
        %3952 = vmatmul.mubr.f32.gmra.mrb[0].mxu0 %v244
        %v3953 = vpop.f32.mrb[0].mxu0
        %v3954 = vadd.f32 %v227, %v3953
        %v3955 = vpop.f32.mrb[0].mxu0
        %3956 = vdwg.mxu0
        %v3958 = vsel %vm319, %v3954, 0
        %3960 = vmatprep.subr.mxu0 0.0
        %3961 = vmatpush1.msra.mxu0 %v214
        %3962 = vmatprep.subr.mxu0 0.0
        %3963 = vmatpush1.msra.mxu0 %v215
        %3964 = vmatprep.subr.mxu0 0.0
        %3965 = vmatpush1.msra.mxu0 0.0
        %3966 = vmatprep.subr.mxu0 0.0
        %3967 = vmatpush1.msra.mxu0 0.0
        %3968 = vmatprep.subr.mxu0 0.0
        %3969 = vmatpush1.msra.mxu0 0.0
        %3970 = vmatprep.subr.mxu0 0.0
        %3971 = vmatpush1.msra.mxu0 0.0
        %3972 = vmatprep.subr.mxu0 0.0
        %3973 = vmatpush1.msra.mxu0 0.0
        %3974 = vmatprep.subr.mxu0 0.0
        %3975 = vmatpush1.msra.mxu0 0.0
        %3976 = vmatprep.subr.mxu0 0.0
        %3977 = vmatpush1.msra.mxu0 0.0
        %3978 = vmatprep.subr.mxu0 0.0
        %3979 = vmatpush1.msra.mxu0 0.0
        %3980 = vmatprep.subr.mxu0 0.0
        %3981 = vmatpush1.msra.mxu0 0.0
        %3982 = vmatprep.subr.mxu0 0.0
        %3983 = vmatpush1.msra.mxu0 0.0
        %3984 = vmatprep.subr.mxu0 0.0
        %3985 = vmatpush1.msra.mxu0 0.0
        %3986 = vmatprep.subr.mxu0 0.0
        %3987 = vmatpush1.msra.mxu0 0.0
        %3988 = vmatprep.subr.mxu0 0.0
        %3989 = vmatpush1.msra.mxu0 0.0
        %3990 = vmatprep.subr.mxu0 0.0
        %3991 = vmatpush1.msra.mxu0 0.0
        %3992 = vmatprep.subr.mxu0 0.0
        %3993 = vmatpush1.msra.mxu0 0.0
        %3994 = vmatprep.subr.mxu0 0.0
        %3995 = vmatpush1.msra.mxu0 0.0
        %3996 = vmatprep.subr.mxu0 0.0
        %3997 = vmatpush1.msra.mxu0 0.0
        %3998 = vmatprep.subr.mxu0 0.0
        %3999 = vmatpush1.msra.mxu0 0.0
        %4000 = vmatprep.subr.mxu0 0.0
        %4001 = vmatpush1.msra.mxu0 0.0
        %4002 = vmatprep.subr.mxu0 0.0
        %4003 = vmatpush1.msra.mxu0 0.0
        %4004 = vmatprep.subr.mxu0 0.0
        %4005 = vmatpush1.msra.mxu0 0.0
        %4006 = vmatprep.subr.mxu0 0.0
        %4007 = vmatpush1.msra.mxu0 0.0
        %4008 = vmatprep.subr.mxu0 0.0
        %4009 = vmatpush1.msra.mxu0 0.0
        %4010 = vmatprep.subr.mxu0 0.0
        %4011 = vmatpush1.msra.mxu0 0.0
        %4012 = vmatprep.subr.mxu0 0.0
        %4013 = vmatpush1.msra.mxu0 0.0
        %4014 = vmatprep.subr.mxu0 0.0
        %4015 = vmatpush1.msra.mxu0 0.0
        %4016 = vmatprep.subr.mxu0 0.0
        %4017 = vmatpush1.msra.mxu0 0.0
        %4018 = vmatprep.subr.mxu0 0.0
        %4019 = vmatpush1.msra.mxu0 0.0
        %4020 = vmatprep.subr.mxu0 0.0
        %4021 = vmatpush1.msra.mxu0 0.0
        %4022 = vmatprep.subr.mxu0 0.0
        %4023 = vmatpush1.msra.mxu0 0.0
        %4024 = vmatprep.mubr.f32.mxu0 0.0
        %4025 = vmatmul.mubr.f32.gmra.mrb[0].mxu0 %v3958
        %v4026 = vpop.f32.mrb[0].mxu0
        %v4027 = vadd.f32 0.0, %v4026
        %v4028 = vpop.f32.mrb[0].mxu0
        %4029 = vdwg.mxu0
        %v4030 = vmul.f32 %v3726, 0.75
        %v4031 = vadd.f32 %v4030, %v3497
        %v4032 = vmax.f32 %v4031, 0.0
        %v4034 = vcombine.high %v4032, %v4032
        %v4036 = vunpack.c.l.s4 1966171168
        %v4037 = vunpack.c.0.s8 %v4036
        %v4038 = vlaneseq
        %v4039 = vshrl.u32 %v4038, 7
        %v4040 = vsub.s32 %v4037, %v4039
        %v4041 = vrot.slane %v4032, %v4040
        %v4043 = vunpack.c.l.s4 1966171168
        %v4044 = vunpack.c.0.s8 %v4043
        %v4045 = vlaneseq
        %v4046 = vshrl.u32 %v4045, 7
        %v4047 = vsub.s32 %v4044, %v4046
        %v4048 = vrot.slane %v4034, %v4047
        %v4049 = vcombine.high %v4041, %v4041
        %v4050 = vcombine.high %v4048, %v4048
        %v4052 = vunpack.c.l.s4 1966171168
        %v4053 = vunpack.c.0.s8 %v4052
        %v4054 = vlaneseq
        %v4055 = vshrl.u32 %v4054, 7
        %v4056 = vsub.s32 %v4053, %v4055
        %v4057 = vrot.slane %v4041, %v4056
        %v4059 = vunpack.c.l.s4 1966171168
        %v4060 = vunpack.c.0.s8 %v4059
        %v4061 = vlaneseq
        %v4062 = vshrl.u32 %v4061, 7
        %v4063 = vsub.s32 %v4060, %v4062
        %v4064 = vrot.slane %v4048, %v4063
        %v4066 = vunpack.c.l.s4 1966171168
        %v4067 = vunpack.c.0.s8 %v4066
        %v4068 = vlaneseq
        %v4069 = vshrl.u32 %v4068, 7
        %v4070 = vsub.s32 %v4067, %v4069
        %v4071 = vrot.slane %v4049, %v4070
        %v4073 = vunpack.c.l.s4 1966171168
        %v4074 = vunpack.c.0.s8 %v4073
        %v4075 = vlaneseq
        %v4076 = vshrl.u32 %v4075, 7
        %v4077 = vsub.s32 %v4074, %v4076
        %v4078 = vrot.slane %v4050, %v4077
        %v4079 = vcombine.high %v4057, %v4057
        %v4080 = vcombine.high %v4064, %v4064
        %v4081 = vcombine.high %v4071, %v4071
        %v4082 = vcombine.high %v4078, %v4078
        %4091 = vst.msk [vmem:[%s204 + $0x16] sm:$0x1] %vm778, %v4057
        %4092 = vst.msk [vmem:[%s204 + $0x36] sm:$0x1] %vm778, %v4071
        %4093 = vst.msk [vmem:[%s204 + $0x56] sm:$0x1] %vm778, %v4079
        %4094 = vst.msk [vmem:[%s204 + $0x76] sm:$0x1] %vm778, %v4081
        %4095 = vst.msk [vmem:[%s204 + $0x96] sm:$0x1] %vm778, %v4064
        %4096 = vst.msk [vmem:[%s204 + $0xb6] sm:$0x1] %vm778, %v4078
        %4097 = vst.msk [vmem:[%s204 + $0xd6] sm:$0x1] %vm778, %v4080
        %4098 = vst.msk [vmem:[%s204 + $0xf6] sm:$0x1] %vm778, %v4082
        %v4099 = vmul.f32 %v4027, 0.25
        %v4100 = vadd.f32 %v4030, %v4099
        %v4101 = vmax.f32 %v4100, 0.0
        %v4103 = vcombine.high %v4101, %v4101
        %v4105 = vunpack.c.l.s4 1966171168
        %v4106 = vunpack.c.0.s8 %v4105
        %v4107 = vlaneseq
        %v4108 = vshrl.u32 %v4107, 7
        %v4109 = vsub.s32 %v4106, %v4108
        %v4110 = vrot.slane %v4101, %v4109
        %v4112 = vunpack.c.l.s4 1966171168
        %v4113 = vunpack.c.0.s8 %v4112
        %v4114 = vlaneseq
        %v4115 = vshrl.u32 %v4114, 7
        %v4116 = vsub.s32 %v4113, %v4115
        %v4117 = vrot.slane %v4103, %v4116
        %v4118 = vcombine.high %v4110, %v4110
        %v4119 = vcombine.high %v4117, %v4117
        %v4121 = vunpack.c.l.s4 1966171168
        %v4122 = vunpack.c.0.s8 %v4121
        %v4123 = vlaneseq
        %v4124 = vshrl.u32 %v4123, 7
        %v4125 = vsub.s32 %v4122, %v4124
        %v4126 = vrot.slane %v4110, %v4125
        %v4128 = vunpack.c.l.s4 1966171168
        %v4129 = vunpack.c.0.s8 %v4128
        %v4130 = vlaneseq
        %v4131 = vshrl.u32 %v4130, 7
        %v4132 = vsub.s32 %v4129, %v4131
        %v4133 = vrot.slane %v4117, %v4132
        %v4135 = vunpack.c.l.s4 1966171168
        %v4136 = vunpack.c.0.s8 %v4135
        %v4137 = vlaneseq
        %v4138 = vshrl.u32 %v4137, 7
        %v4139 = vsub.s32 %v4136, %v4138
        %v4140 = vrot.slane %v4118, %v4139
        %v4142 = vunpack.c.l.s4 1966171168
        %v4143 = vunpack.c.0.s8 %v4142
        %v4144 = vlaneseq
        %v4145 = vshrl.u32 %v4144, 7
        %v4146 = vsub.s32 %v4143, %v4145
        %v4147 = vrot.slane %v4119, %v4146
        %v4148 = vcombine.high %v4126, %v4126
        %v4149 = vcombine.high %v4133, %v4133
        %v4150 = vcombine.high %v4140, %v4140
        %v4151 = vcombine.high %v4147, %v4147
        %4160 = vst.msk [vmem:[%s204 + $0x17] sm:$0x1] %vm778, %v4126
        %4161 = vst.msk [vmem:[%s204 + $0x37] sm:$0x1] %vm778, %v4140
        %4162 = vst.msk [vmem:[%s204 + $0x57] sm:$0x1] %vm778, %v4148
        %4163 = vst.msk [vmem:[%s204 + $0x77] sm:$0x1] %vm778, %v4150
        %4164 = vst.msk [vmem:[%s204 + $0x97] sm:$0x1] %vm778, %v4133
        %4165 = vst.msk [vmem:[%s204 + $0xb7] sm:$0x1] %vm778, %v4147
        %4166 = vst.msk [vmem:[%s204 + $0xd7] sm:$0x1] %vm778, %v4149
        %4167 = vst.msk [vmem:[%s204 + $0xf7] sm:$0x1] %vm778, %v4151
        %s4168 = sadd.s32 %s211, 13
        %p4169 = scmp.lt.s32.totalorder %s4168, 15
        %s4170 = scalar_select %p4169, %s4168, 15
        %s4171 = scalar_lea.vmem %s209, %s4170
        %v4172 = vld [vmem:[%s4171] sm:$0x1]
        %v4173 = vld [vmem:[%s4171 + $0x10] sm:$0x1]
        %v4174 = vld [vmem:[%s4171 + $0x20] sm:$0x1]
        %v4175 = vld [vmem:[%s4171 + $0x30] sm:$0x1]
        %v4180 = vrot.slane %v4173, 7
        %v4181 = vsel %vm234, %v4180, %v4172
        %v4182 = vrot.slane %v4174, 6
        %v4183 = vsel %vm237, %v4182, %v4181
        %v4184 = vrot.slane %v4175, 5
        %v4185 = vsel %vm240, %v4184, %v4183
        %v4186 = vsel %vm246, %v4185, 0
        %4188 = vmatprep.subr.mxu0 0.0
        %4189 = vmatpush1.msra.mxu0 %v4186
        %4190 = vmatprep.subr.mxu0 0.0
        %4191 = vmatpush1.msra.mxu0 0.0
        %4192 = vmatprep.subr.mxu0 0.0
        %4193 = vmatpush1.msra.mxu0 0.0
        %4194 = vmatprep.subr.mxu0 0.0
        %4195 = vmatpush1.msra.mxu0 0.0
        %4196 = vmatprep.subr.mxu0 0.0
        %4197 = vmatpush1.msra.mxu0 0.0
        %4198 = vmatprep.subr.mxu0 0.0
        %4199 = vmatpush1.msra.mxu0 0.0
        %4200 = vmatprep.subr.mxu0 0.0
        %4201 = vmatpush1.msra.mxu0 0.0
        %4202 = vmatprep.subr.mxu0 0.0
        %4203 = vmatpush1.msra.mxu0 0.0
        %4204 = vmatprep.subr.mxu0 0.0
        %4205 = vmatpush1.msra.mxu0 0.0
        %4206 = vmatprep.subr.mxu0 0.0
        %4207 = vmatpush1.msra.mxu0 0.0
        %4208 = vmatprep.subr.mxu0 0.0
        %4209 = vmatpush1.msra.mxu0 0.0
        %4210 = vmatprep.subr.mxu0 0.0
        %4211 = vmatpush1.msra.mxu0 0.0
        %4212 = vmatprep.subr.mxu0 0.0
        %4213 = vmatpush1.msra.mxu0 0.0
        %4214 = vmatprep.subr.mxu0 0.0
        %4215 = vmatpush1.msra.mxu0 0.0
        %4216 = vmatprep.subr.mxu0 0.0
        %4217 = vmatpush1.msra.mxu0 0.0
        %4218 = vmatprep.subr.mxu0 0.0
        %4219 = vmatpush1.msra.mxu0 0.0
        %4220 = vmatprep.subr.mxu0 0.0
        %4221 = vmatpush1.msra.mxu0 0.0
        %4222 = vmatprep.subr.mxu0 0.0
        %4223 = vmatpush1.msra.mxu0 0.0
        %4224 = vmatprep.subr.mxu0 0.0
        %4225 = vmatpush1.msra.mxu0 0.0
        %4226 = vmatprep.subr.mxu0 0.0
        %4227 = vmatpush1.msra.mxu0 0.0
        %4228 = vmatprep.subr.mxu0 0.0
        %4229 = vmatpush1.msra.mxu0 0.0
        %4230 = vmatprep.subr.mxu0 0.0
        %4231 = vmatpush1.msra.mxu0 0.0
        %4232 = vmatprep.subr.mxu0 0.0
        %4233 = vmatpush1.msra.mxu0 0.0
        %4234 = vmatprep.subr.mxu0 0.0
        %4235 = vmatpush1.msra.mxu0 0.0
        %4236 = vmatprep.subr.mxu0 0.0
        %4237 = vmatpush1.msra.mxu0 0.0
        %4238 = vmatprep.subr.mxu0 0.0
        %4239 = vmatpush1.msra.mxu0 0.0
        %4240 = vmatprep.subr.mxu0 0.0
        %4241 = vmatpush1.msra.mxu0 0.0
        %4242 = vmatprep.subr.mxu0 0.0
        %4243 = vmatpush1.msra.mxu0 0.0
        %4244 = vmatprep.subr.mxu0 0.0
        %4245 = vmatpush1.msra.mxu0 0.0
        %4246 = vmatprep.subr.mxu0 0.0
        %4247 = vmatpush1.msra.mxu0 0.0
        %4248 = vmatprep.subr.mxu0 0.0
        %4249 = vmatpush1.msra.mxu0 0.0
        %4250 = vmatprep.subr.mxu0 0.0
        %4251 = vmatpush1.msra.mxu0 0.0
        %4252 = vmatprep.mubr.f32.mxu0 0.0
        %4253 = vmatmul.mubr.f32.gmra.mrb[0].mxu0 %v244
        %v4254 = vpop.f32.mrb[0].mxu0
        %v4255 = vadd.f32 %v227, %v4254
        %v4256 = vpop.f32.mrb[0].mxu0
        %4257 = vdwg.mxu0
        %v4259 = vsel %vm319, %v4255, 0
        %4261 = vmatprep.subr.mxu0 0.0
        %4262 = vmatpush1.msra.mxu0 %v214
        %4263 = vmatprep.subr.mxu0 0.0
        %4264 = vmatpush1.msra.mxu0 %v215
        %4265 = vmatprep.subr.mxu0 0.0
        %4266 = vmatpush1.msra.mxu0 0.0
        %4267 = vmatprep.subr.mxu0 0.0
        %4268 = vmatpush1.msra.mxu0 0.0
        %4269 = vmatprep.subr.mxu0 0.0
        %4270 = vmatpush1.msra.mxu0 0.0
        %4271 = vmatprep.subr.mxu0 0.0
        %4272 = vmatpush1.msra.mxu0 0.0
        %4273 = vmatprep.subr.mxu0 0.0
        %4274 = vmatpush1.msra.mxu0 0.0
        %4275 = vmatprep.subr.mxu0 0.0
        %4276 = vmatpush1.msra.mxu0 0.0
        %4277 = vmatprep.subr.mxu0 0.0
        %4278 = vmatpush1.msra.mxu0 0.0
        %4279 = vmatprep.subr.mxu0 0.0
        %4280 = vmatpush1.msra.mxu0 0.0
        %4281 = vmatprep.subr.mxu0 0.0
        %4282 = vmatpush1.msra.mxu0 0.0
        %4283 = vmatprep.subr.mxu0 0.0
        %4284 = vmatpush1.msra.mxu0 0.0
        %4285 = vmatprep.subr.mxu0 0.0
        %4286 = vmatpush1.msra.mxu0 0.0
        %4287 = vmatprep.subr.mxu0 0.0
        %4288 = vmatpush1.msra.mxu0 0.0
        %4289 = vmatprep.subr.mxu0 0.0
        %4290 = vmatpush1.msra.mxu0 0.0
        %4291 = vmatprep.subr.mxu0 0.0
        %4292 = vmatpush1.msra.mxu0 0.0
        %4293 = vmatprep.subr.mxu0 0.0
        %4294 = vmatpush1.msra.mxu0 0.0
        %4295 = vmatprep.subr.mxu0 0.0
        %4296 = vmatpush1.msra.mxu0 0.0
        %4297 = vmatprep.subr.mxu0 0.0
        %4298 = vmatpush1.msra.mxu0 0.0
        %4299 = vmatprep.subr.mxu0 0.0
        %4300 = vmatpush1.msra.mxu0 0.0
        %4301 = vmatprep.subr.mxu0 0.0
        %4302 = vmatpush1.msra.mxu0 0.0
        %4303 = vmatprep.subr.mxu0 0.0
        %4304 = vmatpush1.msra.mxu0 0.0
        %4305 = vmatprep.subr.mxu0 0.0
        %4306 = vmatpush1.msra.mxu0 0.0
        %4307 = vmatprep.subr.mxu0 0.0
        %4308 = vmatpush1.msra.mxu0 0.0
        %4309 = vmatprep.subr.mxu0 0.0
        %4310 = vmatpush1.msra.mxu0 0.0
        %4311 = vmatprep.subr.mxu0 0.0
        %4312 = vmatpush1.msra.mxu0 0.0
        %4313 = vmatprep.subr.mxu0 0.0
        %4314 = vmatpush1.msra.mxu0 0.0
        %4315 = vmatprep.subr.mxu0 0.0
        %4316 = vmatpush1.msra.mxu0 0.0
        %4317 = vmatprep.subr.mxu0 0.0
        %4318 = vmatpush1.msra.mxu0 0.0
        %4319 = vmatprep.subr.mxu0 0.0
        %4320 = vmatpush1.msra.mxu0 0.0
        %4321 = vmatprep.subr.mxu0 0.0
        %4322 = vmatpush1.msra.mxu0 0.0
        %4323 = vmatprep.subr.mxu0 0.0
        %4324 = vmatpush1.msra.mxu0 0.0
        %4325 = vmatprep.mubr.f32.mxu0 0.0
        %4326 = vmatmul.mubr.f32.gmra.mrb[0].mxu0 %v4259
        %v4327 = vpop.f32.mrb[0].mxu0
        %v4328 = vadd.f32 0.0, %v4327
        %v4329 = vpop.f32.mrb[0].mxu0
        %4330 = vdwg.mxu0
        %v4331 = vmul.f32 %v4027, 0.75
        %v4332 = vadd.f32 %v4331, %v3798
        %v4333 = vmax.f32 %v4332, 0.0
        %v4335 = vcombine.high %v4333, %v4333
        %v4337 = vunpack.c.l.s4 1966171168
        %v4338 = vunpack.c.0.s8 %v4337
        %v4339 = vlaneseq
        %v4340 = vshrl.u32 %v4339, 7
        %v4341 = vsub.s32 %v4338, %v4340
        %v4342 = vrot.slane %v4333, %v4341
        %v4344 = vunpack.c.l.s4 1966171168
        %v4345 = vunpack.c.0.s8 %v4344
        %v4346 = vlaneseq
        %v4347 = vshrl.u32 %v4346, 7
        %v4348 = vsub.s32 %v4345, %v4347
        %v4349 = vrot.slane %v4335, %v4348
        %v4350 = vcombine.high %v4342, %v4342
        %v4351 = vcombine.high %v4349, %v4349
        %v4353 = vunpack.c.l.s4 1966171168
        %v4354 = vunpack.c.0.s8 %v4353
        %v4355 = vlaneseq
        %v4356 = vshrl.u32 %v4355, 7
        %v4357 = vsub.s32 %v4354, %v4356
        %v4358 = vrot.slane %v4342, %v4357
        %v4360 = vunpack.c.l.s4 1966171168
        %v4361 = vunpack.c.0.s8 %v4360
        %v4362 = vlaneseq
        %v4363 = vshrl.u32 %v4362, 7
        %v4364 = vsub.s32 %v4361, %v4363
        %v4365 = vrot.slane %v4349, %v4364
        %v4367 = vunpack.c.l.s4 1966171168
        %v4368 = vunpack.c.0.s8 %v4367
        %v4369 = vlaneseq
        %v4370 = vshrl.u32 %v4369, 7
        %v4371 = vsub.s32 %v4368, %v4370
        %v4372 = vrot.slane %v4350, %v4371
        %v4374 = vunpack.c.l.s4 1966171168
        %v4375 = vunpack.c.0.s8 %v4374
        %v4376 = vlaneseq
        %v4377 = vshrl.u32 %v4376, 7
        %v4378 = vsub.s32 %v4375, %v4377
        %v4379 = vrot.slane %v4351, %v4378
        %v4380 = vcombine.high %v4358, %v4358
        %v4381 = vcombine.high %v4365, %v4365
        %v4382 = vcombine.high %v4372, %v4372
        %v4383 = vcombine.high %v4379, %v4379
        %4392 = vst.msk [vmem:[%s204 + $0x18] sm:$0x1] %vm778, %v4358
        %4393 = vst.msk [vmem:[%s204 + $0x38] sm:$0x1] %vm778, %v4372
        %4394 = vst.msk [vmem:[%s204 + $0x58] sm:$0x1] %vm778, %v4380
        %4395 = vst.msk [vmem:[%s204 + $0x78] sm:$0x1] %vm778, %v4382
        %4396 = vst.msk [vmem:[%s204 + $0x98] sm:$0x1] %vm778, %v4365
        %4397 = vst.msk [vmem:[%s204 + $0xb8] sm:$0x1] %vm778, %v4379
        %4398 = vst.msk [vmem:[%s204 + $0xd8] sm:$0x1] %vm778, %v4381
        %4399 = vst.msk [vmem:[%s204 + $0xf8] sm:$0x1] %vm778, %v4383
        %v4400 = vmul.f32 %v4328, 0.25
        %v4401 = vadd.f32 %v4331, %v4400
        %v4402 = vmax.f32 %v4401, 0.0
        %v4404 = vcombine.high %v4402, %v4402
        %v4406 = vunpack.c.l.s4 1966171168
        %v4407 = vunpack.c.0.s8 %v4406
        %v4408 = vlaneseq
        %v4409 = vshrl.u32 %v4408, 7
        %v4410 = vsub.s32 %v4407, %v4409
        %v4411 = vrot.slane %v4402, %v4410
        %v4413 = vunpack.c.l.s4 1966171168
        %v4414 = vunpack.c.0.s8 %v4413
        %v4415 = vlaneseq
        %v4416 = vshrl.u32 %v4415, 7
        %v4417 = vsub.s32 %v4414, %v4416
        %v4418 = vrot.slane %v4404, %v4417
        %v4419 = vcombine.high %v4411, %v4411
        %v4420 = vcombine.high %v4418, %v4418
        %v4422 = vunpack.c.l.s4 1966171168
        %v4423 = vunpack.c.0.s8 %v4422
        %v4424 = vlaneseq
        %v4425 = vshrl.u32 %v4424, 7
        %v4426 = vsub.s32 %v4423, %v4425
        %v4427 = vrot.slane %v4411, %v4426
        %v4429 = vunpack.c.l.s4 1966171168
        %v4430 = vunpack.c.0.s8 %v4429
        %v4431 = vlaneseq
        %v4432 = vshrl.u32 %v4431, 7
        %v4433 = vsub.s32 %v4430, %v4432
        %v4434 = vrot.slane %v4418, %v4433
        %v4436 = vunpack.c.l.s4 1966171168
        %v4437 = vunpack.c.0.s8 %v4436
        %v4438 = vlaneseq
        %v4439 = vshrl.u32 %v4438, 7
        %v4440 = vsub.s32 %v4437, %v4439
        %v4441 = vrot.slane %v4419, %v4440
        %v4443 = vunpack.c.l.s4 1966171168
        %v4444 = vunpack.c.0.s8 %v4443
        %v4445 = vlaneseq
        %v4446 = vshrl.u32 %v4445, 7
        %v4447 = vsub.s32 %v4444, %v4446
        %v4448 = vrot.slane %v4420, %v4447
        %v4449 = vcombine.high %v4427, %v4427
        %v4450 = vcombine.high %v4434, %v4434
        %v4451 = vcombine.high %v4441, %v4441
        %v4452 = vcombine.high %v4448, %v4448
        %4461 = vst.msk [vmem:[%s204 + $0x19] sm:$0x1] %vm778, %v4427
        %4462 = vst.msk [vmem:[%s204 + $0x39] sm:$0x1] %vm778, %v4441
        %4463 = vst.msk [vmem:[%s204 + $0x59] sm:$0x1] %vm778, %v4449
        %4464 = vst.msk [vmem:[%s204 + $0x79] sm:$0x1] %vm778, %v4451
        %4465 = vst.msk [vmem:[%s204 + $0x99] sm:$0x1] %vm778, %v4434
        %4466 = vst.msk [vmem:[%s204 + $0xb9] sm:$0x1] %vm778, %v4448
        %4467 = vst.msk [vmem:[%s204 + $0xd9] sm:$0x1] %vm778, %v4450
        %4468 = vst.msk [vmem:[%s204 + $0xf9] sm:$0x1] %vm778, %v4452
        %s4469 = sadd.s32 %s211, 14
        %p4470 = scmp.lt.s32.totalorder %s4469, 15
        %s4471 = scalar_select %p4470, %s4469, 15
        %s4472 = scalar_lea.vmem %s209, %s4471
        %v4473 = vld [vmem:[%s4472] sm:$0x1]
        %v4474 = vld [vmem:[%s4472 + $0x10] sm:$0x1]
        %v4475 = vld [vmem:[%s4472 + $0x20] sm:$0x1]
        %v4476 = vld [vmem:[%s4472 + $0x30] sm:$0x1]
        %v4481 = vrot.slane %v4474, 7
        %v4482 = vsel %vm234, %v4481, %v4473
        %v4483 = vrot.slane %v4475, 6
        %v4484 = vsel %vm237, %v4483, %v4482
        %v4485 = vrot.slane %v4476, 5
        %v4486 = vsel %vm240, %v4485, %v4484
        %v4487 = vsel %vm246, %v4486, 0
        %4489 = vmatprep.subr.mxu0 0.0
        %4490 = vmatpush1.msra.mxu0 %v4487
        %4491 = vmatprep.subr.mxu0 0.0
        %4492 = vmatpush1.msra.mxu0 0.0
        %4493 = vmatprep.subr.mxu0 0.0
        %4494 = vmatpush1.msra.mxu0 0.0
        %4495 = vmatprep.subr.mxu0 0.0
        %4496 = vmatpush1.msra.mxu0 0.0
        %4497 = vmatprep.subr.mxu0 0.0
        %4498 = vmatpush1.msra.mxu0 0.0
        %4499 = vmatprep.subr.mxu0 0.0
        %4500 = vmatpush1.msra.mxu0 0.0
        %4501 = vmatprep.subr.mxu0 0.0
        %4502 = vmatpush1.msra.mxu0 0.0
        %4503 = vmatprep.subr.mxu0 0.0
        %4504 = vmatpush1.msra.mxu0 0.0
        %4505 = vmatprep.subr.mxu0 0.0
        %4506 = vmatpush1.msra.mxu0 0.0
        %4507 = vmatprep.subr.mxu0 0.0
        %4508 = vmatpush1.msra.mxu0 0.0
        %4509 = vmatprep.subr.mxu0 0.0
        %4510 = vmatpush1.msra.mxu0 0.0
        %4511 = vmatprep.subr.mxu0 0.0
        %4512 = vmatpush1.msra.mxu0 0.0
        %4513 = vmatprep.subr.mxu0 0.0
        %4514 = vmatpush1.msra.mxu0 0.0
        %4515 = vmatprep.subr.mxu0 0.0
        %4516 = vmatpush1.msra.mxu0 0.0
        %4517 = vmatprep.subr.mxu0 0.0
        %4518 = vmatpush1.msra.mxu0 0.0
        %4519 = vmatprep.subr.mxu0 0.0
        %4520 = vmatpush1.msra.mxu0 0.0
        %4521 = vmatprep.subr.mxu0 0.0
        %4522 = vmatpush1.msra.mxu0 0.0
        %4523 = vmatprep.subr.mxu0 0.0
        %4524 = vmatpush1.msra.mxu0 0.0
        %4525 = vmatprep.subr.mxu0 0.0
        %4526 = vmatpush1.msra.mxu0 0.0
        %4527 = vmatprep.subr.mxu0 0.0
        %4528 = vmatpush1.msra.mxu0 0.0
        %4529 = vmatprep.subr.mxu0 0.0
        %4530 = vmatpush1.msra.mxu0 0.0
        %4531 = vmatprep.subr.mxu0 0.0
        %4532 = vmatpush1.msra.mxu0 0.0
        %4533 = vmatprep.subr.mxu0 0.0
        %4534 = vmatpush1.msra.mxu0 0.0
        %4535 = vmatprep.subr.mxu0 0.0
        %4536 = vmatpush1.msra.mxu0 0.0
        %4537 = vmatprep.subr.mxu0 0.0
        %4538 = vmatpush1.msra.mxu0 0.0
        %4539 = vmatprep.subr.mxu0 0.0
        %4540 = vmatpush1.msra.mxu0 0.0
        %4541 = vmatprep.subr.mxu0 0.0
        %4542 = vmatpush1.msra.mxu0 0.0
        %4543 = vmatprep.subr.mxu0 0.0
        %4544 = vmatpush1.msra.mxu0 0.0
        %4545 = vmatprep.subr.mxu0 0.0
        %4546 = vmatpush1.msra.mxu0 0.0
        %4547 = vmatprep.subr.mxu0 0.0
        %4548 = vmatpush1.msra.mxu0 0.0
        %4549 = vmatprep.subr.mxu0 0.0
        %4550 = vmatpush1.msra.mxu0 0.0
        %4551 = vmatprep.subr.mxu0 0.0
        %4552 = vmatpush1.msra.mxu0 0.0
        %4553 = vmatprep.mubr.f32.mxu0 0.0
        %4554 = vmatmul.mubr.f32.gmra.mrb[0].mxu0 %v244
        %v4555 = vpop.f32.mrb[0].mxu0
        %v4556 = vadd.f32 %v227, %v4555
        %v4557 = vpop.f32.mrb[0].mxu0
        %4558 = vdwg.mxu0
        %v4560 = vsel %vm319, %v4556, 0
        %4562 = vmatprep.subr.mxu0 0.0
        %4563 = vmatpush1.msra.mxu0 %v214
        %4564 = vmatprep.subr.mxu0 0.0
        %4565 = vmatpush1.msra.mxu0 %v215
        %4566 = vmatprep.subr.mxu0 0.0
        %4567 = vmatpush1.msra.mxu0 0.0
        %4568 = vmatprep.subr.mxu0 0.0
        %4569 = vmatpush1.msra.mxu0 0.0
        %4570 = vmatprep.subr.mxu0 0.0
        %4571 = vmatpush1.msra.mxu0 0.0
        %4572 = vmatprep.subr.mxu0 0.0
        %4573 = vmatpush1.msra.mxu0 0.0
        %4574 = vmatprep.subr.mxu0 0.0
        %4575 = vmatpush1.msra.mxu0 0.0
        %4576 = vmatprep.subr.mxu0 0.0
        %4577 = vmatpush1.msra.mxu0 0.0
        %4578 = vmatprep.subr.mxu0 0.0
        %4579 = vmatpush1.msra.mxu0 0.0
        %4580 = vmatprep.subr.mxu0 0.0
        %4581 = vmatpush1.msra.mxu0 0.0
        %4582 = vmatprep.subr.mxu0 0.0
        %4583 = vmatpush1.msra.mxu0 0.0
        %4584 = vmatprep.subr.mxu0 0.0
        %4585 = vmatpush1.msra.mxu0 0.0
        %4586 = vmatprep.subr.mxu0 0.0
        %4587 = vmatpush1.msra.mxu0 0.0
        %4588 = vmatprep.subr.mxu0 0.0
        %4589 = vmatpush1.msra.mxu0 0.0
        %4590 = vmatprep.subr.mxu0 0.0
        %4591 = vmatpush1.msra.mxu0 0.0
        %4592 = vmatprep.subr.mxu0 0.0
        %4593 = vmatpush1.msra.mxu0 0.0
        %4594 = vmatprep.subr.mxu0 0.0
        %4595 = vmatpush1.msra.mxu0 0.0
        %4596 = vmatprep.subr.mxu0 0.0
        %4597 = vmatpush1.msra.mxu0 0.0
        %4598 = vmatprep.subr.mxu0 0.0
        %4599 = vmatpush1.msra.mxu0 0.0
        %4600 = vmatprep.subr.mxu0 0.0
        %4601 = vmatpush1.msra.mxu0 0.0
        %4602 = vmatprep.subr.mxu0 0.0
        %4603 = vmatpush1.msra.mxu0 0.0
        %4604 = vmatprep.subr.mxu0 0.0
        %4605 = vmatpush1.msra.mxu0 0.0
        %4606 = vmatprep.subr.mxu0 0.0
        %4607 = vmatpush1.msra.mxu0 0.0
        %4608 = vmatprep.subr.mxu0 0.0
        %4609 = vmatpush1.msra.mxu0 0.0
        %4610 = vmatprep.subr.mxu0 0.0
        %4611 = vmatpush1.msra.mxu0 0.0
        %4612 = vmatprep.subr.mxu0 0.0
        %4613 = vmatpush1.msra.mxu0 0.0
        %4614 = vmatprep.subr.mxu0 0.0
        %4615 = vmatpush1.msra.mxu0 0.0
        %4616 = vmatprep.subr.mxu0 0.0
        %4617 = vmatpush1.msra.mxu0 0.0
        %4618 = vmatprep.subr.mxu0 0.0
        %4619 = vmatpush1.msra.mxu0 0.0
        %4620 = vmatprep.subr.mxu0 0.0
        %4621 = vmatpush1.msra.mxu0 0.0
        %4622 = vmatprep.subr.mxu0 0.0
        %4623 = vmatpush1.msra.mxu0 0.0
        %4624 = vmatprep.subr.mxu0 0.0
        %4625 = vmatpush1.msra.mxu0 0.0
        %4626 = vmatprep.mubr.f32.mxu0 0.0
        %4627 = vmatmul.mubr.f32.gmra.mrb[0].mxu0 %v4560
        %v4628 = vpop.f32.mrb[0].mxu0
        %v4629 = vadd.f32 0.0, %v4628
        %v4630 = vpop.f32.mrb[0].mxu0
        %4631 = vdwg.mxu0
        %v4632 = vmul.f32 %v4328, 0.75
        %v4633 = vadd.f32 %v4632, %v4099
        %v4634 = vmax.f32 %v4633, 0.0
        %v4636 = vcombine.high %v4634, %v4634
        %v4638 = vunpack.c.l.s4 1966171168
        %v4639 = vunpack.c.0.s8 %v4638
        %v4640 = vlaneseq
        %v4641 = vshrl.u32 %v4640, 7
        %v4642 = vsub.s32 %v4639, %v4641
        %v4643 = vrot.slane %v4634, %v4642
        %v4645 = vunpack.c.l.s4 1966171168
        %v4646 = vunpack.c.0.s8 %v4645
        %v4647 = vlaneseq
        %v4648 = vshrl.u32 %v4647, 7
        %v4649 = vsub.s32 %v4646, %v4648
        %v4650 = vrot.slane %v4636, %v4649
        %v4651 = vcombine.high %v4643, %v4643
        %v4652 = vcombine.high %v4650, %v4650
        %v4654 = vunpack.c.l.s4 1966171168
        %v4655 = vunpack.c.0.s8 %v4654
        %v4656 = vlaneseq
        %v4657 = vshrl.u32 %v4656, 7
        %v4658 = vsub.s32 %v4655, %v4657
        %v4659 = vrot.slane %v4643, %v4658
        %v4661 = vunpack.c.l.s4 1966171168
        %v4662 = vunpack.c.0.s8 %v4661
        %v4663 = vlaneseq
        %v4664 = vshrl.u32 %v4663, 7
        %v4665 = vsub.s32 %v4662, %v4664
        %v4666 = vrot.slane %v4650, %v4665
        %v4668 = vunpack.c.l.s4 1966171168
        %v4669 = vunpack.c.0.s8 %v4668
        %v4670 = vlaneseq
        %v4671 = vshrl.u32 %v4670, 7
        %v4672 = vsub.s32 %v4669, %v4671
        %v4673 = vrot.slane %v4651, %v4672
        %v4675 = vunpack.c.l.s4 1966171168
        %v4676 = vunpack.c.0.s8 %v4675
        %v4677 = vlaneseq
        %v4678 = vshrl.u32 %v4677, 7
        %v4679 = vsub.s32 %v4676, %v4678
        %v4680 = vrot.slane %v4652, %v4679
        %v4681 = vcombine.high %v4659, %v4659
        %v4682 = vcombine.high %v4666, %v4666
        %v4683 = vcombine.high %v4673, %v4673
        %v4684 = vcombine.high %v4680, %v4680
        %4693 = vst.msk [vmem:[%s204 + $0x1a] sm:$0x1] %vm778, %v4659
        %4694 = vst.msk [vmem:[%s204 + $0x3a] sm:$0x1] %vm778, %v4673
        %4695 = vst.msk [vmem:[%s204 + $0x5a] sm:$0x1] %vm778, %v4681
        %4696 = vst.msk [vmem:[%s204 + $0x7a] sm:$0x1] %vm778, %v4683
        %4697 = vst.msk [vmem:[%s204 + $0x9a] sm:$0x1] %vm778, %v4666
        %4698 = vst.msk [vmem:[%s204 + $0xba] sm:$0x1] %vm778, %v4680
        %4699 = vst.msk [vmem:[%s204 + $0xda] sm:$0x1] %vm778, %v4682
        %4700 = vst.msk [vmem:[%s204 + $0xfa] sm:$0x1] %vm778, %v4684
        %v4701 = vmul.f32 %v4629, 0.25
        %v4702 = vadd.f32 %v4632, %v4701
        %v4703 = vmax.f32 %v4702, 0.0
        %v4705 = vcombine.high %v4703, %v4703
        %v4707 = vunpack.c.l.s4 1966171168
        %v4708 = vunpack.c.0.s8 %v4707
        %v4709 = vlaneseq
        %v4710 = vshrl.u32 %v4709, 7
        %v4711 = vsub.s32 %v4708, %v4710
        %v4712 = vrot.slane %v4703, %v4711
        %v4714 = vunpack.c.l.s4 1966171168
        %v4715 = vunpack.c.0.s8 %v4714
        %v4716 = vlaneseq
        %v4717 = vshrl.u32 %v4716, 7
        %v4718 = vsub.s32 %v4715, %v4717
        %v4719 = vrot.slane %v4705, %v4718
        %v4720 = vcombine.high %v4712, %v4712
        %v4721 = vcombine.high %v4719, %v4719
        %v4723 = vunpack.c.l.s4 1966171168
        %v4724 = vunpack.c.0.s8 %v4723
        %v4725 = vlaneseq
        %v4726 = vshrl.u32 %v4725, 7
        %v4727 = vsub.s32 %v4724, %v4726
        %v4728 = vrot.slane %v4712, %v4727
        %v4730 = vunpack.c.l.s4 1966171168
        %v4731 = vunpack.c.0.s8 %v4730
        %v4732 = vlaneseq
        %v4733 = vshrl.u32 %v4732, 7
        %v4734 = vsub.s32 %v4731, %v4733
        %v4735 = vrot.slane %v4719, %v4734
        %v4737 = vunpack.c.l.s4 1966171168
        %v4738 = vunpack.c.0.s8 %v4737
        %v4739 = vlaneseq
        %v4740 = vshrl.u32 %v4739, 7
        %v4741 = vsub.s32 %v4738, %v4740
        %v4742 = vrot.slane %v4720, %v4741
        %v4744 = vunpack.c.l.s4 1966171168
        %v4745 = vunpack.c.0.s8 %v4744
        %v4746 = vlaneseq
        %v4747 = vshrl.u32 %v4746, 7
        %v4748 = vsub.s32 %v4745, %v4747
        %v4749 = vrot.slane %v4721, %v4748
        %v4750 = vcombine.high %v4728, %v4728
        %v4751 = vcombine.high %v4735, %v4735
        %v4752 = vcombine.high %v4742, %v4742
        %v4753 = vcombine.high %v4749, %v4749
        %4762 = vst.msk [vmem:[%s204 + $0x1b] sm:$0x1] %vm778, %v4728
        %4763 = vst.msk [vmem:[%s204 + $0x3b] sm:$0x1] %vm778, %v4742
        %4764 = vst.msk [vmem:[%s204 + $0x5b] sm:$0x1] %vm778, %v4750
        %4765 = vst.msk [vmem:[%s204 + $0x7b] sm:$0x1] %vm778, %v4752
        %4766 = vst.msk [vmem:[%s204 + $0x9b] sm:$0x1] %vm778, %v4735
        %4767 = vst.msk [vmem:[%s204 + $0xbb] sm:$0x1] %vm778, %v4749
        %4768 = vst.msk [vmem:[%s204 + $0xdb] sm:$0x1] %vm778, %v4751
        %4769 = vst.msk [vmem:[%s204 + $0xfb] sm:$0x1] %vm778, %v4753
        %s4770 = sadd.s32 %s211, 15
        %p4771 = scmp.lt.s32.totalorder %s4770, 15
        %s4772 = scalar_select %p4771, %s4770, 15
        %s4773 = scalar_lea.vmem %s209, %s4772
        %v4774 = vld [vmem:[%s4773] sm:$0x1]
        %v4775 = vld [vmem:[%s4773 + $0x10] sm:$0x1]
        %v4776 = vld [vmem:[%s4773 + $0x20] sm:$0x1]
        %v4777 = vld [vmem:[%s4773 + $0x30] sm:$0x1]
        %v4782 = vrot.slane %v4775, 7
        %v4783 = vsel %vm234, %v4782, %v4774
        %v4784 = vrot.slane %v4776, 6
        %v4785 = vsel %vm237, %v4784, %v4783
        %v4786 = vrot.slane %v4777, 5
        %v4787 = vsel %vm240, %v4786, %v4785
        %v4788 = vsel %vm246, %v4787, 0
        %4790 = vmatprep.subr.mxu0 0.0
        %4791 = vmatpush1.msra.mxu0 %v4788
        %4792 = vmatprep.subr.mxu0 0.0
        %4793 = vmatpush1.msra.mxu0 0.0
        %4794 = vmatprep.subr.mxu0 0.0
        %4795 = vmatpush1.msra.mxu0 0.0
        %4796 = vmatprep.subr.mxu0 0.0
        %4797 = vmatpush1.msra.mxu0 0.0
        %4798 = vmatprep.subr.mxu0 0.0
        %4799 = vmatpush1.msra.mxu0 0.0
        %4800 = vmatprep.subr.mxu0 0.0
        %4801 = vmatpush1.msra.mxu0 0.0
        %4802 = vmatprep.subr.mxu0 0.0
        %4803 = vmatpush1.msra.mxu0 0.0
        %4804 = vmatprep.subr.mxu0 0.0
        %4805 = vmatpush1.msra.mxu0 0.0
        %4806 = vmatprep.subr.mxu0 0.0
        %4807 = vmatpush1.msra.mxu0 0.0
        %4808 = vmatprep.subr.mxu0 0.0
        %4809 = vmatpush1.msra.mxu0 0.0
        %4810 = vmatprep.subr.mxu0 0.0
        %4811 = vmatpush1.msra.mxu0 0.0
        %4812 = vmatprep.subr.mxu0 0.0
        %4813 = vmatpush1.msra.mxu0 0.0
        %4814 = vmatprep.subr.mxu0 0.0
        %4815 = vmatpush1.msra.mxu0 0.0
        %4816 = vmatprep.subr.mxu0 0.0
        %4817 = vmatpush1.msra.mxu0 0.0
        %4818 = vmatprep.subr.mxu0 0.0
        %4819 = vmatpush1.msra.mxu0 0.0
        %4820 = vmatprep.subr.mxu0 0.0
        %4821 = vmatpush1.msra.mxu0 0.0
        %4822 = vmatprep.subr.mxu0 0.0
        %4823 = vmatpush1.msra.mxu0 0.0
        %4824 = vmatprep.subr.mxu0 0.0
        %4825 = vmatpush1.msra.mxu0 0.0
        %4826 = vmatprep.subr.mxu0 0.0
        %4827 = vmatpush1.msra.mxu0 0.0
        %4828 = vmatprep.subr.mxu0 0.0
        %4829 = vmatpush1.msra.mxu0 0.0
        %4830 = vmatprep.subr.mxu0 0.0
        %4831 = vmatpush1.msra.mxu0 0.0
        %4832 = vmatprep.subr.mxu0 0.0
        %4833 = vmatpush1.msra.mxu0 0.0
        %4834 = vmatprep.subr.mxu0 0.0
        %4835 = vmatpush1.msra.mxu0 0.0
        %4836 = vmatprep.subr.mxu0 0.0
        %4837 = vmatpush1.msra.mxu0 0.0
        %4838 = vmatprep.subr.mxu0 0.0
        %4839 = vmatpush1.msra.mxu0 0.0
        %4840 = vmatprep.subr.mxu0 0.0
        %4841 = vmatpush1.msra.mxu0 0.0
        %4842 = vmatprep.subr.mxu0 0.0
        %4843 = vmatpush1.msra.mxu0 0.0
        %4844 = vmatprep.subr.mxu0 0.0
        %4845 = vmatpush1.msra.mxu0 0.0
        %4846 = vmatprep.subr.mxu0 0.0
        %4847 = vmatpush1.msra.mxu0 0.0
        %4848 = vmatprep.subr.mxu0 0.0
        %4849 = vmatpush1.msra.mxu0 0.0
        %4850 = vmatprep.subr.mxu0 0.0
        %4851 = vmatpush1.msra.mxu0 0.0
        %4852 = vmatprep.subr.mxu0 0.0
        %4853 = vmatpush1.msra.mxu0 0.0
        %4854 = vmatprep.mubr.f32.mxu0 0.0
        %4855 = vmatmul.mubr.f32.gmra.mrb[0].mxu0 %v244
        %v4856 = vpop.f32.mrb[0].mxu0
        %v4857 = vadd.f32 %v227, %v4856
        %v4858 = vpop.f32.mrb[0].mxu0
        %4859 = vdwg.mxu0
        %v4861 = vsel %vm319, %v4857, 0
        %4863 = vmatprep.subr.mxu0 0.0
        %4864 = vmatpush1.msra.mxu0 %v214
        %4865 = vmatprep.subr.mxu0 0.0
        %4866 = vmatpush1.msra.mxu0 %v215
        %4867 = vmatprep.subr.mxu0 0.0
        %4868 = vmatpush1.msra.mxu0 0.0
        %4869 = vmatprep.subr.mxu0 0.0
        %4870 = vmatpush1.msra.mxu0 0.0
        %4871 = vmatprep.subr.mxu0 0.0
        %4872 = vmatpush1.msra.mxu0 0.0
        %4873 = vmatprep.subr.mxu0 0.0
        %4874 = vmatpush1.msra.mxu0 0.0
        %4875 = vmatprep.subr.mxu0 0.0
        %4876 = vmatpush1.msra.mxu0 0.0
        %4877 = vmatprep.subr.mxu0 0.0
        %4878 = vmatpush1.msra.mxu0 0.0
        %4879 = vmatprep.subr.mxu0 0.0
        %4880 = vmatpush1.msra.mxu0 0.0
        %4881 = vmatprep.subr.mxu0 0.0
        %4882 = vmatpush1.msra.mxu0 0.0
        %4883 = vmatprep.subr.mxu0 0.0
        %4884 = vmatpush1.msra.mxu0 0.0
        %4885 = vmatprep.subr.mxu0 0.0
        %4886 = vmatpush1.msra.mxu0 0.0
        %4887 = vmatprep.subr.mxu0 0.0
        %4888 = vmatpush1.msra.mxu0 0.0
        %4889 = vmatprep.subr.mxu0 0.0
        %4890 = vmatpush1.msra.mxu0 0.0
        %4891 = vmatprep.subr.mxu0 0.0
        %4892 = vmatpush1.msra.mxu0 0.0
        %4893 = vmatprep.subr.mxu0 0.0
        %4894 = vmatpush1.msra.mxu0 0.0
        %4895 = vmatprep.subr.mxu0 0.0
        %4896 = vmatpush1.msra.mxu0 0.0
        %4897 = vmatprep.subr.mxu0 0.0
        %4898 = vmatpush1.msra.mxu0 0.0
        %4899 = vmatprep.subr.mxu0 0.0
        %4900 = vmatpush1.msra.mxu0 0.0
        %4901 = vmatprep.subr.mxu0 0.0
        %4902 = vmatpush1.msra.mxu0 0.0
        %4903 = vmatprep.subr.mxu0 0.0
        %4904 = vmatpush1.msra.mxu0 0.0
        %4905 = vmatprep.subr.mxu0 0.0
        %4906 = vmatpush1.msra.mxu0 0.0
        %4907 = vmatprep.subr.mxu0 0.0
        %4908 = vmatpush1.msra.mxu0 0.0
        %4909 = vmatprep.subr.mxu0 0.0
        %4910 = vmatpush1.msra.mxu0 0.0
        %4911 = vmatprep.subr.mxu0 0.0
        %4912 = vmatpush1.msra.mxu0 0.0
        %4913 = vmatprep.subr.mxu0 0.0
        %4914 = vmatpush1.msra.mxu0 0.0
        %4915 = vmatprep.subr.mxu0 0.0
        %4916 = vmatpush1.msra.mxu0 0.0
        %4917 = vmatprep.subr.mxu0 0.0
        %4918 = vmatpush1.msra.mxu0 0.0
        %4919 = vmatprep.subr.mxu0 0.0
        %4920 = vmatpush1.msra.mxu0 0.0
        %4921 = vmatprep.subr.mxu0 0.0
        %4922 = vmatpush1.msra.mxu0 0.0
        %4923 = vmatprep.subr.mxu0 0.0
        %4924 = vmatpush1.msra.mxu0 0.0
        %4925 = vmatprep.subr.mxu0 0.0
        %4926 = vmatpush1.msra.mxu0 0.0
        %4927 = vmatprep.mubr.f32.mxu0 0.0
        %4928 = vmatmul.mubr.f32.gmra.mrb[0].mxu0 %v4861
        %v4929 = vpop.f32.mrb[0].mxu0
        %v4930 = vadd.f32 0.0, %v4929
        %v4931 = vpop.f32.mrb[0].mxu0
        %4932 = vdwg.mxu0
        %v4933 = vmul.f32 %v4629, 0.75
        %v4934 = vadd.f32 %v4933, %v4400
        %v4935 = vmax.f32 %v4934, 0.0
        %v4937 = vcombine.high %v4935, %v4935
        %v4939 = vunpack.c.l.s4 1966171168
        %v4940 = vunpack.c.0.s8 %v4939
        %v4941 = vlaneseq
        %v4942 = vshrl.u32 %v4941, 7
        %v4943 = vsub.s32 %v4940, %v4942
        %v4944 = vrot.slane %v4935, %v4943
        %v4946 = vunpack.c.l.s4 1966171168
        %v4947 = vunpack.c.0.s8 %v4946
        %v4948 = vlaneseq
        %v4949 = vshrl.u32 %v4948, 7
        %v4950 = vsub.s32 %v4947, %v4949
        %v4951 = vrot.slane %v4937, %v4950
        %v4952 = vcombine.high %v4944, %v4944
        %v4953 = vcombine.high %v4951, %v4951
        %v4955 = vunpack.c.l.s4 1966171168
        %v4956 = vunpack.c.0.s8 %v4955
        %v4957 = vlaneseq
        %v4958 = vshrl.u32 %v4957, 7
        %v4959 = vsub.s32 %v4956, %v4958
        %v4960 = vrot.slane %v4944, %v4959
        %v4962 = vunpack.c.l.s4 1966171168
        %v4963 = vunpack.c.0.s8 %v4962
        %v4964 = vlaneseq
        %v4965 = vshrl.u32 %v4964, 7
        %v4966 = vsub.s32 %v4963, %v4965
        %v4967 = vrot.slane %v4951, %v4966
        %v4969 = vunpack.c.l.s4 1966171168
        %v4970 = vunpack.c.0.s8 %v4969
        %v4971 = vlaneseq
        %v4972 = vshrl.u32 %v4971, 7
        %v4973 = vsub.s32 %v4970, %v4972
        %v4974 = vrot.slane %v4952, %v4973
        %v4976 = vunpack.c.l.s4 1966171168
        %v4977 = vunpack.c.0.s8 %v4976
        %v4978 = vlaneseq
        %v4979 = vshrl.u32 %v4978, 7
        %v4980 = vsub.s32 %v4977, %v4979
        %v4981 = vrot.slane %v4953, %v4980
        %v4982 = vcombine.high %v4960, %v4960
        %v4983 = vcombine.high %v4967, %v4967
        %v4984 = vcombine.high %v4974, %v4974
        %v4985 = vcombine.high %v4981, %v4981
        %4994 = vst.msk [vmem:[%s204 + $0x1c] sm:$0x1] %vm778, %v4960
        %4995 = vst.msk [vmem:[%s204 + $0x3c] sm:$0x1] %vm778, %v4974
        %4996 = vst.msk [vmem:[%s204 + $0x5c] sm:$0x1] %vm778, %v4982
        %4997 = vst.msk [vmem:[%s204 + $0x7c] sm:$0x1] %vm778, %v4984
        %4998 = vst.msk [vmem:[%s204 + $0x9c] sm:$0x1] %vm778, %v4967
        %4999 = vst.msk [vmem:[%s204 + $0xbc] sm:$0x1] %vm778, %v4981
        %5000 = vst.msk [vmem:[%s204 + $0xdc] sm:$0x1] %vm778, %v4983
        %5001 = vst.msk [vmem:[%s204 + $0xfc] sm:$0x1] %vm778, %v4985
        %v5002 = vmul.f32 %v4930, 0.25
        %v5003 = vadd.f32 %v4933, %v5002
        %v5004 = vmax.f32 %v5003, 0.0
        %v5006 = vcombine.high %v5004, %v5004
        %v5008 = vunpack.c.l.s4 1966171168
        %v5009 = vunpack.c.0.s8 %v5008
        %v5010 = vlaneseq
        %v5011 = vshrl.u32 %v5010, 7
        %v5012 = vsub.s32 %v5009, %v5011
        %v5013 = vrot.slane %v5004, %v5012
        %v5015 = vunpack.c.l.s4 1966171168
        %v5016 = vunpack.c.0.s8 %v5015
        %v5017 = vlaneseq
        %v5018 = vshrl.u32 %v5017, 7
        %v5019 = vsub.s32 %v5016, %v5018
        %v5020 = vrot.slane %v5006, %v5019
        %v5021 = vcombine.high %v5013, %v5013
        %v5022 = vcombine.high %v5020, %v5020
        %v5024 = vunpack.c.l.s4 1966171168
        %v5025 = vunpack.c.0.s8 %v5024
        %v5026 = vlaneseq
        %v5027 = vshrl.u32 %v5026, 7
        %v5028 = vsub.s32 %v5025, %v5027
        %v5029 = vrot.slane %v5013, %v5028
        %v5031 = vunpack.c.l.s4 1966171168
        %v5032 = vunpack.c.0.s8 %v5031
        %v5033 = vlaneseq
        %v5034 = vshrl.u32 %v5033, 7
        %v5035 = vsub.s32 %v5032, %v5034
        %v5036 = vrot.slane %v5020, %v5035
        %v5038 = vunpack.c.l.s4 1966171168
        %v5039 = vunpack.c.0.s8 %v5038
        %v5040 = vlaneseq
        %v5041 = vshrl.u32 %v5040, 7
        %v5042 = vsub.s32 %v5039, %v5041
        %v5043 = vrot.slane %v5021, %v5042
        %v5045 = vunpack.c.l.s4 1966171168
        %v5046 = vunpack.c.0.s8 %v5045
        %v5047 = vlaneseq
        %v5048 = vshrl.u32 %v5047, 7
        %v5049 = vsub.s32 %v5046, %v5048
        %v5050 = vrot.slane %v5022, %v5049
        %v5051 = vcombine.high %v5029, %v5029
        %v5052 = vcombine.high %v5036, %v5036
        %v5053 = vcombine.high %v5043, %v5043
        %v5054 = vcombine.high %v5050, %v5050
        %5063 = vst.msk [vmem:[%s204 + $0x1d] sm:$0x1] %vm778, %v5029
        %5064 = vst.msk [vmem:[%s204 + $0x3d] sm:$0x1] %vm778, %v5043
        %5065 = vst.msk [vmem:[%s204 + $0x5d] sm:$0x1] %vm778, %v5051
        %5066 = vst.msk [vmem:[%s204 + $0x7d] sm:$0x1] %vm778, %v5053
        %5067 = vst.msk [vmem:[%s204 + $0x9d] sm:$0x1] %vm778, %v5036
        %5068 = vst.msk [vmem:[%s204 + $0xbd] sm:$0x1] %vm778, %v5050
        %5069 = vst.msk [vmem:[%s204 + $0xdd] sm:$0x1] %vm778, %v5052
        %5070 = vst.msk [vmem:[%s204 + $0xfd] sm:$0x1] %vm778, %v5054
        %s5071 = sadd.s32 %s211, 16
        %p5072 = scmp.lt.s32.totalorder %s5071, 15
        %s5073 = scalar_select %p5072, %s5071, 15
        %s5074 = scalar_lea.vmem %s209, %s5073
        %v5075 = vld [vmem:[%s5074] sm:$0x1]
        %v5076 = vld [vmem:[%s5074 + $0x10] sm:$0x1]
        %v5077 = vld [vmem:[%s5074 + $0x20] sm:$0x1]
        %v5078 = vld [vmem:[%s5074 + $0x30] sm:$0x1]
        %v5083 = vrot.slane %v5076, 7
        %v5084 = vsel %vm234, %v5083, %v5075
        %v5085 = vrot.slane %v5077, 6
        %v5086 = vsel %vm237, %v5085, %v5084
        %v5087 = vrot.slane %v5078, 5
        %v5088 = vsel %vm240, %v5087, %v5086
        %v5089 = vsel %vm246, %v5088, 0
        %5091 = vmatprep.subr.mxu0 0.0
        %5092 = vmatpush1.msra.mxu0 %v5089
        %5093 = vmatprep.subr.mxu0 0.0
        %5094 = vmatpush1.msra.mxu0 0.0
        %5095 = vmatprep.subr.mxu0 0.0
        %5096 = vmatpush1.msra.mxu0 0.0
        %5097 = vmatprep.subr.mxu0 0.0
        %5098 = vmatpush1.msra.mxu0 0.0
        %5099 = vmatprep.subr.mxu0 0.0
        %5100 = vmatpush1.msra.mxu0 0.0
        %5101 = vmatprep.subr.mxu0 0.0
        %5102 = vmatpush1.msra.mxu0 0.0
        %5103 = vmatprep.subr.mxu0 0.0
        %5104 = vmatpush1.msra.mxu0 0.0
        %5105 = vmatprep.subr.mxu0 0.0
        %5106 = vmatpush1.msra.mxu0 0.0
        %5107 = vmatprep.subr.mxu0 0.0
        %5108 = vmatpush1.msra.mxu0 0.0
        %5109 = vmatprep.subr.mxu0 0.0
        %5110 = vmatpush1.msra.mxu0 0.0
        %5111 = vmatprep.subr.mxu0 0.0
        %5112 = vmatpush1.msra.mxu0 0.0
        %5113 = vmatprep.subr.mxu0 0.0
        %5114 = vmatpush1.msra.mxu0 0.0
        %5115 = vmatprep.subr.mxu0 0.0
        %5116 = vmatpush1.msra.mxu0 0.0
        %5117 = vmatprep.subr.mxu0 0.0
        %5118 = vmatpush1.msra.mxu0 0.0
        %5119 = vmatprep.subr.mxu0 0.0
        %5120 = vmatpush1.msra.mxu0 0.0
        %5121 = vmatprep.subr.mxu0 0.0
        %5122 = vmatpush1.msra.mxu0 0.0
        %5123 = vmatprep.subr.mxu0 0.0
        %5124 = vmatpush1.msra.mxu0 0.0
        %5125 = vmatprep.subr.mxu0 0.0
        %5126 = vmatpush1.msra.mxu0 0.0
        %5127 = vmatprep.subr.mxu0 0.0
        %5128 = vmatpush1.msra.mxu0 0.0
        %5129 = vmatprep.subr.mxu0 0.0
        %5130 = vmatpush1.msra.mxu0 0.0
        %5131 = vmatprep.subr.mxu0 0.0
        %5132 = vmatpush1.msra.mxu0 0.0
        %5133 = vmatprep.subr.mxu0 0.0
        %5134 = vmatpush1.msra.mxu0 0.0
        %5135 = vmatprep.subr.mxu0 0.0
        %5136 = vmatpush1.msra.mxu0 0.0
        %5137 = vmatprep.subr.mxu0 0.0
        %5138 = vmatpush1.msra.mxu0 0.0
        %5139 = vmatprep.subr.mxu0 0.0
        %5140 = vmatpush1.msra.mxu0 0.0
        %5141 = vmatprep.subr.mxu0 0.0
        %5142 = vmatpush1.msra.mxu0 0.0
        %5143 = vmatprep.subr.mxu0 0.0
        %5144 = vmatpush1.msra.mxu0 0.0
        %5145 = vmatprep.subr.mxu0 0.0
        %5146 = vmatpush1.msra.mxu0 0.0
        %5147 = vmatprep.subr.mxu0 0.0
        %5148 = vmatpush1.msra.mxu0 0.0
        %5149 = vmatprep.subr.mxu0 0.0
        %5150 = vmatpush1.msra.mxu0 0.0
        %5151 = vmatprep.subr.mxu0 0.0
        %5152 = vmatpush1.msra.mxu0 0.0
        %5153 = vmatprep.subr.mxu0 0.0
        %5154 = vmatpush1.msra.mxu0 0.0
        %5155 = vmatprep.mubr.f32.mxu0 0.0
        %5156 = vmatmul.mubr.f32.gmra.mrb[0].mxu0 %v244
        %v5157 = vpop.f32.mrb[0].mxu0
        %v5158 = vadd.f32 %v227, %v5157
        %v5159 = vpop.f32.mrb[0].mxu0
        %5160 = vdwg.mxu0
        %v5162 = vsel %vm319, %v5158, 0
        %5164 = vmatprep.subr.mxu0 0.0
        %5165 = vmatpush1.msra.mxu0 %v214
        %5166 = vmatprep.subr.mxu0 0.0
        %5167 = vmatpush1.msra.mxu0 %v215
        %5168 = vmatprep.subr.mxu0 0.0
        %5169 = vmatpush1.msra.mxu0 0.0
        %5170 = vmatprep.subr.mxu0 0.0
        %5171 = vmatpush1.msra.mxu0 0.0
        %5172 = vmatprep.subr.mxu0 0.0
        %5173 = vmatpush1.msra.mxu0 0.0
        %5174 = vmatprep.subr.mxu0 0.0
        %5175 = vmatpush1.msra.mxu0 0.0
        %5176 = vmatprep.subr.mxu0 0.0
        %5177 = vmatpush1.msra.mxu0 0.0
        %5178 = vmatprep.subr.mxu0 0.0
        %5179 = vmatpush1.msra.mxu0 0.0
        %5180 = vmatprep.subr.mxu0 0.0
        %5181 = vmatpush1.msra.mxu0 0.0
        %5182 = vmatprep.subr.mxu0 0.0
        %5183 = vmatpush1.msra.mxu0 0.0
        %5184 = vmatprep.subr.mxu0 0.0
        %5185 = vmatpush1.msra.mxu0 0.0
        %5186 = vmatprep.subr.mxu0 0.0
        %5187 = vmatpush1.msra.mxu0 0.0
        %5188 = vmatprep.subr.mxu0 0.0
        %5189 = vmatpush1.msra.mxu0 0.0
        %5190 = vmatprep.subr.mxu0 0.0
        %5191 = vmatpush1.msra.mxu0 0.0
        %5192 = vmatprep.subr.mxu0 0.0
        %5193 = vmatpush1.msra.mxu0 0.0
        %5194 = vmatprep.subr.mxu0 0.0
        %5195 = vmatpush1.msra.mxu0 0.0
        %5196 = vmatprep.subr.mxu0 0.0
        %5197 = vmatpush1.msra.mxu0 0.0
        %5198 = vmatprep.subr.mxu0 0.0
        %5199 = vmatpush1.msra.mxu0 0.0
        %5200 = vmatprep.subr.mxu0 0.0
        %5201 = vmatpush1.msra.mxu0 0.0
        %5202 = vmatprep.subr.mxu0 0.0
        %5203 = vmatpush1.msra.mxu0 0.0
        %5204 = vmatprep.subr.mxu0 0.0
        %5205 = vmatpush1.msra.mxu0 0.0
        %5206 = vmatprep.subr.mxu0 0.0
        %5207 = vmatpush1.msra.mxu0 0.0
        %5208 = vmatprep.subr.mxu0 0.0
        %5209 = vmatpush1.msra.mxu0 0.0
        %5210 = vmatprep.subr.mxu0 0.0
        %5211 = vmatpush1.msra.mxu0 0.0
        %5212 = vmatprep.subr.mxu0 0.0
        %5213 = vmatpush1.msra.mxu0 0.0
        %5214 = vmatprep.subr.mxu0 0.0
        %5215 = vmatpush1.msra.mxu0 0.0
        %5216 = vmatprep.subr.mxu0 0.0
        %5217 = vmatpush1.msra.mxu0 0.0
        %5218 = vmatprep.subr.mxu0 0.0
        %5219 = vmatpush1.msra.mxu0 0.0
        %5220 = vmatprep.subr.mxu0 0.0
        %5221 = vmatpush1.msra.mxu0 0.0
        %5222 = vmatprep.subr.mxu0 0.0
        %5223 = vmatpush1.msra.mxu0 0.0
        %5224 = vmatprep.subr.mxu0 0.0
        %5225 = vmatpush1.msra.mxu0 0.0
        %5226 = vmatprep.subr.mxu0 0.0
        %5227 = vmatpush1.msra.mxu0 0.0
        %5228 = vmatprep.mubr.f32.mxu0 0.0
        %5229 = vmatmul.mubr.f32.gmra.mrb[0].mxu0 %v5162
        %v5230 = vpop.f32.mrb[0].mxu0
        %v5231 = vadd.f32 0.0, %v5230
        %v5232 = vpop.f32.mrb[0].mxu0
        %5233 = vdwg.mxu0
        %v5234 = vmul.f32 %v4930, 0.75
        %v5235 = vadd.f32 %v5234, %v4701
        %v5236 = vmax.f32 %v5235, 0.0
        %v5238 = vcombine.high %v5236, %v5236
        %v5240 = vunpack.c.l.s4 1966171168
        %v5241 = vunpack.c.0.s8 %v5240
        %v5242 = vlaneseq
        %v5243 = vshrl.u32 %v5242, 7
        %v5244 = vsub.s32 %v5241, %v5243
        %v5245 = vrot.slane %v5236, %v5244
        %v5247 = vunpack.c.l.s4 1966171168
        %v5248 = vunpack.c.0.s8 %v5247
        %v5249 = vlaneseq
        %v5250 = vshrl.u32 %v5249, 7
        %v5251 = vsub.s32 %v5248, %v5250
        %v5252 = vrot.slane %v5238, %v5251
        %v5253 = vcombine.high %v5245, %v5245
        %v5254 = vcombine.high %v5252, %v5252
        %v5256 = vunpack.c.l.s4 1966171168
        %v5257 = vunpack.c.0.s8 %v5256
        %v5258 = vlaneseq
        %v5259 = vshrl.u32 %v5258, 7
        %v5260 = vsub.s32 %v5257, %v5259
        %v5261 = vrot.slane %v5245, %v5260
        %v5263 = vunpack.c.l.s4 1966171168
        %v5264 = vunpack.c.0.s8 %v5263
        %v5265 = vlaneseq
        %v5266 = vshrl.u32 %v5265, 7
        %v5267 = vsub.s32 %v5264, %v5266
        %v5268 = vrot.slane %v5252, %v5267
        %v5270 = vunpack.c.l.s4 1966171168
        %v5271 = vunpack.c.0.s8 %v5270
        %v5272 = vlaneseq
        %v5273 = vshrl.u32 %v5272, 7
        %v5274 = vsub.s32 %v5271, %v5273
        %v5275 = vrot.slane %v5253, %v5274
        %v5277 = vunpack.c.l.s4 1966171168
        %v5278 = vunpack.c.0.s8 %v5277
        %v5279 = vlaneseq
        %v5280 = vshrl.u32 %v5279, 7
        %v5281 = vsub.s32 %v5278, %v5280
        %v5282 = vrot.slane %v5254, %v5281
        %v5283 = vcombine.high %v5261, %v5261
        %v5284 = vcombine.high %v5268, %v5268
        %v5285 = vcombine.high %v5275, %v5275
        %v5286 = vcombine.high %v5282, %v5282
        %5295 = vst.msk [vmem:[%s204 + $0x1e] sm:$0x1] %vm778, %v5261
        %5296 = vst.msk [vmem:[%s204 + $0x3e] sm:$0x1] %vm778, %v5275
        %5297 = vst.msk [vmem:[%s204 + $0x5e] sm:$0x1] %vm778, %v5283
        %5298 = vst.msk [vmem:[%s204 + $0x7e] sm:$0x1] %vm778, %v5285
        %5299 = vst.msk [vmem:[%s204 + $0x9e] sm:$0x1] %vm778, %v5268
        %5300 = vst.msk [vmem:[%s204 + $0xbe] sm:$0x1] %vm778, %v5282
        %5301 = vst.msk [vmem:[%s204 + $0xde] sm:$0x1] %vm778, %v5284
        %5302 = vst.msk [vmem:[%s204 + $0xfe] sm:$0x1] %vm778, %v5286
        %v5303 = vmul.f32 %v5231, 0.25
        %v5304 = vadd.f32 %v5234, %v5303
        %v5305 = vmax.f32 %v5304, 0.0
        %v5307 = vcombine.high %v5305, %v5305
        %v5309 = vunpack.c.l.s4 1966171168
        %v5310 = vunpack.c.0.s8 %v5309
        %v5311 = vlaneseq
        %v5312 = vshrl.u32 %v5311, 7
        %v5313 = vsub.s32 %v5310, %v5312
        %v5314 = vrot.slane %v5305, %v5313
        %v5316 = vunpack.c.l.s4 1966171168
        %v5317 = vunpack.c.0.s8 %v5316
        %v5318 = vlaneseq
        %v5319 = vshrl.u32 %v5318, 7
        %v5320 = vsub.s32 %v5317, %v5319
        %v5321 = vrot.slane %v5307, %v5320
        %v5322 = vcombine.high %v5314, %v5314
        %v5323 = vcombine.high %v5321, %v5321
        %v5325 = vunpack.c.l.s4 1966171168
        %v5326 = vunpack.c.0.s8 %v5325
        %v5327 = vlaneseq
        %v5328 = vshrl.u32 %v5327, 7
        %v5329 = vsub.s32 %v5326, %v5328
        %v5330 = vrot.slane %v5314, %v5329
        %v5332 = vunpack.c.l.s4 1966171168
        %v5333 = vunpack.c.0.s8 %v5332
        %v5334 = vlaneseq
        %v5335 = vshrl.u32 %v5334, 7
        %v5336 = vsub.s32 %v5333, %v5335
        %v5337 = vrot.slane %v5321, %v5336
        %v5339 = vunpack.c.l.s4 1966171168
        %v5340 = vunpack.c.0.s8 %v5339
        %v5341 = vlaneseq
        %v5342 = vshrl.u32 %v5341, 7
        %v5343 = vsub.s32 %v5340, %v5342
        %v5344 = vrot.slane %v5322, %v5343
        %v5346 = vunpack.c.l.s4 1966171168
        %v5347 = vunpack.c.0.s8 %v5346
        %v5348 = vlaneseq
        %v5349 = vshrl.u32 %v5348, 7
        %v5350 = vsub.s32 %v5347, %v5349
        %v5351 = vrot.slane %v5323, %v5350
        %v5352 = vcombine.high %v5330, %v5330
        %v5353 = vcombine.high %v5337, %v5337
        %v5354 = vcombine.high %v5344, %v5344
        %v5355 = vcombine.high %v5351, %v5351
        %5364 = vst.msk [vmem:[%s204 + $0x1f] sm:$0x1] %vm778, %v5330
        %5365 = vst.msk [vmem:[%s204 + $0x3f] sm:$0x1] %vm778, %v5344
        %5366 = vst.msk [vmem:[%s204 + $0x5f] sm:$0x1] %vm778, %v5352
        %5367 = vst.msk [vmem:[%s204 + $0x7f] sm:$0x1] %vm778, %v5354
        %5368 = vst.msk [vmem:[%s204 + $0x9f] sm:$0x1] %vm778, %v5337
        %5369 = vst.msk [vmem:[%s204 + $0xbf] sm:$0x1] %vm778, %v5351
        %5370 = vst.msk [vmem:[%s204 + $0xdf] sm:$0x1] %vm778, %v5353
        %5371 = vst.msk [vmem:[%s204 + $0xff] sm:$0x1] %vm778, %v5355
        %s5372 = sand.u32 %s129, 1
        %s5373 = scalar_lea.sflag [#allocation3], %s5372
        %s5374 = sand.u32 %s129, 1
        %s5375 = smul.addr %s5374, 256
        %s5376 = scalar_lea.vmem [#allocation2], %s5375
        // Predicated region
        $region37: #{ico_interp_conv_forward.1} parent=35 // pred_check
          %p5377 = pneg %p139
        $region38: #{ico_interp_conv_forward.1} parent=35 // pred_check_branch
          %5379 = sbr.rel (%p5377) target = $region40
        $region39: #{ico_interp_conv_forward.1} parent=35 // pred_region
          %s5380 = smul.u32 4, %s23
          %s5382 = ssub.s32 4096, 4096
          %5383 = vsyncadd %s5373, %s5382
          %s5384 = smul.addr %s22, 32
          %s5385 = sadd.s32 %s5380, %s5384
          %s5386 = smul.addr %s5385, 128
          %s5387 = scalar_lea.hbm %s4, %s5386
          %s5388 = sshll.u32 %s5376, 4
          %s5389 = int_to_ptr.vmem [resolvable:$true] %s5388
          %5394 = dma.vmem_to_hbm [thread:$0]  %s5389, 4096, %s5387, %s5373, 128, 128, 8
        $region40: #{ico_interp_conv_forward.1} parent=35 // pred_fallthru
          _
      $region36: #{ico_interp_conv_forward.1} parent=5 // pred_fallthru
        _
      %p5395 = scmp.le.s32.totalorder 2, %s13
      // Predicated region
      $region41: #{ico_interp_conv_forward.1} parent=5 // pred_check
        %p5396 = pneg %p5395
      $region42: #{ico_interp_conv_forward.1} parent=5 // pred_check_branch
        %5398 = sbr.rel (%p5396) target = $region44
      $region43: #{ico_interp_conv_forward.1} parent=5 // pred_region
        %s5399 = ssub.s32 %s13, 2
        // Predicated region
        $region45: #{ico_interp_conv_forward.1} parent=43 // pred_check
          %p5400 = pneg %p145
        $region46: #{ico_interp_conv_forward.1} parent=43 // pred_check_branch
          %5402 = sbr.rel (%p5400) target = $region48
        $region47: #{ico_interp_conv_forward.1} parent=43 // pred_region
          %s5403 = sand.u32 %s130, 1
          %s5404 = scalar_lea.sflag [#allocation3], %s5403
          %s5405 = sand.u32 %s130, 1
          %s5406 = smul.addr %s5405, 256
          %s5407 = scalar_lea.vmem [#allocation2], %s5406
          %5408 = dma.done %s5404, 4096
        $region48: #{ico_interp_conv_forward.1} parent=43 // pred_fallthru
          _
      $region44: #{ico_interp_conv_forward.1} parent=5 // pred_fallthru
        _
    $region6: #{ico_interp_conv_forward.1} parent=1 // loop_footer
      %s17 = sadd.s32 1, %s13
    $region7: #{ico_interp_conv_forward.1} parent=1 // loop_footer_branch
      %12 = sbr.rel target = $region3
    $region8: #{ico_interp_conv_forward.1} parent=1 // loop_exit
      _
    %5409 = vsyncpa [#allocation3], 1
    %s5410 = scalar_lea.sflag [#allocation3], 1
    %5411 = vsyncpa %s5410, 1

</llo_original>
